<compile_context>
chip_gen: v7x
topology: tpu7x:2x2x1
jax: 0.10.0
libtpu: 0.0.40
codegen_flags: <defaults>
</compile_context>

<pallas_src>
import functools
import math

import jax
import jax.numpy as jnp
from jax import lax
from jax.experimental import pallas as pl
from jax.experimental.pallas import tpu as pltpu

DPAD = 128  # lane-dense padded width for every feature / assignment axis


def _round_up8(n):
    return max(8, ((n + 7) // 8) * 8)


# --------------------------------------------------------------------- in-kernel helpers ------

def _minkowski_inner(y):
    """Row-wise Minkowski self inner product <y, y>_L = -y0^2 + sum_{i>0} yi^2 (keepdims)."""
    y0 = y[:, 0:1]
    return jnp.sum(y * y, axis=-1, keepdims=True) - 2.0 * y0 * y0


def _hyperboloid_renorm(s):
    """Rescale rows so that <s, s>_L = -1 (k = 1):  s / sqrt(|<s, s>_L|)."""
    return s * lax.rsqrt(jnp.maximum(jnp.abs(_minkowski_inner(s)), 1e-8))


def _lorentz_linear(x, w_bf16, b, scale_exp, is_lane0, *, apply_relu):
    """HyboNet LorentzLinear: y = (relu?)(x) @ W^T + b, re-projected onto the hyperboloid.
    bf16 MXU operands, f32 accumulation, all hyperboloid math in f32."""
    if apply_relu:
        x = jnp.maximum(x, 0.0)
    y = jnp.dot(x.astype(jnp.bfloat16), w_bf16, preferred_element_type=jnp.float32) + b
    y0 = y[:, 0:1]
    time = jax.nn.sigmoid(y0) * scale_exp + 1.1
    sumsq_spatial = jnp.sum(y * y, axis=-1, keepdims=True) - y0 * y0
    scaled = y * jnp.sqrt((time * time - 1.0) / jnp.maximum(sumsq_spatial, 1e-8))
    return jnp.where(is_lane0, time, scaled)


def _lorentz_agg(adj, h):
    """Neighbourhood aggregation A @ h followed by Lorentz re-normalisation."""
    out = jnp.dot(adj.astype(jnp.bfloat16), h.astype(jnp.bfloat16),
                  preferred_element_type=jnp.float32)
    return _hyperboloid_renorm(out)


def _expmap0(u, is_lane0):
    """Lorentz expmap at the origin (k = 1) for tangent vectors with u[:, 0] == 0."""
    nomin = jnp.maximum(jnp.sqrt(jnp.sum(u * u, axis=-1, keepdims=True)), 1e-8)
    sinh = 0.5 * (jnp.exp(nomin) - jnp.exp(-nomin))          # exact sinh (no approx reciprocal)
    r = u * (sinh / nomin)
    time = jnp.sqrt(1.0 + jnp.sum(r * r, axis=-1, keepdims=True))
    return jnp.where(is_lane0, time, r)


def _poincare_normalize(z, scale, is_lane0):
    """model.normalize: to_poincare -> F.normalize(p=2) * clamp(scale) -> from_poincare (k=1)."""
    z0 = z[:, 0:1]
    p = z / (z0 + 1.0)                                       # lane 0 is junk, excluded below
    p0 = p[:, 0:1]
    p_sumsq = jnp.maximum(jnp.sum(p * p, axis=-1, keepdims=True) - p0 * p0, 0.0)
    q = p * (scale / jnp.maximum(jnp.sqrt(p_sumsq), 1e-12))
    q0 = q[:, 0:1]
    q_sumsq = jnp.sum(q * q, axis=-1, keepdims=True) - q0 * q0
    return jnp.where(is_lane0, 1.0 + q_sumsq, 2.0 * q) / (1.0 - q_sumsq + 1e-6)


def _assignment_softmax(h, lane, num_assign, inv_temp):
    """LorentzAssignment tail.  softmax(log_softmax(x)/T) == softmax(x/T) (shift invariance), so
    a single masked max-subtracted softmax over lanes 1..K is computed (exact denominator)."""
    valid = jnp.logical_and(lane >= 1, lane <= num_assign)
    s = jnp.where(valid, h * inv_temp, jnp.float32(-1e30))
    m = jnp.max(s, axis=-1, keepdims=True)
    e = jnp.exp(s - m)                                       # masked lanes underflow to exact 0
    return e / jnp.sum(e, axis=-1, keepdims=True)


# --------------------------------------------------------------------------- kernel -----------

def _lsenet_kernel(scalars_ref, x_ref, adj_ref, w_ref, b_ref, out_ref, *,
                   num_layers, num_assign, num_assign_pad, level_rows,
                   z_offsets, frechet_offset, ass_offsets):
    # hoisted lane index / lane-0 mask (built once, reused by every helper)
    lane = lax.broadcasted_iota(jnp.int32, (1, DPAD), 1)
    is_lane0 = lane == 0

    scale = scalars_ref[0]        # already clamped to [0.01, 0.999] (traced) in the wrapper
    inv_temp = scalars_ref[1]

    adj = adj_ref[...]
    x = _expmap0(x_ref[...], is_lane0)

    # GraphEncoder: two Lorentz graph convolutions (linear -> aggregate), relu on the second
    h = _lorentz_linear(x, w_ref[0], b_ref[0], scalars_ref[2], is_lane0, apply_relu=False)
    h = _lorentz_agg(adj, h)
    h = _lorentz_linear(h, w_ref[1], b_ref[1], scalars_ref[3], is_lane0, apply_relu=True)
    z = _lorentz_agg(adj, h)

    z = _poincare_normalize(z, scale, is_lane0)
    out_ref[pl.ds(z_offsets[0], level_rows[0]), :] = z

    for li in range(num_layers):
        k = num_assign[li]
        kpad = num_assign_pad[li]
        rows_slab = level_rows[li]
        rows_valid = level_rows[0] if li == 0 else num_assign[li - 1]

        # LSENetLayer assignor: proj (LorentzLinear) -> LorentzGraphConvolution (relu) -> agg
        h = _lorentz_linear(z, w_ref[2 + 2 * li], b_ref[2 + 2 * li],
                            scalars_ref[4 + 2 * li], is_lane0, apply_relu=False)
        h = _lorentz_linear(h, w_ref[3 + 2 * li], b_ref[3 + 2 * li],
                            scalars_ref[5 + 2 * li], is_lane0, apply_relu=True)
        h = _lorentz_agg(adj, h)
        ass = _assignment_softmax(h, lane, k, inv_temp)
        # store the raw (unshifted) softmax; the wrapper slices lanes 1..K outside the kernel
        out_ref[pl.ds(ass_offsets[li], rows_slab), :] = ass

        # narrow(-1, 1, K) + transpose fused into one tiny (kpad x 128) selection matmul:
        # ass_kt[c, i] = ass[i, c + 1]
        rsel = lax.broadcasted_iota(jnp.int32, (kpad, DPAD), 0)
        csel = lax.broadcasted_iota(jnp.int32, (kpad, DPAD), 1)
        sel_t = (csel == rsel + 1).astype(jnp.float32)
        ass_kt = lax.dot_general(sel_t, ass, (((1,), (1,)), ((), ())),
                                 preferred_element_type=jnp.float32)      # (kpad, rows_slab)
        if rows_slab > rows_valid:
            # zero the padded node rows so they can never pollute pooling
            cmask = lax.broadcasted_iota(jnp.int32, (1, rows_slab), 1)
            ass_kt = jnp.where(cmask < rows_valid, ass_kt, 0.0)

        # Lorentz midpoint pooling + adjacency coarsening -- every product has only kpad rows
        z = _hyperboloid_renorm(jnp.dot(ass_kt, z, preferred_element_type=jnp.float32))
        out_ref[pl.ds(z_offsets[li + 1], kpad), :] = z

        if li + 1 < num_layers:
            tmp = lax.dot_general(adj, ass_kt, (((1,), (1,)), ((), ())),
                                  preferred_element_type=jnp.float32)     # adj @ ass_k
            pooled = jnp.dot(ass_kt, tmp, preferred_element_type=jnp.float32)
            rr = lax.broadcasted_iota(jnp.int32, (kpad, kpad), 0)
            cc = lax.broadcasted_iota(jnp.int32, (kpad, kpad), 1)
            pooled = jnp.where(rr == cc, 0.0, pooled)                     # adj - eye * diag(adj)
            # TODO(synk): reference rebuilds edge_index = adj.nonzero(); dense binary adj carried
            adj = (pooled != 0.0).astype(jnp.float32)

    # Frechet mean (Lorentz midpoint) of the coarsest level; padded rows of z are exact zeros
    mean = _hyperboloid_renorm(jnp.sum(z, axis=0, keepdims=True))
    out_ref[pl.ds(frechet_offset, 8), :] = jnp.broadcast_to(mean, (8, DPAD))


# --------------------------------------------------------------------------- wrapper ----------

def lsenet_forward(params, x, edge_index, *, height, temperature, embed_dim, num_assign):
    """Returns (tree_node_coords, assignments) matching LSENet_model.forward."""
    n, in_features = x.shape
    num_layers = height - 1
    assert len(num_assign) == num_layers and max(num_assign) < DPAD
    kpads = [_round_up8(k) for k in num_assign]
    level_rows = [n] + kpads                  # node-row counts of z at levels height .. 1

    # layout of the single merged lane-dense output slab (all sections are multiples of 8 rows)
    z_offsets, off = [], 0
    for r in level_rows:
        z_offsets.append(off)
        off += r
    frechet_offset = off
    off += 8
    ass_offsets = []
    for r in level_rows[:num_layers]:
        ass_offsets.append(off)
        off += r
    total_rows = off

    # dense binary-weighted adjacency carrier of edge_index (duplicates sum, like sparse spmm)
    adj = jnp.zeros((n, n), jnp.float32).at[edge_index[0], edge_index[1]].add(1.0)
    # lift into the tangent space at the origin (zero time column) and lane-pad to DPAD
    x_pad = jnp.zeros((n, DPAD), jnp.float32).at[:, 1:1 + in_features].set(x)

    # pack all LorentzLinear weights into ONE bf16 slab and all biases into ONE f32 slab
    lps = [params["enc0"], params["enc1"]]
    for lp in params["layers"]:
        lps += [lp["proj"], lp["assign"]]
    w_all = jnp.stack([p["w_t"] for p in lps]).astype(jnp.bfloat16)       # (n_lin, 128, 128)
    b_all = jnp.stack([p["b"] for p in lps]).astype(jnp.float32)          # (n_lin, 1, 128)

    # learnable / config scalars go to SMEM (traced -> no recompile when they change)
    scale = jnp.clip(jnp.asarray(params["scale"], jnp.float32).reshape(()), 0.01, 0.999)
    scalars = jnp.concatenate([
        jnp.reshape(scale, (1,)),
        jnp.asarray([1.0 / float(temperature)], jnp.float32),
        jnp.exp(jnp.stack([jnp.asarray(p["log_scale"], jnp.float32) for p in lps])),
    ])

    kernel = functools.partial(
        _lsenet_kernel, num_layers=num_layers, num_assign=tuple(num_assign),
        num_assign_pad=tuple(kpads), level_rows=tuple(level_rows),
        z_offsets=tuple(z_offsets), frechet_offset=frechet_offset,
        ass_offsets=tuple(ass_offsets))

    # Single fused launch: the whole problem (< 1 MiB) stays resident in VMEM.
    out = pl.pallas_call(
        kernel,
        out_shape=jax.ShapeDtypeStruct((total_rows, DPAD), jnp.float32),
        in_specs=[
            pl.BlockSpec(memory_space=pltpu.MemorySpace.SMEM),    # scalars
            pl.BlockSpec(memory_space=pltpu.MemorySpace.VMEM),    # x_pad
            pl.BlockSpec(memory_space=pltpu.MemorySpace.VMEM),    # adj
            pl.BlockSpec(memory_space=pltpu.MemorySpace.VMEM),    # packed weights (bf16)
            pl.BlockSpec(memory_space=pltpu.MemorySpace.VMEM),    # packed biases
        ],
        out_specs=pl.BlockSpec(memory_space=pltpu.MemorySpace.VMEM),
    )(scalars, x_pad, adj, w_all, b_all)

    # strip lane / row padding once, outside the kernel
    d = embed_dim + 1
    tree = {height: out[z_offsets[0]:z_offsets[0] + n, :d]}
    for i in range(num_layers):
        tree[height - i - 1] = out[z_offsets[i + 1]:z_offsets[i + 1] + num_assign[i], :d]
    tree[0] = out[frechet_offset:frechet_offset + 1, :d]

    assignments = {}
    prev_valid = n
    for i in range(num_layers):
        assignments[height - i] = out[ass_offsets[i]:ass_offsets[i] + prev_valid,
                                      1:1 + num_assign[i]]
        prev_valid = num_assign[i]
    assignments[1] = jnp.ones((num_assign[-1], 1), jnp.float32)
    return tree, assignments


# --------------------------------------------------------------------------- params -----------

def make_lorentz_linear_params(key, in_f, out_f):
    # mirrors LorentzLinear.reset_parameters: uniform(-1/sqrt(out), 1/sqrt(out)), input column 0
    # zeroed, bias zero, scale parameter stored in log-space (log(10)).  Weights are zero-padded
    # into a lane-dense (DPAD, DPAD) slab (W^T layout) so every MXU operand stays 128-aligned.
    assert in_f <= DPAD and out_f <= DPAD
    stdv = 1.0 / math.sqrt(out_f)
    w = jax.random.uniform(key, (out_f, in_f), jnp.float32, -stdv, stdv)
    w = w.at[:, 0].set(0.0)
    w_t = jnp.zeros((DPAD, DPAD), jnp.float32).at[:in_f, :out_f].set(w.T)
    return {"w_t": w_t, "b": jnp.zeros((1, DPAD), jnp.float32), "log_scale": math.log(10.0)}


# --------------------------------------------------------------------------- main -------------

if __name__ == "__main__":
    num_nodes = 32
    in_features = 16
    hidden_dim_enc = 32
    hidden_features = 32
    embed_dim = 16
    height = 3
    temperature = 0.1

    decay_rate = int(math.exp(math.log(num_nodes) / height))
    max_nums = [int(num_nodes / decay_rate ** i) for i in range(1, height)]    # [10, 3]

    key = jax.random.PRNGKey(0)
    kx, k0, k1, kp0, ka0, kp1, ka1 = jax.random.split(key, 7)

    x = jax.random.normal(kx, (num_nodes, in_features), jnp.float32)

    # deterministic small graph: bidirectional ring
    src = jnp.arange(num_nodes, dtype=jnp.int32)
    dst = (src + 1) % num_nodes
    edge_index = jnp.concatenate([jnp.stack([src, dst]), jnp.stack([dst, src])], axis=1)

    layer_keys = [(kp0, ka0), (kp1, ka1)]
    params = {
        "scale": 0.999,
        "enc0": make_lorentz_linear_params(k0, in_features + 1, hidden_dim_enc),
        "enc1": make_lorentz_linear_params(k1, hidden_dim_enc, embed_dim + 1),
        "layers": [
            {"proj": make_lorentz_linear_params(layer_keys[i][0], embed_dim + 1, hidden_features),
             "assign": make_lorentz_linear_params(layer_keys[i][1], hidden_features,
                                                  max_nums[i] + 1)}
            for i in range(height - 1)
        ],
    }

    tree, assignments = lsenet_forward(params, x, edge_index, height=height,
                                       temperature=temperature, embed_dim=embed_dim,
                                       num_assign=max_nums)
    jax.block_until_ready(tree)
    jax.block_until_ready(assignments)
    print("KERNEL_OK")
</pallas_src>

<mosaic_0001>
module attributes {stable_mosaic.version = 11 : i64} {
  func.func @_lsenet_kernel(%arg0: memref<8xf32, #tpu.memory_space<smem>>, %arg1: memref<32x128xf32, #tpu.memory_space<vmem>>, %arg2: memref<32x32xf32, #tpu.memory_space<vmem>>, %arg3: memref<6x128x128xbf16, #tpu.memory_space<vmem>>, %arg4: memref<6x1x128xf32, #tpu.memory_space<vmem>>, %arg5: memref<112x128xf32, #tpu.memory_space<vmem>>) attributes {dimension_semantics = [], scalar_prefetch = 0 : i64, scratch_operands = 0 : i64, tpu.core_type = #tpu.core_type<tc>} {
    %0 = tpu.iota {dimensions = array<i32: 1>} : vector<1x128xi32>
    %c0_i32 = arith.constant 0 : i32
    %1 = vector.broadcast %c0_i32 : i32 to vector<1x128xi32>
    %2 = arith.cmpi eq, %0, %1 : vector<1x128xi32>
    %c0 = arith.constant 0 : index
    %3 = memref.load %arg0[%c0] : memref<8xf32, #tpu.memory_space<smem>>
    %c1 = arith.constant 1 : index
    %4 = memref.load %arg0[%c1] : memref<8xf32, #tpu.memory_space<smem>>
    %c0_0 = arith.constant 0 : index
    %c0_1 = arith.constant 0 : index
    %5 = vector.load %arg2[%c0_0, %c0_1] : memref<32x32xf32, #tpu.memory_space<vmem>>, vector<32x32xf32>
    %c0_2 = arith.constant 0 : index
    %c0_3 = arith.constant 0 : index
    %6 = vector.load %arg1[%c0_2, %c0_3] : memref<32x128xf32, #tpu.memory_space<vmem>>, vector<32x128xf32>
    %7 = arith.mulf %6, %6 : vector<32x128xf32>
    %cst = arith.constant dense<0.000000e+00> : vector<32xf32>
    %8 = vector.multi_reduction <add>, %7, %cst [1] : vector<32x128xf32> to vector<32xf32>
    %9 = vector.shape_cast %8 : vector<32xf32> to vector<32x1xf32>
    %10 = math.sqrt %9 : vector<32x1xf32>
    %cst_4 = arith.constant 9.99999993E-9 : f32
    %11 = vector.broadcast %cst_4 : f32 to vector<32x1xf32>
    %12 = arith.maximumf %10, %11 : vector<32x1xf32>
    %13 = math.exp %12 : vector<32x1xf32>
    %cst_5 = arith.constant 0.000000e+00 : f32
    %14 = vector.broadcast %cst_5 : f32 to vector<32x1xf32>
    %15 = arith.subf %14, %12 : vector<32x1xf32>
    %16 = math.exp %15 : vector<32x1xf32>
    %17 = arith.subf %13, %16 : vector<32x1xf32>
    %cst_6 = arith.constant 5.000000e-01 : f32
    %18 = vector.broadcast %cst_6 : f32 to vector<32x1xf32>
    %19 = arith.mulf %18, %17 : vector<32x1xf32>
    %20 = arith.divf %19, %12 : vector<32x1xf32>
    %21 = vector.broadcast %20 : vector<32x1xf32> to vector<32x128xf32>
    %22 = arith.mulf %6, %21 : vector<32x128xf32>
    %23 = arith.mulf %22, %22 : vector<32x128xf32>
    %cst_7 = arith.constant dense<0.000000e+00> : vector<32xf32>
    %24 = vector.multi_reduction <add>, %23, %cst_7 [1] : vector<32x128xf32> to vector<32xf32>
    %25 = vector.shape_cast %24 : vector<32xf32> to vector<32x1xf32>
    %cst_8 = arith.constant 1.000000e+00 : f32
    %26 = vector.broadcast %cst_8 : f32 to vector<32x1xf32>
    %27 = arith.addf %26, %25 : vector<32x1xf32>
    %28 = math.sqrt %27 : vector<32x1xf32>
    %29 = vector.shape_cast %2 : vector<1x128xi1> to vector<1x128xi1>
    %30 = vector.broadcast %29 : vector<1x128xi1> to vector<32x128xi1>
    %31 = vector.shape_cast %28 : vector<32x1xf32> to vector<32x1xf32>
    %32 = vector.broadcast %31 : vector<32x1xf32> to vector<32x128xf32>
    %33 = arith.select %30, %32, %22 : vector<32x128xi1>, vector<32x128xf32>
    %c0_9 = arith.constant 0 : index
    %c0_10 = arith.constant 0 : index
    %c0_11 = arith.constant 0 : index
    %34 = vector.load %arg3[%c0_9, %c0_10, %c0_11] : memref<6x128x128xbf16, #tpu.memory_space<vmem>>, vector<1x128x128xbf16>
    %35 = vector.shape_cast %34 : vector<1x128x128xbf16> to vector<128x128xbf16>
    %c0_12 = arith.constant 0 : index
    %c0_13 = arith.constant 0 : index
    %c0_14 = arith.constant 0 : index
    %36 = vector.load %arg4[%c0_12, %c0_13, %c0_14] : memref<6x1x128xf32, #tpu.memory_space<vmem>>, vector<1x1x128xf32>
    %37 = vector.shape_cast %36 : vector<1x1x128xf32> to vector<1x128xf32>
    %c2 = arith.constant 2 : index
    %38 = memref.load %arg0[%c2] : memref<8xf32, #tpu.memory_space<smem>>
    %39 = arith.truncf %33 : vector<32x128xf32> to vector<32x128xbf16>
    %cst_15 = arith.constant dense<0.000000e+00> : vector<32x128xf32>
    %40 = tpu.matmul %39, %35, %cst_15 {dimension_numbers = #tpu.dot_dimension_numbers<[1], [0], [0], [1], [0, 0, 1, 1], [], []>} : vector<32x128xbf16>, vector<128x128xbf16>, vector<32x128xf32> -> vector<32x128xf32>
    %41 = vector.broadcast %37 : vector<1x128xf32> to vector<32x128xf32>
    %42 = arith.addf %40, %41 : vector<32x128xf32>
    %43 = vector.extract_strided_slice %42 {offsets = [0, 0], sizes = [32, 1], strides = [1, 1]} : vector<32x128xf32> to vector<32x1xf32>
    %44 = arith.negf %43 : vector<32x1xf32>
    %45 = math.exp %44 : vector<32x1xf32>
    %cst_16 = arith.constant 1.000000e+00 : f32
    %46 = vector.broadcast %cst_16 : f32 to vector<32x1xf32>
    %47 = arith.addf %46, %45 : vector<32x1xf32>
    %48 = arith.divf %46, %47 : vector<32x1xf32>
    %49 = vector.broadcast %38 : f32 to vector<32x1xf32>
    %50 = arith.mulf %48, %49 : vector<32x1xf32>
    %cst_17 = arith.constant 1.100000e+00 : f32
    %51 = vector.broadcast %cst_17 : f32 to vector<32x1xf32>
    %52 = arith.addf %50, %51 : vector<32x1xf32>
    %53 = arith.mulf %42, %42 : vector<32x128xf32>
    %cst_18 = arith.constant dense<0.000000e+00> : vector<32xf32>
    %54 = vector.multi_reduction <add>, %53, %cst_18 [1] : vector<32x128xf32> to vector<32xf32>
    %55 = vector.shape_cast %54 : vector<32xf32> to vector<32x1xf32>
    %56 = arith.mulf %43, %43 : vector<32x1xf32>
    %57 = arith.subf %55, %56 : vector<32x1xf32>
    %58 = arith.mulf %52, %52 : vector<32x1xf32>
    %cst_19 = arith.constant 1.000000e+00 : f32
    %59 = vector.broadcast %cst_19 : f32 to vector<32x1xf32>
    %60 = arith.subf %58, %59 : vector<32x1xf32>
    %cst_20 = arith.constant 9.99999993E-9 : f32
    %61 = vector.broadcast %cst_20 : f32 to vector<32x1xf32>
    %62 = arith.maximumf %57, %61 : vector<32x1xf32>
    %63 = arith.divf %60, %62 : vector<32x1xf32>
    %64 = math.sqrt %63 : vector<32x1xf32>
    %65 = vector.broadcast %64 : vector<32x1xf32> to vector<32x128xf32>
    %66 = arith.mulf %42, %65 : vector<32x128xf32>
    %67 = vector.shape_cast %2 : vector<1x128xi1> to vector<1x128xi1>
    %68 = vector.broadcast %67 : vector<1x128xi1> to vector<32x128xi1>
    %69 = vector.shape_cast %52 : vector<32x1xf32> to vector<32x1xf32>
    %70 = vector.broadcast %69 : vector<32x1xf32> to vector<32x128xf32>
    %71 = arith.select %68, %70, %66 : vector<32x128xi1>, vector<32x128xf32>
    %72 = arith.truncf %5 : vector<32x32xf32> to vector<32x32xbf16>
    %73 = arith.truncf %71 : vector<32x128xf32> to vector<32x128xbf16>
    %cst_21 = arith.constant dense<0.000000e+00> : vector<32x128xf32>
    %74 = tpu.matmul %72, %73, %cst_21 {dimension_numbers = #tpu.dot_dimension_numbers<[1], [0], [0], [1], [0, 0, 1, 1], [], []>} : vector<32x32xbf16>, vector<32x128xbf16>, vector<32x128xf32> -> vector<32x128xf32>
    %75 = vector.extract_strided_slice %74 {offsets = [0, 0], sizes = [32, 1], strides = [1, 1]} : vector<32x128xf32> to vector<32x1xf32>
    %76 = arith.mulf %74, %74 : vector<32x128xf32>
    %cst_22 = arith.constant dense<0.000000e+00> : vector<32xf32>
    %77 = vector.multi_reduction <add>, %76, %cst_22 [1] : vector<32x128xf32> to vector<32xf32>
    %78 = vector.shape_cast %77 : vector<32xf32> to vector<32x1xf32>
    %cst_23 = arith.constant 2.000000e+00 : f32
    %79 = vector.broadcast %cst_23 : f32 to vector<32x1xf32>
    %80 = arith.mulf %79, %75 : vector<32x1xf32>
    %81 = arith.mulf %80, %75 : vector<32x1xf32>
    %82 = arith.subf %78, %81 : vector<32x1xf32>
    %83 = math.absf %82 : vector<32x1xf32>
    %cst_24 = arith.constant 9.99999993E-9 : f32
    %84 = vector.broadcast %cst_24 : f32 to vector<32x1xf32>
    %85 = arith.maximumf %83, %84 : vector<32x1xf32>
    %86 = math.rsqrt %85 : vector<32x1xf32>
    %87 = vector.broadcast %86 : vector<32x1xf32> to vector<32x128xf32>
    %88 = arith.mulf %74, %87 : vector<32x128xf32>
    %c1_25 = arith.constant 1 : index
    %c0_26 = arith.constant 0 : index
    %c0_27 = arith.constant 0 : index
    %89 = vector.load %arg3[%c1_25, %c0_26, %c0_27] : memref<6x128x128xbf16, #tpu.memory_space<vmem>>, vector<1x128x128xbf16>
    %90 = vector.shape_cast %89 : vector<1x128x128xbf16> to vector<128x128xbf16>
    %c1_28 = arith.constant 1 : index
    %c0_29 = arith.constant 0 : index
    %c0_30 = arith.constant 0 : index
    %91 = vector.load %arg4[%c1_28, %c0_29, %c0_30] : memref<6x1x128xf32, #tpu.memory_space<vmem>>, vector<1x1x128xf32>
    %92 = vector.shape_cast %91 : vector<1x1x128xf32> to vector<1x128xf32>
    %c3 = arith.constant 3 : index
    %93 = memref.load %arg0[%c3] : memref<8xf32, #tpu.memory_space<smem>>
    %cst_31 = arith.constant 0.000000e+00 : f32
    %94 = vector.broadcast %cst_31 : f32 to vector<32x128xf32>
    %95 = arith.maximumf %88, %94 : vector<32x128xf32>
    %96 = arith.truncf %95 : vector<32x128xf32> to vector<32x128xbf16>
    %cst_32 = arith.constant dense<0.000000e+00> : vector<32x128xf32>
    %97 = tpu.matmul %96, %90, %cst_32 {dimension_numbers = #tpu.dot_dimension_numbers<[1], [0], [0], [1], [0, 0, 1, 1], [], []>} : vector<32x128xbf16>, vector<128x128xbf16>, vector<32x128xf32> -> vector<32x128xf32>
    %98 = vector.broadcast %92 : vector<1x128xf32> to vector<32x128xf32>
    %99 = arith.addf %97, %98 : vector<32x128xf32>
    %100 = vector.extract_strided_slice %99 {offsets = [0, 0], sizes = [32, 1], strides = [1, 1]} : vector<32x128xf32> to vector<32x1xf32>
    %101 = arith.negf %100 : vector<32x1xf32>
    %102 = math.exp %101 : vector<32x1xf32>
    %cst_33 = arith.constant 1.000000e+00 : f32
    %103 = vector.broadcast %cst_33 : f32 to vector<32x1xf32>
    %104 = arith.addf %103, %102 : vector<32x1xf32>
    %105 = arith.divf %103, %104 : vector<32x1xf32>
    %106 = vector.broadcast %93 : f32 to vector<32x1xf32>
    %107 = arith.mulf %105, %106 : vector<32x1xf32>
    %cst_34 = arith.constant 1.100000e+00 : f32
    %108 = vector.broadcast %cst_34 : f32 to vector<32x1xf32>
    %109 = arith.addf %107, %108 : vector<32x1xf32>
    %110 = arith.mulf %99, %99 : vector<32x128xf32>
    %cst_35 = arith.constant dense<0.000000e+00> : vector<32xf32>
    %111 = vector.multi_reduction <add>, %110, %cst_35 [1] : vector<32x128xf32> to vector<32xf32>
    %112 = vector.shape_cast %111 : vector<32xf32> to vector<32x1xf32>
    %113 = arith.mulf %100, %100 : vector<32x1xf32>
    %114 = arith.subf %112, %113 : vector<32x1xf32>
    %115 = arith.mulf %109, %109 : vector<32x1xf32>
    %cst_36 = arith.constant 1.000000e+00 : f32
    %116 = vector.broadcast %cst_36 : f32 to vector<32x1xf32>
    %117 = arith.subf %115, %116 : vector<32x1xf32>
    %cst_37 = arith.constant 9.99999993E-9 : f32
    %118 = vector.broadcast %cst_37 : f32 to vector<32x1xf32>
    %119 = arith.maximumf %114, %118 : vector<32x1xf32>
    %120 = arith.divf %117, %119 : vector<32x1xf32>
    %121 = math.sqrt %120 : vector<32x1xf32>
    %122 = vector.broadcast %121 : vector<32x1xf32> to vector<32x128xf32>
    %123 = arith.mulf %99, %122 : vector<32x128xf32>
    %124 = vector.shape_cast %2 : vector<1x128xi1> to vector<1x128xi1>
    %125 = vector.broadcast %124 : vector<1x128xi1> to vector<32x128xi1>
    %126 = vector.shape_cast %109 : vector<32x1xf32> to vector<32x1xf32>
    %127 = vector.broadcast %126 : vector<32x1xf32> to vector<32x128xf32>
    %128 = arith.select %125, %127, %123 : vector<32x128xi1>, vector<32x128xf32>
    %129 = arith.truncf %5 : vector<32x32xf32> to vector<32x32xbf16>
    %130 = arith.truncf %128 : vector<32x128xf32> to vector<32x128xbf16>
    %cst_38 = arith.constant dense<0.000000e+00> : vector<32x128xf32>
    %131 = tpu.matmul %129, %130, %cst_38 {dimension_numbers = #tpu.dot_dimension_numbers<[1], [0], [0], [1], [0, 0, 1, 1], [], []>} : vector<32x32xbf16>, vector<32x128xbf16>, vector<32x128xf32> -> vector<32x128xf32>
    %132 = vector.extract_strided_slice %131 {offsets = [0, 0], sizes = [32, 1], strides = [1, 1]} : vector<32x128xf32> to vector<32x1xf32>
    %133 = arith.mulf %131, %131 : vector<32x128xf32>
    %cst_39 = arith.constant dense<0.000000e+00> : vector<32xf32>
    %134 = vector.multi_reduction <add>, %133, %cst_39 [1] : vector<32x128xf32> to vector<32xf32>
    %135 = vector.shape_cast %134 : vector<32xf32> to vector<32x1xf32>
    %cst_40 = arith.constant 2.000000e+00 : f32
    %136 = vector.broadcast %cst_40 : f32 to vector<32x1xf32>
    %137 = arith.mulf %136, %132 : vector<32x1xf32>
    %138 = arith.mulf %137, %132 : vector<32x1xf32>
    %139 = arith.subf %135, %138 : vector<32x1xf32>
    %140 = math.absf %139 : vector<32x1xf32>
    %cst_41 = arith.constant 9.99999993E-9 : f32
    %141 = vector.broadcast %cst_41 : f32 to vector<32x1xf32>
    %142 = arith.maximumf %140, %141 : vector<32x1xf32>
    %143 = math.rsqrt %142 : vector<32x1xf32>
    %144 = vector.broadcast %143 : vector<32x1xf32> to vector<32x128xf32>
    %145 = arith.mulf %131, %144 : vector<32x128xf32>
    %146 = vector.extract_strided_slice %145 {offsets = [0, 0], sizes = [32, 1], strides = [1, 1]} : vector<32x128xf32> to vector<32x1xf32>
    %cst_42 = arith.constant 1.000000e+00 : f32
    %147 = vector.broadcast %cst_42 : f32 to vector<32x1xf32>
    %148 = arith.addf %146, %147 : vector<32x1xf32>
    %149 = vector.broadcast %148 : vector<32x1xf32> to vector<32x128xf32>
    %150 = arith.divf %145, %149 : vector<32x128xf32>
    %151 = vector.extract_strided_slice %150 {offsets = [0, 0], sizes = [32, 1], strides = [1, 1]} : vector<32x128xf32> to vector<32x1xf32>
    %152 = arith.mulf %150, %150 : vector<32x128xf32>
    %cst_43 = arith.constant dense<0.000000e+00> : vector<32xf32>
    %153 = vector.multi_reduction <add>, %152, %cst_43 [1] : vector<32x128xf32> to vector<32xf32>
    %154 = vector.shape_cast %153 : vector<32xf32> to vector<32x1xf32>
    %155 = arith.mulf %151, %151 : vector<32x1xf32>
    %156 = arith.subf %154, %155 : vector<32x1xf32>
    %cst_44 = arith.constant 0.000000e+00 : f32
    %157 = vector.broadcast %cst_44 : f32 to vector<32x1xf32>
    %158 = arith.maximumf %156, %157 : vector<32x1xf32>
    %159 = math.sqrt %158 : vector<32x1xf32>
    %cst_45 = arith.constant 9.99999996E-13 : f32
    %160 = vector.broadcast %cst_45 : f32 to vector<32x1xf32>
    %161 = arith.maximumf %159, %160 : vector<32x1xf32>
    %162 = vector.broadcast %3 : f32 to vector<32x1xf32>
    %163 = arith.divf %162, %161 : vector<32x1xf32>
    %164 = vector.broadcast %163 : vector<32x1xf32> to vector<32x128xf32>
    %165 = arith.mulf %150, %164 : vector<32x128xf32>
    %166 = vector.extract_strided_slice %165 {offsets = [0, 0], sizes = [32, 1], strides = [1, 1]} : vector<32x128xf32> to vector<32x1xf32>
    %167 = arith.mulf %165, %165 : vector<32x128xf32>
    %cst_46 = arith.constant dense<0.000000e+00> : vector<32xf32>
    %168 = vector.multi_reduction <add>, %167, %cst_46 [1] : vector<32x128xf32> to vector<32xf32>
    %169 = vector.shape_cast %168 : vector<32xf32> to vector<32x1xf32>
    %170 = arith.mulf %166, %166 : vector<32x1xf32>
    %171 = arith.subf %169, %170 : vector<32x1xf32>
    %cst_47 = arith.constant 1.000000e+00 : f32
    %172 = vector.broadcast %cst_47 : f32 to vector<32x1xf32>
    %173 = arith.addf %172, %171 : vector<32x1xf32>
    %cst_48 = arith.constant 2.000000e+00 : f32
    %174 = vector.broadcast %cst_48 : f32 to vector<32x128xf32>
    %175 = arith.mulf %174, %165 : vector<32x128xf32>
    %176 = vector.shape_cast %2 : vector<1x128xi1> to vector<1x128xi1>
    %177 = vector.broadcast %176 : vector<1x128xi1> to vector<32x128xi1>
    %178 = vector.shape_cast %173 : vector<32x1xf32> to vector<32x1xf32>
    %179 = vector.broadcast %178 : vector<32x1xf32> to vector<32x128xf32>
    %180 = arith.select %177, %179, %175 : vector<32x128xi1>, vector<32x128xf32>
    %cst_49 = arith.constant 1.000000e+00 : f32
    %181 = vector.broadcast %cst_49 : f32 to vector<32x1xf32>
    %182 = arith.subf %181, %171 : vector<32x1xf32>
    %cst_50 = arith.constant 9.99999997E-7 : f32
    %183 = vector.broadcast %cst_50 : f32 to vector<32x1xf32>
    %184 = arith.addf %182, %183 : vector<32x1xf32>
    %185 = vector.broadcast %184 : vector<32x1xf32> to vector<32x128xf32>
    %186 = arith.divf %180, %185 : vector<32x128xf32>
    %c0_51 = arith.constant 0 : index
    %c0_52 = arith.constant 0 : index
    %187 = vector.load %arg5[%c0_51, %c0_52] : memref<112x128xf32, #tpu.memory_space<vmem>>, vector<32x128xf32>
    tpu.vector_store %arg5[%c0_51, %c0_52], %186 {strides = array<i32>} : memref<112x128xf32, #tpu.memory_space<vmem>>, vector<32x128xf32>,
    %c2_53 = arith.constant 2 : index
    %c0_54 = arith.constant 0 : index
    %c0_55 = arith.constant 0 : index
    %188 = vector.load %arg3[%c2_53, %c0_54, %c0_55] : memref<6x128x128xbf16, #tpu.memory_space<vmem>>, vector<1x128x128xbf16>
    %189 = vector.shape_cast %188 : vector<1x128x128xbf16> to vector<128x128xbf16>
    %c2_56 = arith.constant 2 : index
    %c0_57 = arith.constant 0 : index
    %c0_58 = arith.constant 0 : index
    %190 = vector.load %arg4[%c2_56, %c0_57, %c0_58] : memref<6x1x128xf32, #tpu.memory_space<vmem>>, vector<1x1x128xf32>
    %191 = vector.shape_cast %190 : vector<1x1x128xf32> to vector<1x128xf32>
    %c4 = arith.constant 4 : index
    %192 = memref.load %arg0[%c4] : memref<8xf32, #tpu.memory_space<smem>>
    %193 = arith.truncf %186 : vector<32x128xf32> to vector<32x128xbf16>
    %cst_59 = arith.constant dense<0.000000e+00> : vector<32x128xf32>
    %194 = tpu.matmul %193, %189, %cst_59 {dimension_numbers = #tpu.dot_dimension_numbers<[1], [0], [0], [1], [0, 0, 1, 1], [], []>} : vector<32x128xbf16>, vector<128x128xbf16>, vector<32x128xf32> -> vector<32x128xf32>
    %195 = vector.broadcast %191 : vector<1x128xf32> to vector<32x128xf32>
    %196 = arith.addf %194, %195 : vector<32x128xf32>
    %197 = vector.extract_strided_slice %196 {offsets = [0, 0], sizes = [32, 1], strides = [1, 1]} : vector<32x128xf32> to vector<32x1xf32>
    %198 = arith.negf %197 : vector<32x1xf32>
    %199 = math.exp %198 : vector<32x1xf32>
    %cst_60 = arith.constant 1.000000e+00 : f32
    %200 = vector.broadcast %cst_60 : f32 to vector<32x1xf32>
    %201 = arith.addf %200, %199 : vector<32x1xf32>
    %202 = arith.divf %200, %201 : vector<32x1xf32>
    %203 = vector.broadcast %192 : f32 to vector<32x1xf32>
    %204 = arith.mulf %202, %203 : vector<32x1xf32>
    %cst_61 = arith.constant 1.100000e+00 : f32
    %205 = vector.broadcast %cst_61 : f32 to vector<32x1xf32>
    %206 = arith.addf %204, %205 : vector<32x1xf32>
    %207 = arith.mulf %196, %196 : vector<32x128xf32>
    %cst_62 = arith.constant dense<0.000000e+00> : vector<32xf32>
    %208 = vector.multi_reduction <add>, %207, %cst_62 [1] : vector<32x128xf32> to vector<32xf32>
    %209 = vector.shape_cast %208 : vector<32xf32> to vector<32x1xf32>
    %210 = arith.mulf %197, %197 : vector<32x1xf32>
    %211 = arith.subf %209, %210 : vector<32x1xf32>
    %212 = arith.mulf %206, %206 : vector<32x1xf32>
    %cst_63 = arith.constant 1.000000e+00 : f32
    %213 = vector.broadcast %cst_63 : f32 to vector<32x1xf32>
    %214 = arith.subf %212, %213 : vector<32x1xf32>
    %cst_64 = arith.constant 9.99999993E-9 : f32
    %215 = vector.broadcast %cst_64 : f32 to vector<32x1xf32>
    %216 = arith.maximumf %211, %215 : vector<32x1xf32>
    %217 = arith.divf %214, %216 : vector<32x1xf32>
    %218 = math.sqrt %217 : vector<32x1xf32>
    %219 = vector.broadcast %218 : vector<32x1xf32> to vector<32x128xf32>
    %220 = arith.mulf %196, %219 : vector<32x128xf32>
    %221 = vector.shape_cast %2 : vector<1x128xi1> to vector<1x128xi1>
    %222 = vector.broadcast %221 : vector<1x128xi1> to vector<32x128xi1>
    %223 = vector.shape_cast %206 : vector<32x1xf32> to vector<32x1xf32>
    %224 = vector.broadcast %223 : vector<32x1xf32> to vector<32x128xf32>
    %225 = arith.select %222, %224, %220 : vector<32x128xi1>, vector<32x128xf32>
    %c3_65 = arith.constant 3 : index
    %c0_66 = arith.constant 0 : index
    %c0_67 = arith.constant 0 : index
    %226 = vector.load %arg3[%c3_65, %c0_66, %c0_67] : memref<6x128x128xbf16, #tpu.memory_space<vmem>>, vector<1x128x128xbf16>
    %227 = vector.shape_cast %226 : vector<1x128x128xbf16> to vector<128x128xbf16>
    %c3_68 = arith.constant 3 : index
    %c0_69 = arith.constant 0 : index
    %c0_70 = arith.constant 0 : index
    %228 = vector.load %arg4[%c3_68, %c0_69, %c0_70] : memref<6x1x128xf32, #tpu.memory_space<vmem>>, vector<1x1x128xf32>
    %229 = vector.shape_cast %228 : vector<1x1x128xf32> to vector<1x128xf32>
    %c5 = arith.constant 5 : index
    %230 = memref.load %arg0[%c5] : memref<8xf32, #tpu.memory_space<smem>>
    %cst_71 = arith.constant 0.000000e+00 : f32
    %231 = vector.broadcast %cst_71 : f32 to vector<32x128xf32>
    %232 = arith.maximumf %225, %231 : vector<32x128xf32>
    %233 = arith.truncf %232 : vector<32x128xf32> to vector<32x128xbf16>
    %cst_72 = arith.constant dense<0.000000e+00> : vector<32x128xf32>
    %234 = tpu.matmul %233, %227, %cst_72 {dimension_numbers = #tpu.dot_dimension_numbers<[1], [0], [0], [1], [0, 0, 1, 1], [], []>} : vector<32x128xbf16>, vector<128x128xbf16>, vector<32x128xf32> -> vector<32x128xf32>
    %235 = vector.broadcast %229 : vector<1x128xf32> to vector<32x128xf32>
    %236 = arith.addf %234, %235 : vector<32x128xf32>
    %237 = vector.extract_strided_slice %236 {offsets = [0, 0], sizes = [32, 1], strides = [1, 1]} : vector<32x128xf32> to vector<32x1xf32>
    %238 = arith.negf %237 : vector<32x1xf32>
    %239 = math.exp %238 : vector<32x1xf32>
    %cst_73 = arith.constant 1.000000e+00 : f32
    %240 = vector.broadcast %cst_73 : f32 to vector<32x1xf32>
    %241 = arith.addf %240, %239 : vector<32x1xf32>
    %242 = arith.divf %240, %241 : vector<32x1xf32>
    %243 = vector.broadcast %230 : f32 to vector<32x1xf32>
    %244 = arith.mulf %242, %243 : vector<32x1xf32>
    %cst_74 = arith.constant 1.100000e+00 : f32
    %245 = vector.broadcast %cst_74 : f32 to vector<32x1xf32>
    %246 = arith.addf %244, %245 : vector<32x1xf32>
    %247 = arith.mulf %236, %236 : vector<32x128xf32>
    %cst_75 = arith.constant dense<0.000000e+00> : vector<32xf32>
    %248 = vector.multi_reduction <add>, %247, %cst_75 [1] : vector<32x128xf32> to vector<32xf32>
    %249 = vector.shape_cast %248 : vector<32xf32> to vector<32x1xf32>
    %250 = arith.mulf %237, %237 : vector<32x1xf32>
    %251 = arith.subf %249, %250 : vector<32x1xf32>
    %252 = arith.mulf %246, %246 : vector<32x1xf32>
    %cst_76 = arith.constant 1.000000e+00 : f32
    %253 = vector.broadcast %cst_76 : f32 to vector<32x1xf32>
    %254 = arith.subf %252, %253 : vector<32x1xf32>
    %cst_77 = arith.constant 9.99999993E-9 : f32
    %255 = vector.broadcast %cst_77 : f32 to vector<32x1xf32>
    %256 = arith.maximumf %251, %255 : vector<32x1xf32>
    %257 = arith.divf %254, %256 : vector<32x1xf32>
    %258 = math.sqrt %257 : vector<32x1xf32>
    %259 = vector.broadcast %258 : vector<32x1xf32> to vector<32x128xf32>
    %260 = arith.mulf %236, %259 : vector<32x128xf32>
    %261 = vector.shape_cast %2 : vector<1x128xi1> to vector<1x128xi1>
    %262 = vector.broadcast %261 : vector<1x128xi1> to vector<32x128xi1>
    %263 = vector.shape_cast %246 : vector<32x1xf32> to vector<32x1xf32>
    %264 = vector.broadcast %263 : vector<32x1xf32> to vector<32x128xf32>
    %265 = arith.select %262, %264, %260 : vector<32x128xi1>, vector<32x128xf32>
    %266 = arith.truncf %5 : vector<32x32xf32> to vector<32x32xbf16>
    %267 = arith.truncf %265 : vector<32x128xf32> to vector<32x128xbf16>
    %cst_78 = arith.constant dense<0.000000e+00> : vector<32x128xf32>
    %268 = tpu.matmul %266, %267, %cst_78 {dimension_numbers = #tpu.dot_dimension_numbers<[1], [0], [0], [1], [0, 0, 1, 1], [], []>} : vector<32x32xbf16>, vector<32x128xbf16>, vector<32x128xf32> -> vector<32x128xf32>
    %269 = vector.extract_strided_slice %268 {offsets = [0, 0], sizes = [32, 1], strides = [1, 1]} : vector<32x128xf32> to vector<32x1xf32>
    %270 = arith.mulf %268, %268 : vector<32x128xf32>
    %cst_79 = arith.constant dense<0.000000e+00> : vector<32xf32>
    %271 = vector.multi_reduction <add>, %270, %cst_79 [1] : vector<32x128xf32> to vector<32xf32>
    %272 = vector.shape_cast %271 : vector<32xf32> to vector<32x1xf32>
    %cst_80 = arith.constant 2.000000e+00 : f32
    %273 = vector.broadcast %cst_80 : f32 to vector<32x1xf32>
    %274 = arith.mulf %273, %269 : vector<32x1xf32>
    %275 = arith.mulf %274, %269 : vector<32x1xf32>
    %276 = arith.subf %272, %275 : vector<32x1xf32>
    %277 = math.absf %276 : vector<32x1xf32>
    %cst_81 = arith.constant 9.99999993E-9 : f32
    %278 = vector.broadcast %cst_81 : f32 to vector<32x1xf32>
    %279 = arith.maximumf %277, %278 : vector<32x1xf32>
    %280 = math.rsqrt %279 : vector<32x1xf32>
    %281 = vector.broadcast %280 : vector<32x1xf32> to vector<32x128xf32>
    %282 = arith.mulf %268, %281 : vector<32x128xf32>
    %c1_i32 = arith.constant 1 : i32
    %283 = vector.broadcast %c1_i32 : i32 to vector<1x128xi32>
    %284 = arith.cmpi sge, %0, %283 : vector<1x128xi32>
    %c10_i32 = arith.constant 10 : i32
    %285 = vector.broadcast %c10_i32 : i32 to vector<1x128xi32>
    %286 = arith.cmpi sle, %0, %285 : vector<1x128xi32>
    %287 = arith.andi %284, %286 : vector<1x128xi1>
    %288 = vector.broadcast %4 : f32 to vector<32x128xf32>
    %289 = arith.mulf %282, %288 : vector<32x128xf32>
    %cst_82 = arith.constant -1.000000e+30 : f32
    %290 = vector.shape_cast %287 : vector<1x128xi1> to vector<1x128xi1>
    %291 = vector.broadcast %290 : vector<1x128xi1> to vector<32x128xi1>
    %292 = vector.broadcast %cst_82 : f32 to vector<32x128xf32>
    %293 = arith.select %291, %289, %292 : vector<32x128xi1>, vector<32x128xf32>
    %cst_83 = arith.constant dense<0xFF800000> : vector<32xf32>
    %294 = vector.multi_reduction <maximumf>, %293, %cst_83 [1] : vector<32x128xf32> to vector<32xf32>
    %295 = vector.shape_cast %294 : vector<32xf32> to vector<32x1xf32>
    %296 = vector.broadcast %295 : vector<32x1xf32> to vector<32x128xf32>
    %297 = arith.subf %293, %296 : vector<32x128xf32>
    %298 = math.exp %297 : vector<32x128xf32>
    %cst_84 = arith.constant dense<0.000000e+00> : vector<32xf32>
    %299 = vector.multi_reduction <add>, %298, %cst_84 [1] : vector<32x128xf32> to vector<32xf32>
    %300 = vector.shape_cast %299 : vector<32xf32> to vector<32x1xf32>
    %301 = vector.broadcast %300 : vector<32x1xf32> to vector<32x128xf32>
    %302 = arith.divf %298, %301 : vector<32x128xf32>
    %c64 = arith.constant 64 : index
    %c0_85 = arith.constant 0 : index
    %303 = vector.load %arg5[%c64, %c0_85] : memref<112x128xf32, #tpu.memory_space<vmem>>, vector<32x128xf32>
    tpu.vector_store %arg5[%c64, %c0_85], %302 {strides = array<i32>} : memref<112x128xf32, #tpu.memory_space<vmem>>, vector<32x128xf32>,
    %304 = tpu.iota {dimensions = array<i32: 0>} : vector<16x128xi32>
    %305 = tpu.iota {dimensions = array<i32: 1>} : vector<16x128xi32>
    %c1_i32_86 = arith.constant 1 : i32
    %306 = vector.broadcast %c1_i32_86 : i32 to vector<16x128xi32>
    %307 = arith.addi %304, %306 : vector<16x128xi32>
    %308 = arith.cmpi eq, %305, %307 : vector<16x128xi32>
    %309 = arith.extui %308 : vector<16x128xi1> to vector<16x128xi32>
    %310 = arith.sitofp %309 : vector<16x128xi32> to vector<16x128xf32>
    %cst_87 = arith.constant dense<0.000000e+00> : vector<16x32xf32>
    %311 = tpu.matmul %310, %302, %cst_87 {dimension_numbers = #tpu.dot_dimension_numbers<[1], [1], [0], [0], [0, 0, 1, 0], [], []>} : vector<16x128xf32>, vector<32x128xf32>, vector<16x32xf32> -> vector<16x32xf32>
    %cst_88 = arith.constant dense<0.000000e+00> : vector<16x128xf32>
    %312 = tpu.matmul %311, %186, %cst_88 {dimension_numbers = #tpu.dot_dimension_numbers<[1], [0], [0], [1], [0, 0, 1, 1], [], []>} : vector<16x32xf32>, vector<32x128xf32>, vector<16x128xf32> -> vector<16x128xf32>
    %313 = vector.extract_strided_slice %312 {offsets = [0, 0], sizes = [16, 1], strides = [1, 1]} : vector<16x128xf32> to vector<16x1xf32>
    %314 = arith.mulf %312, %312 : vector<16x128xf32>
    %cst_89 = arith.constant dense<0.000000e+00> : vector<16xf32>
    %315 = vector.multi_reduction <add>, %314, %cst_89 [1] : vector<16x128xf32> to vector<16xf32>
    %316 = vector.shape_cast %315 : vector<16xf32> to vector<16x1xf32>
    %cst_90 = arith.constant 2.000000e+00 : f32
    %317 = vector.broadcast %cst_90 : f32 to vector<16x1xf32>
    %318 = arith.mulf %317, %313 : vector<16x1xf32>
    %319 = arith.mulf %318, %313 : vector<16x1xf32>
    %320 = arith.subf %316, %319 : vector<16x1xf32>
    %321 = math.absf %320 : vector<16x1xf32>
    %cst_91 = arith.constant 9.99999993E-9 : f32
    %322 = vector.broadcast %cst_91 : f32 to vector<16x1xf32>
    %323 = arith.maximumf %321, %322 : vector<16x1xf32>
    %324 = math.rsqrt %323 : vector<16x1xf32>
    %325 = vector.broadcast %324 : vector<16x1xf32> to vector<16x128xf32>
    %326 = arith.mulf %312, %325 : vector<16x128xf32>
    %c32 = arith.constant 32 : index
    %c0_92 = arith.constant 0 : index
    %327 = vector.load %arg5[%c32, %c0_92] : memref<112x128xf32, #tpu.memory_space<vmem>>, vector<16x128xf32>
    tpu.vector_store %arg5[%c32, %c0_92], %326 {strides = array<i32>} : memref<112x128xf32, #tpu.memory_space<vmem>>, vector<16x128xf32>,
    %cst_93 = arith.constant dense<0.000000e+00> : vector<32x16xf32>
    %328 = tpu.matmul %5, %311, %cst_93 {dimension_numbers = #tpu.dot_dimension_numbers<[1], [1], [0], [0], [0, 0, 1, 0], [], []>} : vector<32x32xf32>, vector<16x32xf32>, vector<32x16xf32> -> vector<32x16xf32>
    %cst_94 = arith.constant dense<0.000000e+00> : vector<16x16xf32>
    %329 = tpu.matmul %311, %328, %cst_94 {dimension_numbers = #tpu.dot_dimension_numbers<[1], [0], [0], [1], [0, 0, 1, 1], [], []>} : vector<16x32xf32>, vector<32x16xf32>, vector<16x16xf32> -> vector<16x16xf32>
    %330 = tpu.iota {dimensions = array<i32: 0>} : vector<16x16xi32>
    %331 = tpu.iota {dimensions = array<i32: 1>} : vector<16x16xi32>
    %332 = arith.cmpi eq, %330, %331 : vector<16x16xi32>
    %cst_95 = arith.constant 0.000000e+00 : f32
    %333 = vector.broadcast %cst_95 : f32 to vector<16x16xf32>
    %334 = arith.select %332, %333, %329 : vector<16x16xi1>, vector<16x16xf32>
    %cst_96 = arith.constant 0.000000e+00 : f32
    %335 = vector.broadcast %cst_96 : f32 to vector<16x16xf32>
    %336 = arith.cmpf one, %334, %335 : vector<16x16xf32>
    %337 = arith.extui %336 : vector<16x16xi1> to vector<16x16xi32>
    %338 = arith.sitofp %337 : vector<16x16xi32> to vector<16x16xf32>
    %c4_97 = arith.constant 4 : index
    %c0_98 = arith.constant 0 : index
    %c0_99 = arith.constant 0 : index
    %339 = vector.load %arg3[%c4_97, %c0_98, %c0_99] : memref<6x128x128xbf16, #tpu.memory_space<vmem>>, vector<1x128x128xbf16>
    %340 = vector.shape_cast %339 : vector<1x128x128xbf16> to vector<128x128xbf16>
    %c4_100 = arith.constant 4 : index
    %c0_101 = arith.constant 0 : index
    %c0_102 = arith.constant 0 : index
    %341 = vector.load %arg4[%c4_100, %c0_101, %c0_102] : memref<6x1x128xf32, #tpu.memory_space<vmem>>, vector<1x1x128xf32>
    %342 = vector.shape_cast %341 : vector<1x1x128xf32> to vector<1x128xf32>
    %c6 = arith.constant 6 : index
    %343 = memref.load %arg0[%c6] : memref<8xf32, #tpu.memory_space<smem>>
    %344 = arith.truncf %326 : vector<16x128xf32> to vector<16x128xbf16>
    %cst_103 = arith.constant dense<0.000000e+00> : vector<16x128xf32>
    %345 = tpu.matmul %344, %340, %cst_103 {dimension_numbers = #tpu.dot_dimension_numbers<[1], [0], [0], [1], [0, 0, 1, 1], [], []>} : vector<16x128xbf16>, vector<128x128xbf16>, vector<16x128xf32> -> vector<16x128xf32>
    %346 = vector.broadcast %342 : vector<1x128xf32> to vector<16x128xf32>
    %347 = arith.addf %345, %346 : vector<16x128xf32>
    %348 = vector.extract_strided_slice %347 {offsets = [0, 0], sizes = [16, 1], strides = [1, 1]} : vector<16x128xf32> to vector<16x1xf32>
    %349 = arith.negf %348 : vector<16x1xf32>
    %350 = math.exp %349 : vector<16x1xf32>
    %cst_104 = arith.constant 1.000000e+00 : f32
    %351 = vector.broadcast %cst_104 : f32 to vector<16x1xf32>
    %352 = arith.addf %351, %350 : vector<16x1xf32>
    %353 = arith.divf %351, %352 : vector<16x1xf32>
    %354 = vector.broadcast %343 : f32 to vector<16x1xf32>
    %355 = arith.mulf %353, %354 : vector<16x1xf32>
    %cst_105 = arith.constant 1.100000e+00 : f32
    %356 = vector.broadcast %cst_105 : f32 to vector<16x1xf32>
    %357 = arith.addf %355, %356 : vector<16x1xf32>
    %358 = arith.mulf %347, %347 : vector<16x128xf32>
    %cst_106 = arith.constant dense<0.000000e+00> : vector<16xf32>
    %359 = vector.multi_reduction <add>, %358, %cst_106 [1] : vector<16x128xf32> to vector<16xf32>
    %360 = vector.shape_cast %359 : vector<16xf32> to vector<16x1xf32>
    %361 = arith.mulf %348, %348 : vector<16x1xf32>
    %362 = arith.subf %360, %361 : vector<16x1xf32>
    %363 = arith.mulf %357, %357 : vector<16x1xf32>
    %cst_107 = arith.constant 1.000000e+00 : f32
    %364 = vector.broadcast %cst_107 : f32 to vector<16x1xf32>
    %365 = arith.subf %363, %364 : vector<16x1xf32>
    %cst_108 = arith.constant 9.99999993E-9 : f32
    %366 = vector.broadcast %cst_108 : f32 to vector<16x1xf32>
    %367 = arith.maximumf %362, %366 : vector<16x1xf32>
    %368 = arith.divf %365, %367 : vector<16x1xf32>
    %369 = math.sqrt %368 : vector<16x1xf32>
    %370 = vector.broadcast %369 : vector<16x1xf32> to vector<16x128xf32>
    %371 = arith.mulf %347, %370 : vector<16x128xf32>
    %372 = vector.shape_cast %2 : vector<1x128xi1> to vector<1x128xi1>
    %373 = vector.broadcast %372 : vector<1x128xi1> to vector<16x128xi1>
    %374 = vector.shape_cast %357 : vector<16x1xf32> to vector<16x1xf32>
    %375 = vector.broadcast %374 : vector<16x1xf32> to vector<16x128xf32>
    %376 = arith.select %373, %375, %371 : vector<16x128xi1>, vector<16x128xf32>
    %c5_109 = arith.constant 5 : index
    %c0_110 = arith.constant 0 : index
    %c0_111 = arith.constant 0 : index
    %377 = vector.load %arg3[%c5_109, %c0_110, %c0_111] : memref<6x128x128xbf16, #tpu.memory_space<vmem>>, vector<1x128x128xbf16>
    %378 = vector.shape_cast %377 : vector<1x128x128xbf16> to vector<128x128xbf16>
    %c5_112 = arith.constant 5 : index
    %c0_113 = arith.constant 0 : index
    %c0_114 = arith.constant 0 : index
    %379 = vector.load %arg4[%c5_112, %c0_113, %c0_114] : memref<6x1x128xf32, #tpu.memory_space<vmem>>, vector<1x1x128xf32>
    %380 = vector.shape_cast %379 : vector<1x1x128xf32> to vector<1x128xf32>
    %c7 = arith.constant 7 : index
    %381 = memref.load %arg0[%c7] : memref<8xf32, #tpu.memory_space<smem>>
    %cst_115 = arith.constant 0.000000e+00 : f32
    %382 = vector.broadcast %cst_115 : f32 to vector<16x128xf32>
    %383 = arith.maximumf %376, %382 : vector<16x128xf32>
    %384 = arith.truncf %383 : vector<16x128xf32> to vector<16x128xbf16>
    %cst_116 = arith.constant dense<0.000000e+00> : vector<16x128xf32>
    %385 = tpu.matmul %384, %378, %cst_116 {dimension_numbers = #tpu.dot_dimension_numbers<[1], [0], [0], [1], [0, 0, 1, 1], [], []>} : vector<16x128xbf16>, vector<128x128xbf16>, vector<16x128xf32> -> vector<16x128xf32>
    %386 = vector.broadcast %380 : vector<1x128xf32> to vector<16x128xf32>
    %387 = arith.addf %385, %386 : vector<16x128xf32>
    %388 = vector.extract_strided_slice %387 {offsets = [0, 0], sizes = [16, 1], strides = [1, 1]} : vector<16x128xf32> to vector<16x1xf32>
    %389 = arith.negf %388 : vector<16x1xf32>
    %390 = math.exp %389 : vector<16x1xf32>
    %cst_117 = arith.constant 1.000000e+00 : f32
    %391 = vector.broadcast %cst_117 : f32 to vector<16x1xf32>
    %392 = arith.addf %391, %390 : vector<16x1xf32>
    %393 = arith.divf %391, %392 : vector<16x1xf32>
    %394 = vector.broadcast %381 : f32 to vector<16x1xf32>
    %395 = arith.mulf %393, %394 : vector<16x1xf32>
    %cst_118 = arith.constant 1.100000e+00 : f32
    %396 = vector.broadcast %cst_118 : f32 to vector<16x1xf32>
    %397 = arith.addf %395, %396 : vector<16x1xf32>
    %398 = arith.mulf %387, %387 : vector<16x128xf32>
    %cst_119 = arith.constant dense<0.000000e+00> : vector<16xf32>
    %399 = vector.multi_reduction <add>, %398, %cst_119 [1] : vector<16x128xf32> to vector<16xf32>
    %400 = vector.shape_cast %399 : vector<16xf32> to vector<16x1xf32>
    %401 = arith.mulf %388, %388 : vector<16x1xf32>
    %402 = arith.subf %400, %401 : vector<16x1xf32>
    %403 = arith.mulf %397, %397 : vector<16x1xf32>
    %cst_120 = arith.constant 1.000000e+00 : f32
    %404 = vector.broadcast %cst_120 : f32 to vector<16x1xf32>
    %405 = arith.subf %403, %404 : vector<16x1xf32>
    %cst_121 = arith.constant 9.99999993E-9 : f32
    %406 = vector.broadcast %cst_121 : f32 to vector<16x1xf32>
    %407 = arith.maximumf %402, %406 : vector<16x1xf32>
    %408 = arith.divf %405, %407 : vector<16x1xf32>
    %409 = math.sqrt %408 : vector<16x1xf32>
    %410 = vector.broadcast %409 : vector<16x1xf32> to vector<16x128xf32>
    %411 = arith.mulf %387, %410 : vector<16x128xf32>
    %412 = vector.shape_cast %2 : vector<1x128xi1> to vector<1x128xi1>
    %413 = vector.broadcast %412 : vector<1x128xi1> to vector<16x128xi1>
    %414 = vector.shape_cast %397 : vector<16x1xf32> to vector<16x1xf32>
    %415 = vector.broadcast %414 : vector<16x1xf32> to vector<16x128xf32>
    %416 = arith.select %413, %415, %411 : vector<16x128xi1>, vector<16x128xf32>
    %417 = arith.truncf %338 : vector<16x16xf32> to vector<16x16xbf16>
    %418 = arith.truncf %416 : vector<16x128xf32> to vector<16x128xbf16>
    %cst_122 = arith.constant dense<0.000000e+00> : vector<16x128xf32>
    %419 = tpu.matmul %417, %418, %cst_122 {dimension_numbers = #tpu.dot_dimension_numbers<[1], [0], [0], [1], [0, 0, 1, 1], [], []>} : vector<16x16xbf16>, vector<16x128xbf16>, vector<16x128xf32> -> vector<16x128xf32>
    %420 = vector.extract_strided_slice %419 {offsets = [0, 0], sizes = [16, 1], strides = [1, 1]} : vector<16x128xf32> to vector<16x1xf32>
    %421 = arith.mulf %419, %419 : vector<16x128xf32>
    %cst_123 = arith.constant dense<0.000000e+00> : vector<16xf32>
    %422 = vector.multi_reduction <add>, %421, %cst_123 [1] : vector<16x128xf32> to vector<16xf32>
    %423 = vector.shape_cast %422 : vector<16xf32> to vector<16x1xf32>
    %cst_124 = arith.constant 2.000000e+00 : f32
    %424 = vector.broadcast %cst_124 : f32 to vector<16x1xf32>
    %425 = arith.mulf %424, %420 : vector<16x1xf32>
    %426 = arith.mulf %425, %420 : vector<16x1xf32>
    %427 = arith.subf %423, %426 : vector<16x1xf32>
    %428 = math.absf %427 : vector<16x1xf32>
    %cst_125 = arith.constant 9.99999993E-9 : f32
    %429 = vector.broadcast %cst_125 : f32 to vector<16x1xf32>
    %430 = arith.maximumf %428, %429 : vector<16x1xf32>
    %431 = math.rsqrt %430 : vector<16x1xf32>
    %432 = vector.broadcast %431 : vector<16x1xf32> to vector<16x128xf32>
    %433 = arith.mulf %419, %432 : vector<16x128xf32>
    %c1_i32_126 = arith.constant 1 : i32
    %434 = vector.broadcast %c1_i32_126 : i32 to vector<1x128xi32>
    %435 = arith.cmpi sge, %0, %434 : vector<1x128xi32>
    %c3_i32 = arith.constant 3 : i32
    %436 = vector.broadcast %c3_i32 : i32 to vector<1x128xi32>
    %437 = arith.cmpi sle, %0, %436 : vector<1x128xi32>
    %438 = arith.andi %435, %437 : vector<1x128xi1>
    %439 = vector.broadcast %4 : f32 to vector<16x128xf32>
    %440 = arith.mulf %433, %439 : vector<16x128xf32>
    %cst_127 = arith.constant -1.000000e+30 : f32
    %441 = vector.shape_cast %438 : vector<1x128xi1> to vector<1x128xi1>
    %442 = vector.broadcast %441 : vector<1x128xi1> to vector<16x128xi1>
    %443 = vector.broadcast %cst_127 : f32 to vector<16x128xf32>
    %444 = arith.select %442, %440, %443 : vector<16x128xi1>, vector<16x128xf32>
    %cst_128 = arith.constant dense<0xFF800000> : vector<16xf32>
    %445 = vector.multi_reduction <maximumf>, %444, %cst_128 [1] : vector<16x128xf32> to vector<16xf32>
    %446 = vector.shape_cast %445 : vector<16xf32> to vector<16x1xf32>
    %447 = vector.broadcast %446 : vector<16x1xf32> to vector<16x128xf32>
    %448 = arith.subf %444, %447 : vector<16x128xf32>
    %449 = math.exp %448 : vector<16x128xf32>
    %cst_129 = arith.constant dense<0.000000e+00> : vector<16xf32>
    %450 = vector.multi_reduction <add>, %449, %cst_129 [1] : vector<16x128xf32> to vector<16xf32>
    %451 = vector.shape_cast %450 : vector<16xf32> to vector<16x1xf32>
    %452 = vector.broadcast %451 : vector<16x1xf32> to vector<16x128xf32>
    %453 = arith.divf %449, %452 : vector<16x128xf32>
    %c96 = arith.constant 96 : index
    %c0_130 = arith.constant 0 : index
    %454 = vector.load %arg5[%c96, %c0_130] : memref<112x128xf32, #tpu.memory_space<vmem>>, vector<16x128xf32>
    tpu.vector_store %arg5[%c96, %c0_130], %453 {strides = array<i32>} : memref<112x128xf32, #tpu.memory_space<vmem>>, vector<16x128xf32>,
    %455 = tpu.iota {dimensions = array<i32: 0>} : vector<8x128xi32>
    %456 = tpu.iota {dimensions = array<i32: 1>} : vector<8x128xi32>
    %c1_i32_131 = arith.constant 1 : i32
    %457 = vector.broadcast %c1_i32_131 : i32 to vector<8x128xi32>
    %458 = arith.addi %455, %457 : vector<8x128xi32>
    %459 = arith.cmpi eq, %456, %458 : vector<8x128xi32>
    %460 = arith.extui %459 : vector<8x128xi1> to vector<8x128xi32>
    %461 = arith.sitofp %460 : vector<8x128xi32> to vector<8x128xf32>
    %cst_132 = arith.constant dense<0.000000e+00> : vector<8x16xf32>
    %462 = tpu.matmul %461, %453, %cst_132 {dimension_numbers = #tpu.dot_dimension_numbers<[1], [1], [0], [0], [0, 0, 1, 0], [], []>} : vector<8x128xf32>, vector<16x128xf32>, vector<8x16xf32> -> vector<8x16xf32>
    %463 = tpu.iota {dimensions = array<i32: 1>} : vector<1x16xi32>
    %c10_i32_133 = arith.constant 10 : i32
    %464 = vector.broadcast %c10_i32_133 : i32 to vector<1x16xi32>
    %465 = arith.cmpi slt, %463, %464 : vector<1x16xi32>
    %cst_134 = arith.constant 0.000000e+00 : f32
    %466 = vector.shape_cast %465 : vector<1x16xi1> to vector<1x16xi1>
    %467 = vector.broadcast %466 : vector<1x16xi1> to vector<8x16xi1>
    %468 = vector.broadcast %cst_134 : f32 to vector<8x16xf32>
    %469 = arith.select %467, %462, %468 : vector<8x16xi1>, vector<8x16xf32>
    %cst_135 = arith.constant dense<0.000000e+00> : vector<8x128xf32>
    %470 = tpu.matmul %469, %326, %cst_135 {dimension_numbers = #tpu.dot_dimension_numbers<[1], [0], [0], [1], [0, 0, 1, 1], [], []>} : vector<8x16xf32>, vector<16x128xf32>, vector<8x128xf32> -> vector<8x128xf32>
    %471 = vector.extract_strided_slice %470 {offsets = [0, 0], sizes = [8, 1], strides = [1, 1]} : vector<8x128xf32> to vector<8x1xf32>
    %472 = arith.mulf %470, %470 : vector<8x128xf32>
    %cst_136 = arith.constant dense<0.000000e+00> : vector<8xf32>
    %473 = vector.multi_reduction <add>, %472, %cst_136 [1] : vector<8x128xf32> to vector<8xf32>
    %474 = vector.shape_cast %473 : vector<8xf32> to vector<8x1xf32>
    %cst_137 = arith.constant 2.000000e+00 : f32
    %475 = vector.broadcast %cst_137 : f32 to vector<8x1xf32>
    %476 = arith.mulf %475, %471 : vector<8x1xf32>
    %477 = arith.mulf %476, %471 : vector<8x1xf32>
    %478 = arith.subf %474, %477 : vector<8x1xf32>
    %479 = math.absf %478 : vector<8x1xf32>
    %cst_138 = arith.constant 9.99999993E-9 : f32
    %480 = vector.broadcast %cst_138 : f32 to vector<8x1xf32>
    %481 = arith.maximumf %479, %480 : vector<8x1xf32>
    %482 = math.rsqrt %481 : vector<8x1xf32>
    %483 = vector.broadcast %482 : vector<8x1xf32> to vector<8x128xf32>
    %484 = arith.mulf %470, %483 : vector<8x128xf32>
    %c48 = arith.constant 48 : index
    %c0_139 = arith.constant 0 : index
    %485 = vector.load %arg5[%c48, %c0_139] : memref<112x128xf32, #tpu.memory_space<vmem>>, vector<8x128xf32>
    tpu.vector_store %arg5[%c48, %c0_139], %484 {strides = array<i32>} : memref<112x128xf32, #tpu.memory_space<vmem>>, vector<8x128xf32>,
    %cst_140 = arith.constant dense<0.000000e+00> : vector<128xf32>
    %486 = vector.multi_reduction <add>, %484, %cst_140 [0] : vector<8x128xf32> to vector<128xf32>
    %487 = vector.shape_cast %486 : vector<128xf32> to vector<1x128xf32>
    %488 = vector.extract_strided_slice %487 {offsets = [0, 0], sizes = [1, 1], strides = [1, 1]} : vector<1x128xf32> to vector<1x1xf32>
    %489 = arith.mulf %487, %487 : vector<1x128xf32>
    %cst_141 = arith.constant dense<0.000000e+00> : vector<1xf32>
    %490 = vector.multi_reduction <add>, %489, %cst_141 [1] : vector<1x128xf32> to vector<1xf32>
    %491 = vector.shape_cast %490 : vector<1xf32> to vector<1x1xf32>
    %cst_142 = arith.constant 2.000000e+00 : f32
    %492 = vector.broadcast %cst_142 : f32 to vector<1x1xf32>
    %493 = arith.mulf %492, %488 : vector<1x1xf32>
    %494 = arith.mulf %493, %488 : vector<1x1xf32>
    %495 = arith.subf %491, %494 : vector<1x1xf32>
    %496 = math.absf %495 : vector<1x1xf32>
    %cst_143 = arith.constant 9.99999993E-9 : f32
    %497 = vector.broadcast %cst_143 : f32 to vector<1x1xf32>
    %498 = arith.maximumf %496, %497 : vector<1x1xf32>
    %499 = math.rsqrt %498 : vector<1x1xf32>
    %500 = vector.broadcast %499 : vector<1x1xf32> to vector<1x128xf32>
    %501 = arith.mulf %487, %500 : vector<1x128xf32>
    %502 = vector.shape_cast %501 : vector<1x128xf32> to vector<1x128xf32>
    %503 = vector.broadcast %502 : vector<1x128xf32> to vector<8x128xf32>
    %c56 = arith.constant 56 : index
    %c0_144 = arith.constant 0 : index
    %504 = vector.load %arg5[%c56, %c0_144] : memref<112x128xf32, #tpu.memory_space<vmem>>, vector<8x128xf32>
    tpu.vector_store %arg5[%c56, %c0_144], %503 {strides = array<i32>} : memref<112x128xf32, #tpu.memory_space<vmem>>, vector<8x128xf32>,
    return
  }
}

</mosaic_0001>

<llo_original>
// kernel: tpu_custom_call.1
$region0: #{tpu_custom_call.1}
  #allocation0 [shape = 'u32[]', space=smem, size = 0x4, offset = 0x4, fixed_abs, tag = 'smem constant byte address 0x4 - core index']
  #allocation1 [shape = 'u32[144,128]{1,0:T(1,128)}', space=vmem, size = 0x12000, scoped, tag = 'internal scratch']
  %s0 = inlined_call_operand.hbm [shape: f32[8], index: 0, kind: input, shape index: {}]
  %s1 = inlined_call_operand.hbm [shape: f32[32,128], index: 1, kind: input, shape index: {}]
  %s2 = inlined_call_operand.hbm [shape: f32[32,32], index: 2, kind: input, shape index: {}]
  %s3 = inlined_call_operand.hbm [shape: bf16[6,128,128], index: 3, kind: input, shape index: {}]
  %s4 = inlined_call_operand.vmem [shape: f32[6,1,128], index: 4, kind: input, shape index: {}]
  %s5 = inlined_call_operand.hbm [shape: f32[112,128], index: 5, kind: output, shape index: {}]
  %s6 = sld [smem:[#allocation0]]
  $region46: #{tpu_custom_call.1} parent=0
    _
  %s8 = ssub.s32 1, %s6
  %s9 = scalar_select 0, %s8, %s6
  $region1: #{tpu_custom_call.1} parent=0
    #allocation2 [shape = 'u8[512]{0}', space=smem, size = 0x200, scoped, tag = 'input window, operand 0, single buffered']
    #allocation3 [shape = 's32[1]{0}', space=sflag, size = 0x4, scoped, tag = 'scoped memory for tpu_custom_call.1']
    #allocation4 [shape = 's32[1]{0}', space=sflag, size = 0x4, scoped, tag = 'scoped memory for tpu_custom_call.1']
    #allocation5 [shape = 's32[1]{0}', space=sflag, size = 0x4, scoped, tag = 'scoped memory for tpu_custom_call.1']
    #allocation6 [shape = 'u8[16384]{0}', space=vmem, size = 0x4000, scoped, tag = 'input window, operand 1, single buffered']
    #allocation7 [shape = 'u8[16384]{0}', space=vmem, size = 0x4000, scoped, tag = 'input window, operand 2, single buffered']
    #allocation8 [shape = 's32[1]{0}', space=sflag, size = 0x4, scoped, tag = 'scoped memory for tpu_custom_call.1']
    #allocation9 [shape = 'u8[196608]{0}', space=vmem, size = 0x30000, scoped, tag = 'input window, operand 3, single buffered']
    #allocation10 [shape = 'u8[57344]{0}', space=vmem, size = 0xe000, scoped, tag = 'output window, operand 0, single buffered']
    %10 = vsyncpa [#allocation5], 0
    %11 = vsyncpa [#allocation3], 0
    %12 = vsyncpa [#allocation8], 0
    %13 = vsyncpa [#allocation4], 0
    // Predicated region
    $region2: #{tpu_custom_call.1} parent=1 // pred_check
      _
    $region3: #{tpu_custom_call.1} parent=1 // pred_check_branch
      %15 = sbr.rel (0) target = $region5
    $region4: #{tpu_custom_call.1} parent=1 // pred_region
      %s17 = ssub.s32 16, 16
      %18 = vsyncadd [#allocation5], %s17
      %21 = dma.hbm_to_smem %s0, 16, [#allocation2], [#allocation5]
    $region5: #{tpu_custom_call.1} parent=1 // pred_fallthru
      _
    // Predicated region
    $region6: #{tpu_custom_call.1} parent=1 // pred_check
      _
    $region7: #{tpu_custom_call.1} parent=1 // pred_check_branch
      %23 = sbr.rel (0) target = $region9
    $region8: #{tpu_custom_call.1} parent=1 // pred_region
      %s25 = ssub.s32 512, 512
      %26 = vsyncadd [#allocation3], %s25
      %s27 = sshll.u32 [#allocation6], 4
      %s28 = int_to_ptr.vmem [resolvable:$true] %s27
      %33 = dma.hbm_to_vmem [thread:$0]  %s1, 512, %s28, [#allocation3], 128, 128, 8
    $region9: #{tpu_custom_call.1} parent=1 // pred_fallthru
      _
    // Predicated region
    $region10: #{tpu_custom_call.1} parent=1 // pred_check
      _
    $region11: #{tpu_custom_call.1} parent=1 // pred_check_branch
      %35 = sbr.rel (0) target = $region13
    $region12: #{tpu_custom_call.1} parent=1 // pred_region
      %s37 = ssub.s32 512, 512
      %38 = vsyncadd [#allocation8], %s37
      %s39 = sshll.u32 [#allocation7], 4
      %s40 = int_to_ptr.vmem [resolvable:$true] %s39
      %45 = dma.hbm_to_vmem [thread:$0]  %s2, 512, %s40, [#allocation8], 128, 128, 8
    $region13: #{tpu_custom_call.1} parent=1 // pred_fallthru
      _
    // Predicated region
    $region14: #{tpu_custom_call.1} parent=1 // pred_check
      _
    $region15: #{tpu_custom_call.1} parent=1 // pred_check_branch
      %47 = sbr.rel (0) target = $region17
    $region16: #{tpu_custom_call.1} parent=1 // pred_region
      %s49 = ssub.s32 6144, 6144
      %50 = vsyncadd [#allocation8], %s49
      %s51 = sshll.u32 [#allocation9], 4
      %s52 = int_to_ptr.vmem [resolvable:$true] %s51
      %57 = dma.hbm_to_vmem [thread:$0]  %s3, 6144, %s52, [#allocation8], 64, 64, 4
    $region17: #{tpu_custom_call.1} parent=1 // pred_fallthru
      _
    // Predicated region
    $region18: #{tpu_custom_call.1} parent=1 // pred_check
      _
    $region19: #{tpu_custom_call.1} parent=1 // pred_check_branch
      %59 = sbr.rel (0) target = $region21
    $region20: #{tpu_custom_call.1} parent=1 // pred_region
      _
    $region21: #{tpu_custom_call.1} parent=1 // pred_fallthru
      _
    // Predicated region
    $region22: #{tpu_custom_call.1} parent=1 // pred_check
      _
    $region23: #{tpu_custom_call.1} parent=1 // pred_check_branch
      %61 = sbr.rel (0) target = $region25
    $region24: #{tpu_custom_call.1} parent=1 // pred_region
      %62 = dma.done [#allocation5], 16
    $region25: #{tpu_custom_call.1} parent=1 // pred_fallthru
      _
    // Predicated region
    $region26: #{tpu_custom_call.1} parent=1 // pred_check
      _
    $region27: #{tpu_custom_call.1} parent=1 // pred_check_branch
      %64 = sbr.rel (0) target = $region29
    $region28: #{tpu_custom_call.1} parent=1 // pred_region
      %65 = dma.done [#allocation3], 512
    $region29: #{tpu_custom_call.1} parent=1 // pred_fallthru
      _
    // Predicated region
    $region30: #{tpu_custom_call.1} parent=1 // pred_check
      _
    $region31: #{tpu_custom_call.1} parent=1 // pred_check_branch
      %67 = sbr.rel (0) target = $region33
    $region32: #{tpu_custom_call.1} parent=1 // pred_region
      %68 = dma.done [#allocation8], 512
    $region33: #{tpu_custom_call.1} parent=1 // pred_fallthru
      _
    // Predicated region
    $region34: #{tpu_custom_call.1} parent=1 // pred_check
      _
    $region35: #{tpu_custom_call.1} parent=1 // pred_check_branch
      %70 = sbr.rel (0) target = $region37
    $region36: #{tpu_custom_call.1} parent=1 // pred_region
      %71 = dma.done [#allocation8], 6144
    $region37: #{tpu_custom_call.1} parent=1 // pred_fallthru
      _
    %72 = sfence
    %v74 = vlaneseq
    %v75 = vand.u32 %v74, 127
    %vm76 = vcmp.eq.s32.totalorder %v75, 0
    %s77 = sld [smem:[#allocation2]]
    %s78 = sld [smem:[#allocation2 + $0x1]]
    %v79 = vld [vmem:[#allocation7] sm:$0xff]
    %v80 = vld [vmem:[#allocation7 + $0x8] sm:$0xff]
    %v81 = vld [vmem:[#allocation7 + $0x10] sm:$0xff]
    %v82 = vld [vmem:[#allocation7 + $0x18] sm:$0xff]
    %v83 = vld [vmem:[#allocation6] sm:$0xff]
    %v84 = vld [vmem:[#allocation6 + $0x8] sm:$0xff]
    %v85 = vld [vmem:[#allocation6 + $0x10] sm:$0xff]
    %v86 = vld [vmem:[#allocation6 + $0x18] sm:$0xff]
    %v87 = vmul.f32 %v83, %v83
    %v88 = vmul.f32 %v84, %v84
    %v89 = vmul.f32 %v85, %v85
    %v90 = vmul.f32 %v86, %v86
    %91 = vadd.xlane.f32.xlu0 %v87
    %v92 = vpop.xlane.xlu0 %91
    %93 = vadd.xlane.f32.xlu0 %v88
    %v94 = vpop.xlane.xlu0 %93
    %95 = vadd.xlane.f32.xlu0 %v89
    %v96 = vpop.xlane.xlu0 %95
    %97 = vadd.xlane.f32.xlu0 %v90
    %v98 = vpop.xlane.xlu0 %97
    %v99 = vrsqrt.pop %v92
    %v100 = vmul.f32 %v92, %v99
    %vm101 = vcmp.eq.f32.partialorder %v92, inf
    %v102 = vsel %vm101, %v92, %v100
    %vm103 = vcmp.eq.f32.partialorder %v92, 0.0
    %v104 = vand.u32 %v92, 2147483648
    %v105 = vsel %vm103, %v104, %v102
    %v106 = vrsqrt.pop %v94
    %v107 = vmul.f32 %v94, %v106
    %vm108 = vcmp.eq.f32.partialorder %v94, inf
    %v109 = vsel %vm108, %v94, %v107
    %vm110 = vcmp.eq.f32.partialorder %v94, 0.0
    %v111 = vand.u32 %v94, 2147483648
    %v112 = vsel %vm110, %v111, %v109
    %v113 = vrsqrt.pop %v96
    %v114 = vmul.f32 %v96, %v113
    %vm115 = vcmp.eq.f32.partialorder %v96, inf
    %v116 = vsel %vm115, %v96, %v114
    %vm117 = vcmp.eq.f32.partialorder %v96, 0.0
    %v118 = vand.u32 %v96, 2147483648
    %v119 = vsel %vm117, %v118, %v116
    %v120 = vrsqrt.pop %v98
    %v121 = vmul.f32 %v98, %v120
    %vm122 = vcmp.eq.f32.partialorder %v98, inf
    %v123 = vsel %vm122, %v98, %v121
    %vm124 = vcmp.eq.f32.partialorder %v98, 0.0
    %v125 = vand.u32 %v98, 2147483648
    %v126 = vsel %vm124, %v125, %v123
    %v127 = vmax.f32 %v105, 1e-08
    %v128 = vmax.f32 %v112, 1e-08
    %v129 = vmax.f32 %v119, 1e-08
    %v130 = vmax.f32 %v126, 1e-08
    %v131 = vmul.f32 %v127, 1.442695
    %v132 = vpow.pop %v131
    %v133 = vmul.f32 %v128, 1.442695
    %v134 = vpow.pop %v133
    %v135 = vmul.f32 %v129, 1.442695
    %v136 = vpow.pop %v135
    %v137 = vmul.f32 %v130, 1.442695
    %v138 = vpow.pop %v137
    %v139 = vsub.f32 0.0, %v127
    %v140 = vsub.f32 0.0, %v128
    %v141 = vsub.f32 0.0, %v129
    %v142 = vsub.f32 0.0, %v130
    %v143 = vmul.f32 %v139, 1.442695
    %v144 = vpow.pop %v143
    %v145 = vmul.f32 %v140, 1.442695
    %v146 = vpow.pop %v145
    %v147 = vmul.f32 %v141, 1.442695
    %v148 = vpow.pop %v147
    %v149 = vmul.f32 %v142, 1.442695
    %v150 = vpow.pop %v149
    %v151 = vsub.f32 %v132, %v144
    %v152 = vsub.f32 %v134, %v146
    %v153 = vsub.f32 %v136, %v148
    %v154 = vsub.f32 %v138, %v150
    %v155 = vmul.f32 %v151, 0.5
    %v156 = vmul.f32 %v152, 0.5
    %v157 = vmul.f32 %v153, 0.5
    %v158 = vmul.f32 %v154, 0.5
    %v159 = vrcp.pop %v127
    %v160 = vmul.f32 %v155, %v159
    %v161 = vrcp.pop %v128
    %v162 = vmul.f32 %v156, %v161
    %v163 = vrcp.pop %v129
    %v164 = vmul.f32 %v157, %v163
    %v165 = vrcp.pop %v130
    %v166 = vmul.f32 %v158, %v165
    %v167 = vmul.f32 %v83, %v160
    %v168 = vmul.f32 %v84, %v162
    %v169 = vmul.f32 %v85, %v164
    %v170 = vmul.f32 %v86, %v166
    %v171 = vmul.f32 %v167, %v167
    %v172 = vmul.f32 %v168, %v168
    %v173 = vmul.f32 %v169, %v169
    %v174 = vmul.f32 %v170, %v170
    %175 = vadd.xlane.f32.xlu0 %v171
    %v176 = vpop.xlane.xlu0 %175
    %177 = vadd.xlane.f32.xlu0 %v172
    %v178 = vpop.xlane.xlu0 %177
    %179 = vadd.xlane.f32.xlu0 %v173
    %v180 = vpop.xlane.xlu0 %179
    %181 = vadd.xlane.f32.xlu0 %v174
    %v182 = vpop.xlane.xlu0 %181
    %v183 = vadd.f32 %v176, 1.0
    %v184 = vadd.f32 %v178, 1.0
    %v185 = vadd.f32 %v180, 1.0
    %v186 = vadd.f32 %v182, 1.0
    %v187 = vrsqrt.pop %v183
    %v188 = vmul.f32 %v183, %v187
    %vm189 = vcmp.eq.f32.partialorder %v183, inf
    %v190 = vsel %vm189, %v183, %v188
    %vm191 = vcmp.eq.f32.partialorder %v183, 0.0
    %v192 = vand.u32 %v183, 2147483648
    %v193 = vsel %vm191, %v192, %v190
    %v194 = vrsqrt.pop %v184
    %v195 = vmul.f32 %v184, %v194
    %vm196 = vcmp.eq.f32.partialorder %v184, inf
    %v197 = vsel %vm196, %v184, %v195
    %vm198 = vcmp.eq.f32.partialorder %v184, 0.0
    %v199 = vand.u32 %v184, 2147483648
    %v200 = vsel %vm198, %v199, %v197
    %v201 = vrsqrt.pop %v185
    %v202 = vmul.f32 %v185, %v201
    %vm203 = vcmp.eq.f32.partialorder %v185, inf
    %v204 = vsel %vm203, %v185, %v202
    %vm205 = vcmp.eq.f32.partialorder %v185, 0.0
    %v206 = vand.u32 %v185, 2147483648
    %v207 = vsel %vm205, %v206, %v204
    %v208 = vrsqrt.pop %v186
    %v209 = vmul.f32 %v186, %v208
    %vm210 = vcmp.eq.f32.partialorder %v186, inf
    %v211 = vsel %vm210, %v186, %v209
    %vm212 = vcmp.eq.f32.partialorder %v186, 0.0
    %v213 = vand.u32 %v186, 2147483648
    %v214 = vsel %vm212, %v213, %v211
    %v215 = vsel %vm76, 1, 0
    %vm216 = vcmp.eq.s32.totalorder %v215, 1
    %v217 = vsel %vm216, %v193, %v167
    %v218 = vsel %vm216, %v200, %v168
    %v219 = vsel %vm216, %v207, %v169
    %v220 = vsel %vm216, %v214, %v170
    %v221 = vld [vmem:[#allocation9] sm:$0xf]
    %v222 = vld [vmem:[#allocation9 + $0x4] sm:$0xf]
    %v223 = vld [vmem:[#allocation9 + $0x8] sm:$0xf]
    %v224 = vld [vmem:[#allocation9 + $0xc] sm:$0xf]
    %v225 = vld [vmem:[#allocation9 + $0x10] sm:$0xf]
    %v226 = vld [vmem:[#allocation9 + $0x14] sm:$0xf]
    %v227 = vld [vmem:[#allocation9 + $0x18] sm:$0xf]
    %v228 = vld [vmem:[#allocation9 + $0x1c] sm:$0xf]
    %v229 = vld [vmem:[#allocation9 + $0x20] sm:$0xf]
    %v230 = vld [vmem:[#allocation9 + $0x24] sm:$0xf]
    %v231 = vld [vmem:[#allocation9 + $0x28] sm:$0xf]
    %v232 = vld [vmem:[#allocation9 + $0x2c] sm:$0xf]
    %v233 = vld [vmem:[#allocation9 + $0x30] sm:$0xf]
    %v234 = vld [vmem:[#allocation9 + $0x34] sm:$0xf]
    %v235 = vld [vmem:[#allocation9 + $0x38] sm:$0xf]
    %v236 = vld [vmem:[#allocation9 + $0x3c] sm:$0xf]
    %v237 = vld [vmem:[%s4] sm:$0x1]
    %s238 = sld [smem:[#allocation2 + $0x2]]
    %v239 = vpack.c.bf16 %v218, %v217
    %v240 = vpack.c.bf16 %v220, %v219
    %v242 = vlaneseq
    %v243 = vshrl.u32 %v242, 7
    %v244 = vsub.s32 0, %v243
    %v245 = vrot.slane %v237, %v244
    %v263 = vunpack.c.l.b16 %v221
    %v264 = vunpack.c.l.b16 %v222
    %v265 = vunpack.c.l.b16 %v223
    %v266 = vunpack.c.l.b16 %v224
    %v267 = vunpack.c.l.b16 %v225
    %v268 = vunpack.c.l.b16 %v226
    %v269 = vunpack.c.l.b16 %v227
    %v270 = vunpack.c.l.b16 %v228
    %v271 = vunpack.c.l.b16 %v229
    %v272 = vunpack.c.l.b16 %v230
    %v273 = vunpack.c.l.b16 %v231
    %v274 = vunpack.c.l.b16 %v232
    %v275 = vunpack.c.l.b16 %v233
    %v276 = vunpack.c.l.b16 %v234
    %v277 = vunpack.c.l.b16 %v235
    %v278 = vunpack.c.l.b16 %v236
    %v279 = vpack.c.b16 %v264, %v263
    %v280 = vpack.c.b16 %v266, %v265
    %v281 = vpack.c.b16 %v268, %v267
    %v282 = vpack.c.b16 %v270, %v269
    %v283 = vpack.c.b16 %v272, %v271
    %v284 = vpack.c.b16 %v274, %v273
    %v285 = vpack.c.b16 %v276, %v275
    %v286 = vpack.c.b16 %v278, %v277
    %295 = vmatprep.subr.bf16.mxu0 0
    %296 = vmatpush1.bf16.msra.mxu0 %v279
    %297 = vmatprep.subr.bf16.mxu0 0
    %298 = vmatpush1.bf16.msra.mxu0 %v280
    %299 = vmatprep.subr.bf16.mxu0 0
    %300 = vmatpush1.bf16.msra.mxu0 %v281
    %301 = vmatprep.subr.bf16.mxu0 0
    %302 = vmatpush1.bf16.msra.mxu0 %v282
    %303 = vmatprep.subr.bf16.mxu0 0
    %304 = vmatpush1.bf16.msra.mxu0 %v283
    %305 = vmatprep.subr.bf16.mxu0 0
    %306 = vmatpush1.bf16.msra.mxu0 %v284
    %307 = vmatprep.subr.bf16.mxu0 0
    %308 = vmatpush1.bf16.msra.mxu0 %v285
    %309 = vmatprep.subr.bf16.mxu0 0
    %310 = vmatpush1.bf16.msra.mxu0 %v286
    %311 = vmatprep.subr.bf16.mxu0 0
    %312 = vmatpush1.bf16.msra.mxu0 0
    %313 = vmatprep.subr.bf16.mxu0 0
    %314 = vmatpush1.bf16.msra.mxu0 0
    %315 = vmatprep.subr.bf16.mxu0 0
    %316 = vmatpush1.bf16.msra.mxu0 0
    %317 = vmatprep.subr.bf16.mxu0 0
    %318 = vmatpush1.bf16.msra.mxu0 0
    %319 = vmatprep.subr.bf16.mxu0 0
    %320 = vmatpush1.bf16.msra.mxu0 0
    %321 = vmatprep.subr.bf16.mxu0 0
    %322 = vmatpush1.bf16.msra.mxu0 0
    %323 = vmatprep.subr.bf16.mxu0 0
    %324 = vmatpush1.bf16.msra.mxu0 0
    %325 = vmatprep.subr.bf16.mxu0 0
    %326 = vmatpush1.bf16.msra.mxu0 0
    %327 = vmatprep.mubr.bf16.mxu0 0
    %328 = vmatmul.mubr.bf16.gmra.mrb[0].mxu0 %v239
    %v329 = vpop.f32.mrb[0].mxu0
    %v330 = vadd.f32 %v245, %v329
    %v331 = vpop.f32.mrb[0].mxu0
    %v332 = vpop.f32.mrb[0].mxu0
    %v333 = vadd.f32 %v245, %v332
    %v334 = vpop.f32.mrb[0].mxu0
    %335 = vmatprep.mubr.bf16.mxu0 0
    %336 = vmatmul.mubr.bf16.gmra.mrb[0].mxu0 %v240
    %v337 = vpop.f32.mrb[0].mxu0
    %v338 = vadd.f32 %v245, %v337
    %v339 = vpop.f32.mrb[0].mxu0
    %v340 = vpop.f32.mrb[0].mxu0
    %v341 = vadd.f32 %v245, %v340
    %v342 = vpop.f32.mrb[0].mxu0
    %343 = vdwg.mxu0
    %v344 = vxor.u32 %v330, 2147483648
    %v345 = vxor.u32 %v333, 2147483648
    %v346 = vxor.u32 %v338, 2147483648
    %v347 = vxor.u32 %v341, 2147483648
    %v348 = vmul.f32 %v344, 1.442695
    %v349 = vpow.pop %v348
    %v350 = vmul.f32 %v345, 1.442695
    %v351 = vpow.pop %v350
    %v352 = vmul.f32 %v346, 1.442695
    %v353 = vpow.pop %v352
    %v354 = vmul.f32 %v347, 1.442695
    %v355 = vpow.pop %v354
    %v356 = vadd.f32 %v349, 1.0
    %v357 = vadd.f32 %v351, 1.0
    %v358 = vadd.f32 %v353, 1.0
    %v359 = vadd.f32 %v355, 1.0
    %v360 = vrcp.pop %v356
    %v361 = vmul.f32 1.0, %v360
    %v362 = vrcp.pop %v357
    %v363 = vmul.f32 1.0, %v362
    %v364 = vrcp.pop %v358
    %v365 = vmul.f32 1.0, %v364
    %v366 = vrcp.pop %v359
    %v367 = vmul.f32 1.0, %v366
    %v368 = vstv %s238
    %v369 = vmul.f32 %v361, %v368
    %v370 = vmul.f32 %v363, %v368
    %v371 = vmul.f32 %v365, %v368
    %v372 = vmul.f32 %v367, %v368
    %v373 = vadd.f32 %v369, 1.1
    %v374 = vadd.f32 %v370, 1.1
    %v375 = vadd.f32 %v371, 1.1
    %v376 = vadd.f32 %v372, 1.1
    %v377 = vmul.f32 %v330, %v330
    %v378 = vmul.f32 %v333, %v333
    %v379 = vmul.f32 %v338, %v338
    %v380 = vmul.f32 %v341, %v341
    %381 = vadd.xlane.f32.xlu0 %v377
    %v382 = vpop.xlane.xlu0 %381
    %383 = vadd.xlane.f32.xlu0 %v378
    %v384 = vpop.xlane.xlu0 %383
    %385 = vadd.xlane.f32.xlu0 %v379
    %v386 = vpop.xlane.xlu0 %385
    %387 = vadd.xlane.f32.xlu0 %v380
    %v388 = vpop.xlane.xlu0 %387
    %v389 = vsub.f32 %v382, %v377
    %v390 = vsub.f32 %v384, %v378
    %v391 = vsub.f32 %v386, %v379
    %v392 = vsub.f32 %v388, %v380
    %v393 = vmul.f32 %v373, %v373
    %v394 = vmul.f32 %v374, %v374
    %v395 = vmul.f32 %v375, %v375
    %v396 = vmul.f32 %v376, %v376
    %v397 = vsub.f32 %v393, 1.0
    %v398 = vsub.f32 %v394, 1.0
    %v399 = vsub.f32 %v395, 1.0
    %v400 = vsub.f32 %v396, 1.0
    %v401 = vmax.f32 %v389, 1e-08
    %v402 = vmax.f32 %v390, 1e-08
    %v403 = vmax.f32 %v391, 1e-08
    %v404 = vmax.f32 %v392, 1e-08
    %v405 = vrcp.pop %v401
    %v406 = vmul.f32 %v397, %v405
    %v407 = vrcp.pop %v402
    %v408 = vmul.f32 %v398, %v407
    %v409 = vrcp.pop %v403
    %v410 = vmul.f32 %v399, %v409
    %v411 = vrcp.pop %v404
    %v412 = vmul.f32 %v400, %v411
    %v413 = vrsqrt.pop %v406
    %v414 = vmul.f32 %v406, %v413
    %vm415 = vcmp.eq.f32.partialorder %v406, inf
    %v416 = vsel %vm415, %v406, %v414
    %vm417 = vcmp.eq.f32.partialorder %v406, 0.0
    %v418 = vand.u32 %v406, 2147483648
    %v419 = vsel %vm417, %v418, %v416
    %v420 = vrsqrt.pop %v408
    %v421 = vmul.f32 %v408, %v420
    %vm422 = vcmp.eq.f32.partialorder %v408, inf
    %v423 = vsel %vm422, %v408, %v421
    %vm424 = vcmp.eq.f32.partialorder %v408, 0.0
    %v425 = vand.u32 %v408, 2147483648
    %v426 = vsel %vm424, %v425, %v423
    %v427 = vrsqrt.pop %v410
    %v428 = vmul.f32 %v410, %v427
    %vm429 = vcmp.eq.f32.partialorder %v410, inf
    %v430 = vsel %vm429, %v410, %v428
    %vm431 = vcmp.eq.f32.partialorder %v410, 0.0
    %v432 = vand.u32 %v410, 2147483648
    %v433 = vsel %vm431, %v432, %v430
    %v434 = vrsqrt.pop %v412
    %v435 = vmul.f32 %v412, %v434
    %vm436 = vcmp.eq.f32.partialorder %v412, inf
    %v437 = vsel %vm436, %v412, %v435
    %vm438 = vcmp.eq.f32.partialorder %v412, 0.0
    %v439 = vand.u32 %v412, 2147483648
    %v440 = vsel %vm438, %v439, %v437
    %442 = vset.pattern.permute.xlu0 0
    %443 = vperm.xlu0 %442, %v419
    %v444 = vpop.permute.xlu0 %443
    %447 = vset.pattern.permute.xlu0 0
    %448 = vperm.xlu0 %447, %v426
    %v449 = vpop.permute.xlu0 %448
    %452 = vset.pattern.permute.xlu0 0
    %453 = vperm.xlu0 %452, %v433
    %v454 = vpop.permute.xlu0 %453
    %457 = vset.pattern.permute.xlu0 0
    %458 = vperm.xlu0 %457, %v440
    %v459 = vpop.permute.xlu0 %458
    %v461 = vmul.f32 %v330, %v444
    %v462 = vmul.f32 %v333, %v449
    %v463 = vmul.f32 %v338, %v454
    %v464 = vmul.f32 %v341, %v459
    %466 = vset.pattern.permute.xlu0 0
    %467 = vperm.xlu0 %466, %v373
    %v468 = vpop.permute.xlu0 %467
    %471 = vset.pattern.permute.xlu0 0
    %472 = vperm.xlu0 %471, %v374
    %v473 = vpop.permute.xlu0 %472
    %476 = vset.pattern.permute.xlu0 0
    %477 = vperm.xlu0 %476, %v375
    %v478 = vpop.permute.xlu0 %477
    %481 = vset.pattern.permute.xlu0 0
    %482 = vperm.xlu0 %481, %v376
    %v483 = vpop.permute.xlu0 %482
    %v485 = vsel %vm216, %v468, %v461
    %v486 = vsel %vm216, %v473, %v462
    %v487 = vsel %vm216, %v478, %v463
    %v488 = vsel %vm216, %v483, %v464
    %v489 = vpack.c.bf16 %v80, %v79
    %v490 = vpack.c.bf16 %v82, %v81
    %v491 = vpack.c.bf16 %v486, %v485
    %v492 = vpack.c.bf16 %v488, %v487
    %vm493 = vcmask 261120
    %v495 = vsel %vm493, %v489, 0
    %v498 = vsel %vm493, %v490, 0
    %500 = vmatprep.subr.bf16.mxu0 0
    %501 = vmatpush1.bf16.msra.mxu0 %v491
    %502 = vmatprep.subr.bf16.mxu0 0
    %503 = vmatpush1.bf16.msra.mxu0 %v492
    %504 = vmatprep.subr.bf16.mxu0 0
    %505 = vmatpush1.bf16.msra.mxu0 0
    %506 = vmatprep.subr.bf16.mxu0 0
    %507 = vmatpush1.bf16.msra.mxu0 0
    %508 = vmatprep.subr.bf16.mxu0 0
    %509 = vmatpush1.bf16.msra.mxu0 0
    %510 = vmatprep.subr.bf16.mxu0 0
    %511 = vmatpush1.bf16.msra.mxu0 0
    %512 = vmatprep.subr.bf16.mxu0 0
    %513 = vmatpush1.bf16.msra.mxu0 0
    %514 = vmatprep.subr.bf16.mxu0 0
    %515 = vmatpush1.bf16.msra.mxu0 0
    %516 = vmatprep.subr.bf16.mxu0 0
    %517 = vmatpush1.bf16.msra.mxu0 0
    %518 = vmatprep.subr.bf16.mxu0 0
    %519 = vmatpush1.bf16.msra.mxu0 0
    %520 = vmatprep.subr.bf16.mxu0 0
    %521 = vmatpush1.bf16.msra.mxu0 0
    %522 = vmatprep.subr.bf16.mxu0 0
    %523 = vmatpush1.bf16.msra.mxu0 0
    %524 = vmatprep.subr.bf16.mxu0 0
    %525 = vmatpush1.bf16.msra.mxu0 0
    %526 = vmatprep.subr.bf16.mxu0 0
    %527 = vmatpush1.bf16.msra.mxu0 0
    %528 = vmatprep.subr.bf16.mxu0 0
    %529 = vmatpush1.bf16.msra.mxu0 0
    %530 = vmatprep.subr.bf16.mxu0 0
    %531 = vmatpush1.bf16.msra.mxu0 0
    %532 = vmatprep.mubr.bf16.mxu0 0
    %533 = vmatmul.mubr.bf16.gmra.mrb[0].mxu0 %v495
    %v534 = vpop.f32.mrb[0].mxu0
    %v535 = vadd.f32 0.0, %v534
    %v536 = vpop.f32.mrb[0].mxu0
    %v537 = vpop.f32.mrb[0].mxu0
    %v538 = vadd.f32 0.0, %v537
    %v539 = vpop.f32.mrb[0].mxu0
    %540 = vmatprep.mubr.bf16.mxu0 0
    %541 = vmatmul.mubr.bf16.gmra.mrb[0].mxu0 %v498
    %v542 = vpop.f32.mrb[0].mxu0
    %v543 = vadd.f32 0.0, %v542
    %v544 = vpop.f32.mrb[0].mxu0
    %v545 = vpop.f32.mrb[0].mxu0
    %v546 = vadd.f32 0.0, %v545
    %v547 = vpop.f32.mrb[0].mxu0
    %548 = vdwg.mxu0
    %v549 = vmul.f32 %v535, %v535
    %v550 = vmul.f32 %v538, %v538
    %v551 = vmul.f32 %v543, %v543
    %v552 = vmul.f32 %v546, %v546
    %553 = vadd.xlane.f32.xlu0 %v549
    %v554 = vpop.xlane.xlu0 %553
    %555 = vadd.xlane.f32.xlu0 %v550
    %v556 = vpop.xlane.xlu0 %555
    %557 = vadd.xlane.f32.xlu0 %v551
    %v558 = vpop.xlane.xlu0 %557
    %559 = vadd.xlane.f32.xlu0 %v552
    %v560 = vpop.xlane.xlu0 %559
    %v561 = vmul.f32 %v535, 2.0
    %v562 = vmul.f32 %v538, 2.0
    %v563 = vmul.f32 %v543, 2.0
    %v564 = vmul.f32 %v546, 2.0
    %v565 = vmul.f32 %v561, %v535
    %v566 = vmul.f32 %v562, %v538
    %v567 = vmul.f32 %v563, %v543
    %v568 = vmul.f32 %v564, %v546
    %v569 = vsub.f32 %v554, %v565
    %v570 = vsub.f32 %v556, %v566
    %v571 = vsub.f32 %v558, %v567
    %v572 = vsub.f32 %v560, %v568
    %v573 = vand.u32 2147483647, %v569
    %v574 = vand.u32 2147483647, %v570
    %v575 = vand.u32 2147483647, %v571
    %v576 = vand.u32 2147483647, %v572
    %v577 = vmax.f32 %v573, 1e-08
    %v578 = vmax.f32 %v574, 1e-08
    %v579 = vmax.f32 %v575, 1e-08
    %v580 = vmax.f32 %v576, 1e-08
    %v581 = vrsqrt.pop %v577
    %v582 = vrsqrt.pop %v578
    %v583 = vrsqrt.pop %v579
    %v584 = vrsqrt.pop %v580
    %586 = vset.pattern.permute.xlu0 0
    %587 = vperm.xlu0 %586, %v581
    %v588 = vpop.permute.xlu0 %587
    %591 = vset.pattern.permute.xlu0 0
    %592 = vperm.xlu0 %591, %v582
    %v593 = vpop.permute.xlu0 %592
    %596 = vset.pattern.permute.xlu0 0
    %597 = vperm.xlu0 %596, %v583
    %v598 = vpop.permute.xlu0 %597
    %601 = vset.pattern.permute.xlu0 0
    %602 = vperm.xlu0 %601, %v584
    %v603 = vpop.permute.xlu0 %602
    %v605 = vmul.f32 %v535, %v588
    %v606 = vmul.f32 %v538, %v593
    %v607 = vmul.f32 %v543, %v598
    %v608 = vmul.f32 %v546, %v603
    %s609 = scalar_lea.vmem [#allocation9], 64
    %v610 = vld [vmem:[%s609] sm:$0xf]
    %v611 = vld [vmem:[%s609 + $0x4] sm:$0xf]
    %v612 = vld [vmem:[%s609 + $0x8] sm:$0xf]
    %v613 = vld [vmem:[%s609 + $0xc] sm:$0xf]
    %v614 = vld [vmem:[%s609 + $0x10] sm:$0xf]
    %v615 = vld [vmem:[%s609 + $0x14] sm:$0xf]
    %v616 = vld [vmem:[%s609 + $0x18] sm:$0xf]
    %v617 = vld [vmem:[%s609 + $0x1c] sm:$0xf]
    %v618 = vld [vmem:[%s609 + $0x20] sm:$0xf]
    %v619 = vld [vmem:[%s609 + $0x24] sm:$0xf]
    %v620 = vld [vmem:[%s609 + $0x28] sm:$0xf]
    %v621 = vld [vmem:[%s609 + $0x2c] sm:$0xf]
    %v622 = vld [vmem:[%s609 + $0x30] sm:$0xf]
    %v623 = vld [vmem:[%s609 + $0x34] sm:$0xf]
    %v624 = vld [vmem:[%s609 + $0x38] sm:$0xf]
    %v625 = vld [vmem:[%s609 + $0x3c] sm:$0xf]
    %s626 = scalar_lea.vmem %s4, 1
    %v627 = vld [vmem:[%s626] sm:$0x1]
    %s628 = sld [smem:[#allocation2 + $0x3]]
    %v629 = vmax.f32 %v605, 0.0
    %v630 = vmax.f32 %v606, 0.0
    %v631 = vmax.f32 %v607, 0.0
    %v632 = vmax.f32 %v608, 0.0
    %v633 = vpack.c.bf16 %v630, %v629
    %v634 = vpack.c.bf16 %v632, %v631
    %v636 = vlaneseq
    %v637 = vshrl.u32 %v636, 7
    %v638 = vsub.s32 0, %v637
    %v639 = vrot.slane %v627, %v638
    %v657 = vunpack.c.l.b16 %v610
    %v658 = vunpack.c.l.b16 %v611
    %v659 = vunpack.c.l.b16 %v612
    %v660 = vunpack.c.l.b16 %v613
    %v661 = vunpack.c.l.b16 %v614
    %v662 = vunpack.c.l.b16 %v615
    %v663 = vunpack.c.l.b16 %v616
    %v664 = vunpack.c.l.b16 %v617
    %v665 = vunpack.c.l.b16 %v618
    %v666 = vunpack.c.l.b16 %v619
    %v667 = vunpack.c.l.b16 %v620
    %v668 = vunpack.c.l.b16 %v621
    %v669 = vunpack.c.l.b16 %v622
    %v670 = vunpack.c.l.b16 %v623
    %v671 = vunpack.c.l.b16 %v624
    %v672 = vunpack.c.l.b16 %v625
    %v673 = vpack.c.b16 %v658, %v657
    %v674 = vpack.c.b16 %v660, %v659
    %v675 = vpack.c.b16 %v662, %v661
    %v676 = vpack.c.b16 %v664, %v663
    %v677 = vpack.c.b16 %v666, %v665
    %v678 = vpack.c.b16 %v668, %v667
    %v679 = vpack.c.b16 %v670, %v669
    %v680 = vpack.c.b16 %v672, %v671
    %689 = vmatprep.subr.bf16.mxu0 0
    %690 = vmatpush1.bf16.msra.mxu0 %v673
    %691 = vmatprep.subr.bf16.mxu0 0
    %692 = vmatpush1.bf16.msra.mxu0 %v674
    %693 = vmatprep.subr.bf16.mxu0 0
    %694 = vmatpush1.bf16.msra.mxu0 %v675
    %695 = vmatprep.subr.bf16.mxu0 0
    %696 = vmatpush1.bf16.msra.mxu0 %v676
    %697 = vmatprep.subr.bf16.mxu0 0
    %698 = vmatpush1.bf16.msra.mxu0 %v677
    %699 = vmatprep.subr.bf16.mxu0 0
    %700 = vmatpush1.bf16.msra.mxu0 %v678
    %701 = vmatprep.subr.bf16.mxu0 0
    %702 = vmatpush1.bf16.msra.mxu0 %v679
    %703 = vmatprep.subr.bf16.mxu0 0
    %704 = vmatpush1.bf16.msra.mxu0 %v680
    %705 = vmatprep.subr.bf16.mxu0 0
    %706 = vmatpush1.bf16.msra.mxu0 0
    %707 = vmatprep.subr.bf16.mxu0 0
    %708 = vmatpush1.bf16.msra.mxu0 0
    %709 = vmatprep.subr.bf16.mxu0 0
    %710 = vmatpush1.bf16.msra.mxu0 0
    %711 = vmatprep.subr.bf16.mxu0 0
    %712 = vmatpush1.bf16.msra.mxu0 0
    %713 = vmatprep.subr.bf16.mxu0 0
    %714 = vmatpush1.bf16.msra.mxu0 0
    %715 = vmatprep.subr.bf16.mxu0 0
    %716 = vmatpush1.bf16.msra.mxu0 0
    %717 = vmatprep.subr.bf16.mxu0 0
    %718 = vmatpush1.bf16.msra.mxu0 0
    %719 = vmatprep.subr.bf16.mxu0 0
    %720 = vmatpush1.bf16.msra.mxu0 0
    %721 = vmatprep.mubr.bf16.mxu0 0
    %722 = vmatmul.mubr.bf16.gmra.mrb[0].mxu0 %v633
    %v723 = vpop.f32.mrb[0].mxu0
    %v724 = vadd.f32 %v639, %v723
    %v725 = vpop.f32.mrb[0].mxu0
    %v726 = vpop.f32.mrb[0].mxu0
    %v727 = vadd.f32 %v639, %v726
    %v728 = vpop.f32.mrb[0].mxu0
    %729 = vmatprep.mubr.bf16.mxu0 0
    %730 = vmatmul.mubr.bf16.gmra.mrb[0].mxu0 %v634
    %v731 = vpop.f32.mrb[0].mxu0
    %v732 = vadd.f32 %v639, %v731
    %v733 = vpop.f32.mrb[0].mxu0
    %v734 = vpop.f32.mrb[0].mxu0
    %v735 = vadd.f32 %v639, %v734
    %v736 = vpop.f32.mrb[0].mxu0
    %737 = vdwg.mxu0
    %v738 = vxor.u32 %v724, 2147483648
    %v739 = vxor.u32 %v727, 2147483648
    %v740 = vxor.u32 %v732, 2147483648
    %v741 = vxor.u32 %v735, 2147483648
    %v742 = vmul.f32 %v738, 1.442695
    %v743 = vpow.pop %v742
    %v744 = vmul.f32 %v739, 1.442695
    %v745 = vpow.pop %v744
    %v746 = vmul.f32 %v740, 1.442695
    %v747 = vpow.pop %v746
    %v748 = vmul.f32 %v741, 1.442695
    %v749 = vpow.pop %v748
    %v750 = vadd.f32 %v743, 1.0
    %v751 = vadd.f32 %v745, 1.0
    %v752 = vadd.f32 %v747, 1.0
    %v753 = vadd.f32 %v749, 1.0
    %v754 = vrcp.pop %v750
    %v755 = vmul.f32 1.0, %v754
    %v756 = vrcp.pop %v751
    %v757 = vmul.f32 1.0, %v756
    %v758 = vrcp.pop %v752
    %v759 = vmul.f32 1.0, %v758
    %v760 = vrcp.pop %v753
    %v761 = vmul.f32 1.0, %v760
    %v762 = vstv %s628
    %v763 = vmul.f32 %v755, %v762
    %v764 = vmul.f32 %v757, %v762
    %v765 = vmul.f32 %v759, %v762
    %v766 = vmul.f32 %v761, %v762
    %v767 = vadd.f32 %v763, 1.1
    %v768 = vadd.f32 %v764, 1.1
    %v769 = vadd.f32 %v765, 1.1
    %v770 = vadd.f32 %v766, 1.1
    %v771 = vmul.f32 %v724, %v724
    %v772 = vmul.f32 %v727, %v727
    %v773 = vmul.f32 %v732, %v732
    %v774 = vmul.f32 %v735, %v735
    %775 = vadd.xlane.f32.xlu0 %v771
    %v776 = vpop.xlane.xlu0 %775
    %777 = vadd.xlane.f32.xlu0 %v772
    %v778 = vpop.xlane.xlu0 %777
    %779 = vadd.xlane.f32.xlu0 %v773
    %v780 = vpop.xlane.xlu0 %779
    %781 = vadd.xlane.f32.xlu0 %v774
    %v782 = vpop.xlane.xlu0 %781
    %v783 = vsub.f32 %v776, %v771
    %v784 = vsub.f32 %v778, %v772
    %v785 = vsub.f32 %v780, %v773
    %v786 = vsub.f32 %v782, %v774
    %v787 = vmul.f32 %v767, %v767
    %v788 = vmul.f32 %v768, %v768
    %v789 = vmul.f32 %v769, %v769
    %v790 = vmul.f32 %v770, %v770
    %v791 = vsub.f32 %v787, 1.0
    %v792 = vsub.f32 %v788, 1.0
    %v793 = vsub.f32 %v789, 1.0
    %v794 = vsub.f32 %v790, 1.0
    %v795 = vmax.f32 %v783, 1e-08
    %v796 = vmax.f32 %v784, 1e-08
    %v797 = vmax.f32 %v785, 1e-08
    %v798 = vmax.f32 %v786, 1e-08
    %v799 = vrcp.pop %v795
    %v800 = vmul.f32 %v791, %v799
    %v801 = vrcp.pop %v796
    %v802 = vmul.f32 %v792, %v801
    %v803 = vrcp.pop %v797
    %v804 = vmul.f32 %v793, %v803
    %v805 = vrcp.pop %v798
    %v806 = vmul.f32 %v794, %v805
    %v807 = vrsqrt.pop %v800
    %v808 = vmul.f32 %v800, %v807
    %vm809 = vcmp.eq.f32.partialorder %v800, inf
    %v810 = vsel %vm809, %v800, %v808
    %vm811 = vcmp.eq.f32.partialorder %v800, 0.0
    %v812 = vand.u32 %v800, 2147483648
    %v813 = vsel %vm811, %v812, %v810
    %v814 = vrsqrt.pop %v802
    %v815 = vmul.f32 %v802, %v814
    %vm816 = vcmp.eq.f32.partialorder %v802, inf
    %v817 = vsel %vm816, %v802, %v815
    %vm818 = vcmp.eq.f32.partialorder %v802, 0.0
    %v819 = vand.u32 %v802, 2147483648
    %v820 = vsel %vm818, %v819, %v817
    %v821 = vrsqrt.pop %v804
    %v822 = vmul.f32 %v804, %v821
    %vm823 = vcmp.eq.f32.partialorder %v804, inf
    %v824 = vsel %vm823, %v804, %v822
    %vm825 = vcmp.eq.f32.partialorder %v804, 0.0
    %v826 = vand.u32 %v804, 2147483648
    %v827 = vsel %vm825, %v826, %v824
    %v828 = vrsqrt.pop %v806
    %v829 = vmul.f32 %v806, %v828
    %vm830 = vcmp.eq.f32.partialorder %v806, inf
    %v831 = vsel %vm830, %v806, %v829
    %vm832 = vcmp.eq.f32.partialorder %v806, 0.0
    %v833 = vand.u32 %v806, 2147483648
    %v834 = vsel %vm832, %v833, %v831
    %836 = vset.pattern.permute.xlu0 0
    %837 = vperm.xlu0 %836, %v813
    %v838 = vpop.permute.xlu0 %837
    %841 = vset.pattern.permute.xlu0 0
    %842 = vperm.xlu0 %841, %v820
    %v843 = vpop.permute.xlu0 %842
    %846 = vset.pattern.permute.xlu0 0
    %847 = vperm.xlu0 %846, %v827
    %v848 = vpop.permute.xlu0 %847
    %851 = vset.pattern.permute.xlu0 0
    %852 = vperm.xlu0 %851, %v834
    %v853 = vpop.permute.xlu0 %852
    %v855 = vmul.f32 %v724, %v838
    %v856 = vmul.f32 %v727, %v843
    %v857 = vmul.f32 %v732, %v848
    %v858 = vmul.f32 %v735, %v853
    %860 = vset.pattern.permute.xlu0 0
    %861 = vperm.xlu0 %860, %v767
    %v862 = vpop.permute.xlu0 %861
    %865 = vset.pattern.permute.xlu0 0
    %866 = vperm.xlu0 %865, %v768
    %v867 = vpop.permute.xlu0 %866
    %870 = vset.pattern.permute.xlu0 0
    %871 = vperm.xlu0 %870, %v769
    %v872 = vpop.permute.xlu0 %871
    %875 = vset.pattern.permute.xlu0 0
    %876 = vperm.xlu0 %875, %v770
    %v877 = vpop.permute.xlu0 %876
    %v879 = vsel %vm216, %v862, %v855
    %v880 = vsel %vm216, %v867, %v856
    %v881 = vsel %vm216, %v872, %v857
    %v882 = vsel %vm216, %v877, %v858
    %v883 = vpack.c.bf16 %v880, %v879
    %v884 = vpack.c.bf16 %v882, %v881
    %885 = vmatprep.subr.bf16.mxu0 0
    %886 = vmatpush1.bf16.msra.mxu0 %v883
    %887 = vmatprep.subr.bf16.mxu0 0
    %888 = vmatpush1.bf16.msra.mxu0 %v884
    %889 = vmatprep.subr.bf16.mxu0 0
    %890 = vmatpush1.bf16.msra.mxu0 0
    %891 = vmatprep.subr.bf16.mxu0 0
    %892 = vmatpush1.bf16.msra.mxu0 0
    %893 = vmatprep.subr.bf16.mxu0 0
    %894 = vmatpush1.bf16.msra.mxu0 0
    %895 = vmatprep.subr.bf16.mxu0 0
    %896 = vmatpush1.bf16.msra.mxu0 0
    %897 = vmatprep.subr.bf16.mxu0 0
    %898 = vmatpush1.bf16.msra.mxu0 0
    %899 = vmatprep.subr.bf16.mxu0 0
    %900 = vmatpush1.bf16.msra.mxu0 0
    %901 = vmatprep.subr.bf16.mxu0 0
    %902 = vmatpush1.bf16.msra.mxu0 0
    %903 = vmatprep.subr.bf16.mxu0 0
    %904 = vmatpush1.bf16.msra.mxu0 0
    %905 = vmatprep.subr.bf16.mxu0 0
    %906 = vmatpush1.bf16.msra.mxu0 0
    %907 = vmatprep.subr.bf16.mxu0 0
    %908 = vmatpush1.bf16.msra.mxu0 0
    %909 = vmatprep.subr.bf16.mxu0 0
    %910 = vmatpush1.bf16.msra.mxu0 0
    %911 = vmatprep.subr.bf16.mxu0 0
    %912 = vmatpush1.bf16.msra.mxu0 0
    %913 = vmatprep.subr.bf16.mxu0 0
    %914 = vmatpush1.bf16.msra.mxu0 0
    %915 = vmatprep.subr.bf16.mxu0 0
    %916 = vmatpush1.bf16.msra.mxu0 0
    %917 = vmatprep.mubr.bf16.mxu0 0
    %918 = vmatmul.mubr.bf16.gmra.mrb[0].mxu0 %v495
    %v919 = vpop.f32.mrb[0].mxu0
    %v920 = vadd.f32 0.0, %v919
    %v921 = vpop.f32.mrb[0].mxu0
    %v922 = vpop.f32.mrb[0].mxu0
    %v923 = vadd.f32 0.0, %v922
    %v924 = vpop.f32.mrb[0].mxu0
    %925 = vmatprep.mubr.bf16.mxu0 0
    %926 = vmatmul.mubr.bf16.gmra.mrb[0].mxu0 %v498
    %v927 = vpop.f32.mrb[0].mxu0
    %v928 = vadd.f32 0.0, %v927
    %v929 = vpop.f32.mrb[0].mxu0
    %v930 = vpop.f32.mrb[0].mxu0
    %v931 = vadd.f32 0.0, %v930
    %v932 = vpop.f32.mrb[0].mxu0
    %933 = vdwg.mxu0
    %v934 = vmul.f32 %v920, %v920
    %v935 = vmul.f32 %v923, %v923
    %v936 = vmul.f32 %v928, %v928
    %v937 = vmul.f32 %v931, %v931
    %938 = vadd.xlane.f32.xlu0 %v934
    %v939 = vpop.xlane.xlu0 %938
    %940 = vadd.xlane.f32.xlu0 %v935
    %v941 = vpop.xlane.xlu0 %940
    %942 = vadd.xlane.f32.xlu0 %v936
    %v943 = vpop.xlane.xlu0 %942
    %944 = vadd.xlane.f32.xlu0 %v937
    %v945 = vpop.xlane.xlu0 %944
    %v946 = vmul.f32 %v920, 2.0
    %v947 = vmul.f32 %v923, 2.0
    %v948 = vmul.f32 %v928, 2.0
    %v949 = vmul.f32 %v931, 2.0
    %v950 = vmul.f32 %v946, %v920
    %v951 = vmul.f32 %v947, %v923
    %v952 = vmul.f32 %v948, %v928
    %v953 = vmul.f32 %v949, %v931
    %v954 = vsub.f32 %v939, %v950
    %v955 = vsub.f32 %v941, %v951
    %v956 = vsub.f32 %v943, %v952
    %v957 = vsub.f32 %v945, %v953
    %v958 = vand.u32 2147483647, %v954
    %v959 = vand.u32 2147483647, %v955
    %v960 = vand.u32 2147483647, %v956
    %v961 = vand.u32 2147483647, %v957
    %v962 = vmax.f32 %v958, 1e-08
    %v963 = vmax.f32 %v959, 1e-08
    %v964 = vmax.f32 %v960, 1e-08
    %v965 = vmax.f32 %v961, 1e-08
    %v966 = vrsqrt.pop %v962
    %v967 = vrsqrt.pop %v963
    %v968 = vrsqrt.pop %v964
    %v969 = vrsqrt.pop %v965
    %971 = vset.pattern.permute.xlu0 0
    %972 = vperm.xlu0 %971, %v966
    %v973 = vpop.permute.xlu0 %972
    %976 = vset.pattern.permute.xlu0 0
    %977 = vperm.xlu0 %976, %v967
    %v978 = vpop.permute.xlu0 %977
    %981 = vset.pattern.permute.xlu0 0
    %982 = vperm.xlu0 %981, %v968
    %v983 = vpop.permute.xlu0 %982
    %986 = vset.pattern.permute.xlu0 0
    %987 = vperm.xlu0 %986, %v969
    %v988 = vpop.permute.xlu0 %987
    %v990 = vmul.f32 %v920, %v973
    %v991 = vmul.f32 %v923, %v978
    %v992 = vmul.f32 %v928, %v983
    %v993 = vmul.f32 %v931, %v988
    %v994 = vadd.f32 %v990, 1.0
    %v995 = vadd.f32 %v991, 1.0
    %v996 = vadd.f32 %v992, 1.0
    %v997 = vadd.f32 %v993, 1.0
    %999 = vset.pattern.permute.xlu0 0
    %1000 = vperm.xlu0 %999, %v994
    %v1001 = vpop.permute.xlu0 %1000
    %1004 = vset.pattern.permute.xlu0 0
    %1005 = vperm.xlu0 %1004, %v995
    %v1006 = vpop.permute.xlu0 %1005
    %1009 = vset.pattern.permute.xlu0 0
    %1010 = vperm.xlu0 %1009, %v996
    %v1011 = vpop.permute.xlu0 %1010
    %1014 = vset.pattern.permute.xlu0 0
    %1015 = vperm.xlu0 %1014, %v997
    %v1016 = vpop.permute.xlu0 %1015
    %v1018 = vrcp.pop %v1001
    %v1019 = vmul.f32 %v990, %v1018
    %v1020 = vrcp.pop %v1006
    %v1021 = vmul.f32 %v991, %v1020
    %v1022 = vrcp.pop %v1011
    %v1023 = vmul.f32 %v992, %v1022
    %v1024 = vrcp.pop %v1016
    %v1025 = vmul.f32 %v993, %v1024
    %v1026 = vmul.f32 %v1019, %v1019
    %v1027 = vmul.f32 %v1021, %v1021
    %v1028 = vmul.f32 %v1023, %v1023
    %v1029 = vmul.f32 %v1025, %v1025
    %1030 = vadd.xlane.f32.xlu0 %v1026
    %v1031 = vpop.xlane.xlu0 %1030
    %1032 = vadd.xlane.f32.xlu0 %v1027
    %v1033 = vpop.xlane.xlu0 %1032
    %1034 = vadd.xlane.f32.xlu0 %v1028
    %v1035 = vpop.xlane.xlu0 %1034
    %1036 = vadd.xlane.f32.xlu0 %v1029
    %v1037 = vpop.xlane.xlu0 %1036
    %v1038 = vsub.f32 %v1031, %v1026
    %v1039 = vsub.f32 %v1033, %v1027
    %v1040 = vsub.f32 %v1035, %v1028
    %v1041 = vsub.f32 %v1037, %v1029
    %v1042 = vmax.f32 %v1038, 0.0
    %v1043 = vmax.f32 %v1039, 0.0
    %v1044 = vmax.f32 %v1040, 0.0
    %v1045 = vmax.f32 %v1041, 0.0
    %v1046 = vrsqrt.pop %v1042
    %v1047 = vmul.f32 %v1042, %v1046
    %vm1048 = vcmp.eq.f32.partialorder %v1042, inf
    %v1049 = vsel %vm1048, %v1042, %v1047
    %vm1050 = vcmp.eq.f32.partialorder %v1042, 0.0
    %v1051 = vand.u32 %v1042, 2147483648
    %v1052 = vsel %vm1050, %v1051, %v1049
    %v1053 = vrsqrt.pop %v1043
    %v1054 = vmul.f32 %v1043, %v1053
    %vm1055 = vcmp.eq.f32.partialorder %v1043, inf
    %v1056 = vsel %vm1055, %v1043, %v1054
    %vm1057 = vcmp.eq.f32.partialorder %v1043, 0.0
    %v1058 = vand.u32 %v1043, 2147483648
    %v1059 = vsel %vm1057, %v1058, %v1056
    %v1060 = vrsqrt.pop %v1044
    %v1061 = vmul.f32 %v1044, %v1060
    %vm1062 = vcmp.eq.f32.partialorder %v1044, inf
    %v1063 = vsel %vm1062, %v1044, %v1061
    %vm1064 = vcmp.eq.f32.partialorder %v1044, 0.0
    %v1065 = vand.u32 %v1044, 2147483648
    %v1066 = vsel %vm1064, %v1065, %v1063
    %v1067 = vrsqrt.pop %v1045
    %v1068 = vmul.f32 %v1045, %v1067
    %vm1069 = vcmp.eq.f32.partialorder %v1045, inf
    %v1070 = vsel %vm1069, %v1045, %v1068
    %vm1071 = vcmp.eq.f32.partialorder %v1045, 0.0
    %v1072 = vand.u32 %v1045, 2147483648
    %v1073 = vsel %vm1071, %v1072, %v1070
    %v1074 = vmax.f32 %v1052, 1e-12
    %v1075 = vmax.f32 %v1059, 1e-12
    %v1076 = vmax.f32 %v1066, 1e-12
    %v1077 = vmax.f32 %v1073, 1e-12
    %v1078 = vstv %s77
    %v1079 = vrcp.pop %v1074
    %v1080 = vmul.f32 %v1078, %v1079
    %v1081 = vrcp.pop %v1075
    %v1082 = vmul.f32 %v1078, %v1081
    %v1083 = vrcp.pop %v1076
    %v1084 = vmul.f32 %v1078, %v1083
    %v1085 = vrcp.pop %v1077
    %v1086 = vmul.f32 %v1078, %v1085
    %1088 = vset.pattern.permute.xlu0 0
    %1089 = vperm.xlu0 %1088, %v1080
    %v1090 = vpop.permute.xlu0 %1089
    %1093 = vset.pattern.permute.xlu0 0
    %1094 = vperm.xlu0 %1093, %v1082
    %v1095 = vpop.permute.xlu0 %1094
    %1098 = vset.pattern.permute.xlu0 0
    %1099 = vperm.xlu0 %1098, %v1084
    %v1100 = vpop.permute.xlu0 %1099
    %1103 = vset.pattern.permute.xlu0 0
    %1104 = vperm.xlu0 %1103, %v1086
    %v1105 = vpop.permute.xlu0 %1104
    %v1107 = vmul.f32 %v1019, %v1090
    %v1108 = vmul.f32 %v1021, %v1095
    %v1109 = vmul.f32 %v1023, %v1100
    %v1110 = vmul.f32 %v1025, %v1105
    %v1111 = vmul.f32 %v1107, %v1107
    %v1112 = vmul.f32 %v1108, %v1108
    %v1113 = vmul.f32 %v1109, %v1109
    %v1114 = vmul.f32 %v1110, %v1110
    %1115 = vadd.xlane.f32.xlu0 %v1111
    %v1116 = vpop.xlane.xlu0 %1115
    %1117 = vadd.xlane.f32.xlu0 %v1112
    %v1118 = vpop.xlane.xlu0 %1117
    %1119 = vadd.xlane.f32.xlu0 %v1113
    %v1120 = vpop.xlane.xlu0 %1119
    %1121 = vadd.xlane.f32.xlu0 %v1114
    %v1122 = vpop.xlane.xlu0 %1121
    %v1123 = vsub.f32 %v1116, %v1111
    %v1124 = vsub.f32 %v1118, %v1112
    %v1125 = vsub.f32 %v1120, %v1113
    %v1126 = vsub.f32 %v1122, %v1114
    %v1127 = vadd.f32 %v1123, 1.0
    %v1128 = vadd.f32 %v1124, 1.0
    %v1129 = vadd.f32 %v1125, 1.0
    %v1130 = vadd.f32 %v1126, 1.0
    %v1131 = vmul.f32 %v1107, 2.0
    %v1132 = vmul.f32 %v1108, 2.0
    %v1133 = vmul.f32 %v1109, 2.0
    %v1134 = vmul.f32 %v1110, 2.0
    %1136 = vset.pattern.permute.xlu0 0
    %1137 = vperm.xlu0 %1136, %v1127
    %v1138 = vpop.permute.xlu0 %1137
    %1141 = vset.pattern.permute.xlu0 0
    %1142 = vperm.xlu0 %1141, %v1128
    %v1143 = vpop.permute.xlu0 %1142
    %1146 = vset.pattern.permute.xlu0 0
    %1147 = vperm.xlu0 %1146, %v1129
    %v1148 = vpop.permute.xlu0 %1147
    %1151 = vset.pattern.permute.xlu0 0
    %1152 = vperm.xlu0 %1151, %v1130
    %v1153 = vpop.permute.xlu0 %1152
    %v1155 = vsel %vm216, %v1138, %v1131
    %v1156 = vsel %vm216, %v1143, %v1132
    %v1157 = vsel %vm216, %v1148, %v1133
    %v1158 = vsel %vm216, %v1153, %v1134
    %v1159 = vsub.f32 1.0, %v1123
    %v1160 = vsub.f32 1.0, %v1124
    %v1161 = vsub.f32 1.0, %v1125
    %v1162 = vsub.f32 1.0, %v1126
    %v1163 = vadd.f32 %v1159, 1e-06
    %v1164 = vadd.f32 %v1160, 1e-06
    %v1165 = vadd.f32 %v1161, 1e-06
    %v1166 = vadd.f32 %v1162, 1e-06
    %1168 = vset.pattern.permute.xlu0 0
    %1169 = vperm.xlu0 %1168, %v1163
    %v1170 = vpop.permute.xlu0 %1169
    %1173 = vset.pattern.permute.xlu0 0
    %1174 = vperm.xlu0 %1173, %v1164
    %v1175 = vpop.permute.xlu0 %1174
    %1178 = vset.pattern.permute.xlu0 0
    %1179 = vperm.xlu0 %1178, %v1165
    %v1180 = vpop.permute.xlu0 %1179
    %1183 = vset.pattern.permute.xlu0 0
    %1184 = vperm.xlu0 %1183, %v1166
    %v1185 = vpop.permute.xlu0 %1184
    %v1187 = vrcp.pop %v1170
    %v1188 = vmul.f32 %v1155, %v1187
    %v1189 = vrcp.pop %v1175
    %v1190 = vmul.f32 %v1156, %v1189
    %v1191 = vrcp.pop %v1180
    %v1192 = vmul.f32 %v1157, %v1191
    %v1193 = vrcp.pop %v1185
    %v1194 = vmul.f32 %v1158, %v1193
    %1195 = vst [vmem:[#allocation10] sm:$0xff] %v1188
    %1196 = vst [vmem:[#allocation10 + $0x8] sm:$0xff] %v1190
    %1197 = vst [vmem:[#allocation10 + $0x10] sm:$0xff] %v1192
    %1198 = vst [vmem:[#allocation10 + $0x18] sm:$0xff] %v1194
    %s1199 = scalar_lea.vmem [#allocation9], 128
    %v1200 = vld [vmem:[%s1199] sm:$0xf]
    %v1201 = vld [vmem:[%s1199 + $0x4] sm:$0xf]
    %v1202 = vld [vmem:[%s1199 + $0x8] sm:$0xf]
    %v1203 = vld [vmem:[%s1199 + $0xc] sm:$0xf]
    %v1204 = vld [vmem:[%s1199 + $0x10] sm:$0xf]
    %v1205 = vld [vmem:[%s1199 + $0x14] sm:$0xf]
    %v1206 = vld [vmem:[%s1199 + $0x18] sm:$0xf]
    %v1207 = vld [vmem:[%s1199 + $0x1c] sm:$0xf]
    %v1208 = vld [vmem:[%s1199 + $0x20] sm:$0xf]
    %v1209 = vld [vmem:[%s1199 + $0x24] sm:$0xf]
    %v1210 = vld [vmem:[%s1199 + $0x28] sm:$0xf]
    %v1211 = vld [vmem:[%s1199 + $0x2c] sm:$0xf]
    %v1212 = vld [vmem:[%s1199 + $0x30] sm:$0xf]
    %v1213 = vld [vmem:[%s1199 + $0x34] sm:$0xf]
    %v1214 = vld [vmem:[%s1199 + $0x38] sm:$0xf]
    %v1215 = vld [vmem:[%s1199 + $0x3c] sm:$0xf]
    %s1216 = scalar_lea.vmem %s4, 2
    %v1217 = vld [vmem:[%s1216] sm:$0x1]
    %s1218 = sld [smem:[#allocation2 + $0x4]]
    %v1219 = vpack.c.bf16 %v1190, %v1188
    %v1220 = vpack.c.bf16 %v1194, %v1192
    %v1222 = vlaneseq
    %v1223 = vshrl.u32 %v1222, 7
    %v1224 = vsub.s32 0, %v1223
    %v1225 = vrot.slane %v1217, %v1224
    %v1243 = vunpack.c.l.b16 %v1200
    %v1244 = vunpack.c.l.b16 %v1201
    %v1245 = vunpack.c.l.b16 %v1202
    %v1246 = vunpack.c.l.b16 %v1203
    %v1247 = vunpack.c.l.b16 %v1204
    %v1248 = vunpack.c.l.b16 %v1205
    %v1249 = vunpack.c.l.b16 %v1206
    %v1250 = vunpack.c.l.b16 %v1207
    %v1251 = vunpack.c.l.b16 %v1208
    %v1252 = vunpack.c.l.b16 %v1209
    %v1253 = vunpack.c.l.b16 %v1210
    %v1254 = vunpack.c.l.b16 %v1211
    %v1255 = vunpack.c.l.b16 %v1212
    %v1256 = vunpack.c.l.b16 %v1213
    %v1257 = vunpack.c.l.b16 %v1214
    %v1258 = vunpack.c.l.b16 %v1215
    %v1259 = vpack.c.b16 %v1244, %v1243
    %v1260 = vpack.c.b16 %v1246, %v1245
    %v1261 = vpack.c.b16 %v1248, %v1247
    %v1262 = vpack.c.b16 %v1250, %v1249
    %v1263 = vpack.c.b16 %v1252, %v1251
    %v1264 = vpack.c.b16 %v1254, %v1253
    %v1265 = vpack.c.b16 %v1256, %v1255
    %v1266 = vpack.c.b16 %v1258, %v1257
    %1275 = vmatprep.subr.bf16.mxu0 0
    %1276 = vmatpush1.bf16.msra.mxu0 %v1259
    %1277 = vmatprep.subr.bf16.mxu0 0
    %1278 = vmatpush1.bf16.msra.mxu0 %v1260
    %1279 = vmatprep.subr.bf16.mxu0 0
    %1280 = vmatpush1.bf16.msra.mxu0 %v1261
    %1281 = vmatprep.subr.bf16.mxu0 0
    %1282 = vmatpush1.bf16.msra.mxu0 %v1262
    %1283 = vmatprep.subr.bf16.mxu0 0
    %1284 = vmatpush1.bf16.msra.mxu0 %v1263
    %1285 = vmatprep.subr.bf16.mxu0 0
    %1286 = vmatpush1.bf16.msra.mxu0 %v1264
    %1287 = vmatprep.subr.bf16.mxu0 0
    %1288 = vmatpush1.bf16.msra.mxu0 %v1265
    %1289 = vmatprep.subr.bf16.mxu0 0
    %1290 = vmatpush1.bf16.msra.mxu0 %v1266
    %1291 = vmatprep.subr.bf16.mxu0 0
    %1292 = vmatpush1.bf16.msra.mxu0 0
    %1293 = vmatprep.subr.bf16.mxu0 0
    %1294 = vmatpush1.bf16.msra.mxu0 0
    %1295 = vmatprep.subr.bf16.mxu0 0
    %1296 = vmatpush1.bf16.msra.mxu0 0
    %1297 = vmatprep.subr.bf16.mxu0 0
    %1298 = vmatpush1.bf16.msra.mxu0 0
    %1299 = vmatprep.subr.bf16.mxu0 0
    %1300 = vmatpush1.bf16.msra.mxu0 0
    %1301 = vmatprep.subr.bf16.mxu0 0
    %1302 = vmatpush1.bf16.msra.mxu0 0
    %1303 = vmatprep.subr.bf16.mxu0 0
    %1304 = vmatpush1.bf16.msra.mxu0 0
    %1305 = vmatprep.subr.bf16.mxu0 0
    %1306 = vmatpush1.bf16.msra.mxu0 0
    %1307 = vmatprep.mubr.bf16.mxu0 0
    %1308 = vmatmul.mubr.bf16.gmra.mrb[0].mxu0 %v1219
    %v1309 = vpop.f32.mrb[0].mxu0
    %v1310 = vadd.f32 %v1225, %v1309
    %v1311 = vpop.f32.mrb[0].mxu0
    %v1312 = vpop.f32.mrb[0].mxu0
    %v1313 = vadd.f32 %v1225, %v1312
    %v1314 = vpop.f32.mrb[0].mxu0
    %1315 = vmatprep.mubr.bf16.mxu0 0
    %1316 = vmatmul.mubr.bf16.gmra.mrb[0].mxu0 %v1220
    %v1317 = vpop.f32.mrb[0].mxu0
    %v1318 = vadd.f32 %v1225, %v1317
    %v1319 = vpop.f32.mrb[0].mxu0
    %v1320 = vpop.f32.mrb[0].mxu0
    %v1321 = vadd.f32 %v1225, %v1320
    %v1322 = vpop.f32.mrb[0].mxu0
    %1323 = vdwg.mxu0
    %v1324 = vxor.u32 %v1310, 2147483648
    %v1325 = vxor.u32 %v1313, 2147483648
    %v1326 = vxor.u32 %v1318, 2147483648
    %v1327 = vxor.u32 %v1321, 2147483648
    %v1328 = vmul.f32 %v1324, 1.442695
    %v1329 = vpow.pop %v1328
    %v1330 = vmul.f32 %v1325, 1.442695
    %v1331 = vpow.pop %v1330
    %v1332 = vmul.f32 %v1326, 1.442695
    %v1333 = vpow.pop %v1332
    %v1334 = vmul.f32 %v1327, 1.442695
    %v1335 = vpow.pop %v1334
    %v1336 = vadd.f32 %v1329, 1.0
    %v1337 = vadd.f32 %v1331, 1.0
    %v1338 = vadd.f32 %v1333, 1.0
    %v1339 = vadd.f32 %v1335, 1.0
    %v1340 = vrcp.pop %v1336
    %v1341 = vmul.f32 1.0, %v1340
    %v1342 = vrcp.pop %v1337
    %v1343 = vmul.f32 1.0, %v1342
    %v1344 = vrcp.pop %v1338
    %v1345 = vmul.f32 1.0, %v1344
    %v1346 = vrcp.pop %v1339
    %v1347 = vmul.f32 1.0, %v1346
    %v1348 = vstv %s1218
    %v1349 = vmul.f32 %v1341, %v1348
    %v1350 = vmul.f32 %v1343, %v1348
    %v1351 = vmul.f32 %v1345, %v1348
    %v1352 = vmul.f32 %v1347, %v1348
    %v1353 = vadd.f32 %v1349, 1.1
    %v1354 = vadd.f32 %v1350, 1.1
    %v1355 = vadd.f32 %v1351, 1.1
    %v1356 = vadd.f32 %v1352, 1.1
    %v1357 = vmul.f32 %v1310, %v1310
    %v1358 = vmul.f32 %v1313, %v1313
    %v1359 = vmul.f32 %v1318, %v1318
    %v1360 = vmul.f32 %v1321, %v1321
    %1361 = vadd.xlane.f32.xlu0 %v1357
    %v1362 = vpop.xlane.xlu0 %1361
    %1363 = vadd.xlane.f32.xlu0 %v1358
    %v1364 = vpop.xlane.xlu0 %1363
    %1365 = vadd.xlane.f32.xlu0 %v1359
    %v1366 = vpop.xlane.xlu0 %1365
    %1367 = vadd.xlane.f32.xlu0 %v1360
    %v1368 = vpop.xlane.xlu0 %1367
    %v1369 = vsub.f32 %v1362, %v1357
    %v1370 = vsub.f32 %v1364, %v1358
    %v1371 = vsub.f32 %v1366, %v1359
    %v1372 = vsub.f32 %v1368, %v1360
    %v1373 = vmul.f32 %v1353, %v1353
    %v1374 = vmul.f32 %v1354, %v1354
    %v1375 = vmul.f32 %v1355, %v1355
    %v1376 = vmul.f32 %v1356, %v1356
    %v1377 = vsub.f32 %v1373, 1.0
    %v1378 = vsub.f32 %v1374, 1.0
    %v1379 = vsub.f32 %v1375, 1.0
    %v1380 = vsub.f32 %v1376, 1.0
    %v1381 = vmax.f32 %v1369, 1e-08
    %v1382 = vmax.f32 %v1370, 1e-08
    %v1383 = vmax.f32 %v1371, 1e-08
    %v1384 = vmax.f32 %v1372, 1e-08
    %v1385 = vrcp.pop %v1381
    %v1386 = vmul.f32 %v1377, %v1385
    %v1387 = vrcp.pop %v1382
    %v1388 = vmul.f32 %v1378, %v1387
    %v1389 = vrcp.pop %v1383
    %v1390 = vmul.f32 %v1379, %v1389
    %v1391 = vrcp.pop %v1384
    %v1392 = vmul.f32 %v1380, %v1391
    %v1393 = vrsqrt.pop %v1386
    %v1394 = vmul.f32 %v1386, %v1393
    %vm1395 = vcmp.eq.f32.partialorder %v1386, inf
    %v1396 = vsel %vm1395, %v1386, %v1394
    %vm1397 = vcmp.eq.f32.partialorder %v1386, 0.0
    %v1398 = vand.u32 %v1386, 2147483648
    %v1399 = vsel %vm1397, %v1398, %v1396
    %v1400 = vrsqrt.pop %v1388
    %v1401 = vmul.f32 %v1388, %v1400
    %vm1402 = vcmp.eq.f32.partialorder %v1388, inf
    %v1403 = vsel %vm1402, %v1388, %v1401
    %vm1404 = vcmp.eq.f32.partialorder %v1388, 0.0
    %v1405 = vand.u32 %v1388, 2147483648
    %v1406 = vsel %vm1404, %v1405, %v1403
    %v1407 = vrsqrt.pop %v1390
    %v1408 = vmul.f32 %v1390, %v1407
    %vm1409 = vcmp.eq.f32.partialorder %v1390, inf
    %v1410 = vsel %vm1409, %v1390, %v1408
    %vm1411 = vcmp.eq.f32.partialorder %v1390, 0.0
    %v1412 = vand.u32 %v1390, 2147483648
    %v1413 = vsel %vm1411, %v1412, %v1410
    %v1414 = vrsqrt.pop %v1392
    %v1415 = vmul.f32 %v1392, %v1414
    %vm1416 = vcmp.eq.f32.partialorder %v1392, inf
    %v1417 = vsel %vm1416, %v1392, %v1415
    %vm1418 = vcmp.eq.f32.partialorder %v1392, 0.0
    %v1419 = vand.u32 %v1392, 2147483648
    %v1420 = vsel %vm1418, %v1419, %v1417
    %1422 = vset.pattern.permute.xlu0 0
    %1423 = vperm.xlu0 %1422, %v1399
    %v1424 = vpop.permute.xlu0 %1423
    %1427 = vset.pattern.permute.xlu0 0
    %1428 = vperm.xlu0 %1427, %v1406
    %v1429 = vpop.permute.xlu0 %1428
    %1432 = vset.pattern.permute.xlu0 0
    %1433 = vperm.xlu0 %1432, %v1413
    %v1434 = vpop.permute.xlu0 %1433
    %1437 = vset.pattern.permute.xlu0 0
    %1438 = vperm.xlu0 %1437, %v1420
    %v1439 = vpop.permute.xlu0 %1438
    %v1441 = vmul.f32 %v1310, %v1424
    %v1442 = vmul.f32 %v1313, %v1429
    %v1443 = vmul.f32 %v1318, %v1434
    %v1444 = vmul.f32 %v1321, %v1439
    %1446 = vset.pattern.permute.xlu0 0
    %1447 = vperm.xlu0 %1446, %v1353
    %v1448 = vpop.permute.xlu0 %1447
    %1451 = vset.pattern.permute.xlu0 0
    %1452 = vperm.xlu0 %1451, %v1354
    %v1453 = vpop.permute.xlu0 %1452
    %1456 = vset.pattern.permute.xlu0 0
    %1457 = vperm.xlu0 %1456, %v1355
    %v1458 = vpop.permute.xlu0 %1457
    %1461 = vset.pattern.permute.xlu0 0
    %1462 = vperm.xlu0 %1461, %v1356
    %v1463 = vpop.permute.xlu0 %1462
    %v1465 = vsel %vm216, %v1448, %v1441
    %v1466 = vsel %vm216, %v1453, %v1442
    %v1467 = vsel %vm216, %v1458, %v1443
    %v1468 = vsel %vm216, %v1463, %v1444
    %s1469 = scalar_lea.vmem [#allocation9], 192
    %v1470 = vld [vmem:[%s1469] sm:$0xf]
    %v1471 = vld [vmem:[%s1469 + $0x4] sm:$0xf]
    %v1472 = vld [vmem:[%s1469 + $0x8] sm:$0xf]
    %v1473 = vld [vmem:[%s1469 + $0xc] sm:$0xf]
    %v1474 = vld [vmem:[%s1469 + $0x10] sm:$0xf]
    %v1475 = vld [vmem:[%s1469 + $0x14] sm:$0xf]
    %v1476 = vld [vmem:[%s1469 + $0x18] sm:$0xf]
    %v1477 = vld [vmem:[%s1469 + $0x1c] sm:$0xf]
    %v1478 = vld [vmem:[%s1469 + $0x20] sm:$0xf]
    %v1479 = vld [vmem:[%s1469 + $0x24] sm:$0xf]
    %v1480 = vld [vmem:[%s1469 + $0x28] sm:$0xf]
    %v1481 = vld [vmem:[%s1469 + $0x2c] sm:$0xf]
    %v1482 = vld [vmem:[%s1469 + $0x30] sm:$0xf]
    %v1483 = vld [vmem:[%s1469 + $0x34] sm:$0xf]
    %v1484 = vld [vmem:[%s1469 + $0x38] sm:$0xf]
    %v1485 = vld [vmem:[%s1469 + $0x3c] sm:$0xf]
    %s1486 = scalar_lea.vmem %s4, 3
    %v1487 = vld [vmem:[%s1486] sm:$0x1]
    %s1488 = sld [smem:[#allocation2 + $0x5]]
    %v1489 = vmax.f32 %v1465, 0.0
    %v1490 = vmax.f32 %v1466, 0.0
    %v1491 = vmax.f32 %v1467, 0.0
    %v1492 = vmax.f32 %v1468, 0.0
    %v1493 = vpack.c.bf16 %v1490, %v1489
    %v1494 = vpack.c.bf16 %v1492, %v1491
    %v1496 = vlaneseq
    %v1497 = vshrl.u32 %v1496, 7
    %v1498 = vsub.s32 0, %v1497
    %v1499 = vrot.slane %v1487, %v1498
    %v1517 = vunpack.c.l.b16 %v1470
    %v1518 = vunpack.c.l.b16 %v1471
    %v1519 = vunpack.c.l.b16 %v1472
    %v1520 = vunpack.c.l.b16 %v1473
    %v1521 = vunpack.c.l.b16 %v1474
    %v1522 = vunpack.c.l.b16 %v1475
    %v1523 = vunpack.c.l.b16 %v1476
    %v1524 = vunpack.c.l.b16 %v1477
    %v1525 = vunpack.c.l.b16 %v1478
    %v1526 = vunpack.c.l.b16 %v1479
    %v1527 = vunpack.c.l.b16 %v1480
    %v1528 = vunpack.c.l.b16 %v1481
    %v1529 = vunpack.c.l.b16 %v1482
    %v1530 = vunpack.c.l.b16 %v1483
    %v1531 = vunpack.c.l.b16 %v1484
    %v1532 = vunpack.c.l.b16 %v1485
    %v1533 = vpack.c.b16 %v1518, %v1517
    %v1534 = vpack.c.b16 %v1520, %v1519
    %v1535 = vpack.c.b16 %v1522, %v1521
    %v1536 = vpack.c.b16 %v1524, %v1523
    %v1537 = vpack.c.b16 %v1526, %v1525
    %v1538 = vpack.c.b16 %v1528, %v1527
    %v1539 = vpack.c.b16 %v1530, %v1529
    %v1540 = vpack.c.b16 %v1532, %v1531
    %1549 = vmatprep.subr.bf16.mxu0 0
    %1550 = vmatpush1.bf16.msra.mxu0 %v1533
    %1551 = vmatprep.subr.bf16.mxu0 0
    %1552 = vmatpush1.bf16.msra.mxu0 %v1534
    %1553 = vmatprep.subr.bf16.mxu0 0
    %1554 = vmatpush1.bf16.msra.mxu0 %v1535
    %1555 = vmatprep.subr.bf16.mxu0 0
    %1556 = vmatpush1.bf16.msra.mxu0 %v1536
    %1557 = vmatprep.subr.bf16.mxu0 0
    %1558 = vmatpush1.bf16.msra.mxu0 %v1537
    %1559 = vmatprep.subr.bf16.mxu0 0
    %1560 = vmatpush1.bf16.msra.mxu0 %v1538
    %1561 = vmatprep.subr.bf16.mxu0 0
    %1562 = vmatpush1.bf16.msra.mxu0 %v1539
    %1563 = vmatprep.subr.bf16.mxu0 0
    %1564 = vmatpush1.bf16.msra.mxu0 %v1540
    %1565 = vmatprep.subr.bf16.mxu0 0
    %1566 = vmatpush1.bf16.msra.mxu0 0
    %1567 = vmatprep.subr.bf16.mxu0 0
    %1568 = vmatpush1.bf16.msra.mxu0 0
    %1569 = vmatprep.subr.bf16.mxu0 0
    %1570 = vmatpush1.bf16.msra.mxu0 0
    %1571 = vmatprep.subr.bf16.mxu0 0
    %1572 = vmatpush1.bf16.msra.mxu0 0
    %1573 = vmatprep.subr.bf16.mxu0 0
    %1574 = vmatpush1.bf16.msra.mxu0 0
    %1575 = vmatprep.subr.bf16.mxu0 0
    %1576 = vmatpush1.bf16.msra.mxu0 0
    %1577 = vmatprep.subr.bf16.mxu0 0
    %1578 = vmatpush1.bf16.msra.mxu0 0
    %1579 = vmatprep.subr.bf16.mxu0 0
    %1580 = vmatpush1.bf16.msra.mxu0 0
    %1581 = vmatprep.mubr.bf16.mxu0 0
    %1582 = vmatmul.mubr.bf16.gmra.mrb[0].mxu0 %v1493
    %v1583 = vpop.f32.mrb[0].mxu0
    %v1584 = vadd.f32 %v1499, %v1583
    %v1585 = vpop.f32.mrb[0].mxu0
    %v1586 = vpop.f32.mrb[0].mxu0
    %v1587 = vadd.f32 %v1499, %v1586
    %v1588 = vpop.f32.mrb[0].mxu0
    %1589 = vmatprep.mubr.bf16.mxu0 0
    %1590 = vmatmul.mubr.bf16.gmra.mrb[0].mxu0 %v1494
    %v1591 = vpop.f32.mrb[0].mxu0
    %v1592 = vadd.f32 %v1499, %v1591
    %v1593 = vpop.f32.mrb[0].mxu0
    %v1594 = vpop.f32.mrb[0].mxu0
    %v1595 = vadd.f32 %v1499, %v1594
    %v1596 = vpop.f32.mrb[0].mxu0
    %1597 = vdwg.mxu0
    %v1598 = vxor.u32 %v1584, 2147483648
    %v1599 = vxor.u32 %v1587, 2147483648
    %v1600 = vxor.u32 %v1592, 2147483648
    %v1601 = vxor.u32 %v1595, 2147483648
    %v1602 = vmul.f32 %v1598, 1.442695
    %v1603 = vpow.pop %v1602
    %v1604 = vmul.f32 %v1599, 1.442695
    %v1605 = vpow.pop %v1604
    %v1606 = vmul.f32 %v1600, 1.442695
    %v1607 = vpow.pop %v1606
    %v1608 = vmul.f32 %v1601, 1.442695
    %v1609 = vpow.pop %v1608
    %v1610 = vadd.f32 %v1603, 1.0
    %v1611 = vadd.f32 %v1605, 1.0
    %v1612 = vadd.f32 %v1607, 1.0
    %v1613 = vadd.f32 %v1609, 1.0
    %v1614 = vrcp.pop %v1610
    %v1615 = vmul.f32 1.0, %v1614
    %v1616 = vrcp.pop %v1611
    %v1617 = vmul.f32 1.0, %v1616
    %v1618 = vrcp.pop %v1612
    %v1619 = vmul.f32 1.0, %v1618
    %v1620 = vrcp.pop %v1613
    %v1621 = vmul.f32 1.0, %v1620
    %v1622 = vstv %s1488
    %v1623 = vmul.f32 %v1615, %v1622
    %v1624 = vmul.f32 %v1617, %v1622
    %v1625 = vmul.f32 %v1619, %v1622
    %v1626 = vmul.f32 %v1621, %v1622
    %v1627 = vadd.f32 %v1623, 1.1
    %v1628 = vadd.f32 %v1624, 1.1
    %v1629 = vadd.f32 %v1625, 1.1
    %v1630 = vadd.f32 %v1626, 1.1
    %v1631 = vmul.f32 %v1584, %v1584
    %v1632 = vmul.f32 %v1587, %v1587
    %v1633 = vmul.f32 %v1592, %v1592
    %v1634 = vmul.f32 %v1595, %v1595
    %1635 = vadd.xlane.f32.xlu0 %v1631
    %v1636 = vpop.xlane.xlu0 %1635
    %1637 = vadd.xlane.f32.xlu0 %v1632
    %v1638 = vpop.xlane.xlu0 %1637
    %1639 = vadd.xlane.f32.xlu0 %v1633
    %v1640 = vpop.xlane.xlu0 %1639
    %1641 = vadd.xlane.f32.xlu0 %v1634
    %v1642 = vpop.xlane.xlu0 %1641
    %v1643 = vsub.f32 %v1636, %v1631
    %v1644 = vsub.f32 %v1638, %v1632
    %v1645 = vsub.f32 %v1640, %v1633
    %v1646 = vsub.f32 %v1642, %v1634
    %v1647 = vmul.f32 %v1627, %v1627
    %v1648 = vmul.f32 %v1628, %v1628
    %v1649 = vmul.f32 %v1629, %v1629
    %v1650 = vmul.f32 %v1630, %v1630
    %v1651 = vsub.f32 %v1647, 1.0
    %v1652 = vsub.f32 %v1648, 1.0
    %v1653 = vsub.f32 %v1649, 1.0
    %v1654 = vsub.f32 %v1650, 1.0
    %v1655 = vmax.f32 %v1643, 1e-08
    %v1656 = vmax.f32 %v1644, 1e-08
    %v1657 = vmax.f32 %v1645, 1e-08
    %v1658 = vmax.f32 %v1646, 1e-08
    %v1659 = vrcp.pop %v1655
    %v1660 = vmul.f32 %v1651, %v1659
    %v1661 = vrcp.pop %v1656
    %v1662 = vmul.f32 %v1652, %v1661
    %v1663 = vrcp.pop %v1657
    %v1664 = vmul.f32 %v1653, %v1663
    %v1665 = vrcp.pop %v1658
    %v1666 = vmul.f32 %v1654, %v1665
    %v1667 = vrsqrt.pop %v1660
    %v1668 = vmul.f32 %v1660, %v1667
    %vm1669 = vcmp.eq.f32.partialorder %v1660, inf
    %v1670 = vsel %vm1669, %v1660, %v1668
    %vm1671 = vcmp.eq.f32.partialorder %v1660, 0.0
    %v1672 = vand.u32 %v1660, 2147483648
    %v1673 = vsel %vm1671, %v1672, %v1670
    %v1674 = vrsqrt.pop %v1662
    %v1675 = vmul.f32 %v1662, %v1674
    %vm1676 = vcmp.eq.f32.partialorder %v1662, inf
    %v1677 = vsel %vm1676, %v1662, %v1675
    %vm1678 = vcmp.eq.f32.partialorder %v1662, 0.0
    %v1679 = vand.u32 %v1662, 2147483648
    %v1680 = vsel %vm1678, %v1679, %v1677
    %v1681 = vrsqrt.pop %v1664
    %v1682 = vmul.f32 %v1664, %v1681
    %vm1683 = vcmp.eq.f32.partialorder %v1664, inf
    %v1684 = vsel %vm1683, %v1664, %v1682
    %vm1685 = vcmp.eq.f32.partialorder %v1664, 0.0
    %v1686 = vand.u32 %v1664, 2147483648
    %v1687 = vsel %vm1685, %v1686, %v1684
    %v1688 = vrsqrt.pop %v1666
    %v1689 = vmul.f32 %v1666, %v1688
    %vm1690 = vcmp.eq.f32.partialorder %v1666, inf
    %v1691 = vsel %vm1690, %v1666, %v1689
    %vm1692 = vcmp.eq.f32.partialorder %v1666, 0.0
    %v1693 = vand.u32 %v1666, 2147483648
    %v1694 = vsel %vm1692, %v1693, %v1691
    %1696 = vset.pattern.permute.xlu0 0
    %1697 = vperm.xlu0 %1696, %v1673
    %v1698 = vpop.permute.xlu0 %1697
    %1701 = vset.pattern.permute.xlu0 0
    %1702 = vperm.xlu0 %1701, %v1680
    %v1703 = vpop.permute.xlu0 %1702
    %1706 = vset.pattern.permute.xlu0 0
    %1707 = vperm.xlu0 %1706, %v1687
    %v1708 = vpop.permute.xlu0 %1707
    %1711 = vset.pattern.permute.xlu0 0
    %1712 = vperm.xlu0 %1711, %v1694
    %v1713 = vpop.permute.xlu0 %1712
    %v1715 = vmul.f32 %v1584, %v1698
    %v1716 = vmul.f32 %v1587, %v1703
    %v1717 = vmul.f32 %v1592, %v1708
    %v1718 = vmul.f32 %v1595, %v1713
    %1720 = vset.pattern.permute.xlu0 0
    %1721 = vperm.xlu0 %1720, %v1627
    %v1722 = vpop.permute.xlu0 %1721
    %1725 = vset.pattern.permute.xlu0 0
    %1726 = vperm.xlu0 %1725, %v1628
    %v1727 = vpop.permute.xlu0 %1726
    %1730 = vset.pattern.permute.xlu0 0
    %1731 = vperm.xlu0 %1730, %v1629
    %v1732 = vpop.permute.xlu0 %1731
    %1735 = vset.pattern.permute.xlu0 0
    %1736 = vperm.xlu0 %1735, %v1630
    %v1737 = vpop.permute.xlu0 %1736
    %v1739 = vsel %vm216, %v1722, %v1715
    %v1740 = vsel %vm216, %v1727, %v1716
    %v1741 = vsel %vm216, %v1732, %v1717
    %v1742 = vsel %vm216, %v1737, %v1718
    %v1743 = vpack.c.bf16 %v1740, %v1739
    %v1744 = vpack.c.bf16 %v1742, %v1741
    %1745 = vmatprep.subr.bf16.mxu0 0
    %1746 = vmatpush1.bf16.msra.mxu0 %v1743
    %1747 = vmatprep.subr.bf16.mxu0 0
    %1748 = vmatpush1.bf16.msra.mxu0 %v1744
    %1749 = vmatprep.subr.bf16.mxu0 0
    %1750 = vmatpush1.bf16.msra.mxu0 0
    %1751 = vmatprep.subr.bf16.mxu0 0
    %1752 = vmatpush1.bf16.msra.mxu0 0
    %1753 = vmatprep.subr.bf16.mxu0 0
    %1754 = vmatpush1.bf16.msra.mxu0 0
    %1755 = vmatprep.subr.bf16.mxu0 0
    %1756 = vmatpush1.bf16.msra.mxu0 0
    %1757 = vmatprep.subr.bf16.mxu0 0
    %1758 = vmatpush1.bf16.msra.mxu0 0
    %1759 = vmatprep.subr.bf16.mxu0 0
    %1760 = vmatpush1.bf16.msra.mxu0 0
    %1761 = vmatprep.subr.bf16.mxu0 0
    %1762 = vmatpush1.bf16.msra.mxu0 0
    %1763 = vmatprep.subr.bf16.mxu0 0
    %1764 = vmatpush1.bf16.msra.mxu0 0
    %1765 = vmatprep.subr.bf16.mxu0 0
    %1766 = vmatpush1.bf16.msra.mxu0 0
    %1767 = vmatprep.subr.bf16.mxu0 0
    %1768 = vmatpush1.bf16.msra.mxu0 0
    %1769 = vmatprep.subr.bf16.mxu0 0
    %1770 = vmatpush1.bf16.msra.mxu0 0
    %1771 = vmatprep.subr.bf16.mxu0 0
    %1772 = vmatpush1.bf16.msra.mxu0 0
    %1773 = vmatprep.subr.bf16.mxu0 0
    %1774 = vmatpush1.bf16.msra.mxu0 0
    %1775 = vmatprep.subr.bf16.mxu0 0
    %1776 = vmatpush1.bf16.msra.mxu0 0
    %1777 = vmatprep.mubr.bf16.mxu0 0
    %1778 = vmatmul.mubr.bf16.gmra.mrb[0].mxu0 %v495
    %v1779 = vpop.f32.mrb[0].mxu0
    %v1780 = vadd.f32 0.0, %v1779
    %v1781 = vpop.f32.mrb[0].mxu0
    %v1782 = vpop.f32.mrb[0].mxu0
    %v1783 = vadd.f32 0.0, %v1782
    %v1784 = vpop.f32.mrb[0].mxu0
    %1785 = vmatprep.mubr.bf16.mxu0 0
    %1786 = vmatmul.mubr.bf16.gmra.mrb[0].mxu0 %v498
    %v1787 = vpop.f32.mrb[0].mxu0
    %v1788 = vadd.f32 0.0, %v1787
    %v1789 = vpop.f32.mrb[0].mxu0
    %v1790 = vpop.f32.mrb[0].mxu0
    %v1791 = vadd.f32 0.0, %v1790
    %v1792 = vpop.f32.mrb[0].mxu0
    %1793 = vdwg.mxu0
    %v1794 = vmul.f32 %v1780, %v1780
    %v1795 = vmul.f32 %v1783, %v1783
    %v1796 = vmul.f32 %v1788, %v1788
    %v1797 = vmul.f32 %v1791, %v1791
    %1798 = vadd.xlane.f32.xlu0 %v1794
    %v1799 = vpop.xlane.xlu0 %1798
    %1800 = vadd.xlane.f32.xlu0 %v1795
    %v1801 = vpop.xlane.xlu0 %1800
    %1802 = vadd.xlane.f32.xlu0 %v1796
    %v1803 = vpop.xlane.xlu0 %1802
    %1804 = vadd.xlane.f32.xlu0 %v1797
    %v1805 = vpop.xlane.xlu0 %1804
    %v1806 = vmul.f32 %v1780, 2.0
    %v1807 = vmul.f32 %v1783, 2.0
    %v1808 = vmul.f32 %v1788, 2.0
    %v1809 = vmul.f32 %v1791, 2.0
    %v1810 = vmul.f32 %v1806, %v1780
    %v1811 = vmul.f32 %v1807, %v1783
    %v1812 = vmul.f32 %v1808, %v1788
    %v1813 = vmul.f32 %v1809, %v1791
    %v1814 = vsub.f32 %v1799, %v1810
    %v1815 = vsub.f32 %v1801, %v1811
    %v1816 = vsub.f32 %v1803, %v1812
    %v1817 = vsub.f32 %v1805, %v1813
    %v1818 = vand.u32 2147483647, %v1814
    %v1819 = vand.u32 2147483647, %v1815
    %v1820 = vand.u32 2147483647, %v1816
    %v1821 = vand.u32 2147483647, %v1817
    %v1822 = vmax.f32 %v1818, 1e-08
    %v1823 = vmax.f32 %v1819, 1e-08
    %v1824 = vmax.f32 %v1820, 1e-08
    %v1825 = vmax.f32 %v1821, 1e-08
    %v1826 = vrsqrt.pop %v1822
    %v1827 = vrsqrt.pop %v1823
    %v1828 = vrsqrt.pop %v1824
    %v1829 = vrsqrt.pop %v1825
    %1831 = vset.pattern.permute.xlu0 0
    %1832 = vperm.xlu0 %1831, %v1826
    %v1833 = vpop.permute.xlu0 %1832
    %1836 = vset.pattern.permute.xlu0 0
    %1837 = vperm.xlu0 %1836, %v1827
    %v1838 = vpop.permute.xlu0 %1837
    %1841 = vset.pattern.permute.xlu0 0
    %1842 = vperm.xlu0 %1841, %v1828
    %v1843 = vpop.permute.xlu0 %1842
    %1846 = vset.pattern.permute.xlu0 0
    %1847 = vperm.xlu0 %1846, %v1829
    %v1848 = vpop.permute.xlu0 %1847
    %v1850 = vmul.f32 %v1780, %v1833
    %v1851 = vmul.f32 %v1783, %v1838
    %v1852 = vmul.f32 %v1788, %v1843
    %v1853 = vmul.f32 %v1791, %v1848
    %vm1854 = vcmp.ge.s32.totalorder %v75, 1
    %vm1855 = vcmp.le.s32.totalorder %v75, 10
    %vm1856 = vmand %vm1854, %vm1855
    %v1857 = vstv %s78
    %v1858 = vmul.f32 %v1850, %v1857
    %v1859 = vmul.f32 %v1851, %v1857
    %v1860 = vmul.f32 %v1852, %v1857
    %v1861 = vmul.f32 %v1853, %v1857
    %v1862 = vsel %vm1856, 1, 0
    %vm1863 = vcmp.eq.s32.totalorder %v1862, 1
    %v1864 = vsel %vm1863, %v1858, -1e+30
    %v1865 = vsel %vm1863, %v1859, -1e+30
    %v1866 = vsel %vm1863, %v1860, -1e+30
    %v1867 = vsel %vm1863, %v1861, -1e+30
    %1868 = vmax.xlane.f32.xlu0 %v1864
    %v1869 = vpop.xlane.xlu0 %1868
    %1870 = vmax.xlane.f32.xlu0 %v1865
    %v1871 = vpop.xlane.xlu0 %1870
    %1872 = vmax.xlane.f32.xlu0 %v1866
    %v1873 = vpop.xlane.xlu0 %1872
    %1874 = vmax.xlane.f32.xlu0 %v1867
    %v1875 = vpop.xlane.xlu0 %1874
    %v1876 = vsub.f32 %v1864, %v1869
    %v1877 = vsub.f32 %v1865, %v1871
    %v1878 = vsub.f32 %v1866, %v1873
    %v1879 = vsub.f32 %v1867, %v1875
    %v1880 = vmul.f32 %v1876, 1.442695
    %v1881 = vpow.pop %v1880
    %v1882 = vmul.f32 %v1877, 1.442695
    %v1883 = vpow.pop %v1882
    %v1884 = vmul.f32 %v1878, 1.442695
    %v1885 = vpow.pop %v1884
    %v1886 = vmul.f32 %v1879, 1.442695
    %v1887 = vpow.pop %v1886
    %1888 = vadd.xlane.f32.xlu0 %v1881
    %v1889 = vpop.xlane.xlu0 %1888
    %1890 = vadd.xlane.f32.xlu0 %v1883
    %v1891 = vpop.xlane.xlu0 %1890
    %1892 = vadd.xlane.f32.xlu0 %v1885
    %v1893 = vpop.xlane.xlu0 %1892
    %1894 = vadd.xlane.f32.xlu0 %v1887
    %v1895 = vpop.xlane.xlu0 %1894
    %v1896 = vrcp.pop %v1889
    %v1897 = vmul.f32 %v1881, %v1896
    %v1898 = vrcp.pop %v1891
    %v1899 = vmul.f32 %v1883, %v1898
    %v1900 = vrcp.pop %v1893
    %v1901 = vmul.f32 %v1885, %v1900
    %v1902 = vrcp.pop %v1895
    %v1903 = vmul.f32 %v1887, %v1902
    %1904 = vst [vmem:[#allocation10 + $0x40] sm:$0xff] %v1897
    %1905 = vst [vmem:[#allocation10 + $0x48] sm:$0xff] %v1899
    %1906 = vst [vmem:[#allocation10 + $0x50] sm:$0xff] %v1901
    %1907 = vst [vmem:[#allocation10 + $0x58] sm:$0xff] %v1903
    %v1908 = vlaneseq
    %v1909 = vshrl.u32 %v1908, 7
    %v1910 = vadd.s32 %v1909, 8
    %v1911 = vadd.s32 %v1909, 1
    %v1912 = vadd.s32 %v1910, 1
    %vm1913 = vcmp.eq.s32.totalorder %v75, %v1911
    %vm1914 = vcmp.eq.s32.totalorder %v75, %v1912
    %v1915 = vsel %vm1913, 1, 0
    %v1916 = vsel %vm1914, 1, 0
    %v1917 = vcvt.s32.f32 %v1915
    %v1918 = vcvt.s32.f32 %v1916
    %1919 = vmatprep.subr.mxu0 0.0
    %1920 = vmatpush1.xpose.msra.mxu0 %v1897
    %1921 = vmatprep.subr.mxu0 0.0
    %1922 = vmatpush1.xpose.msra.mxu0 %v1899
    %1923 = vmatprep.subr.mxu0 0.0
    %1924 = vmatpush1.xpose.msra.mxu0 %v1901
    %1925 = vmatprep.subr.mxu0 0.0
    %1926 = vmatpush1.xpose.msra.mxu0 %v1903
    %1927 = vmatprep.subr.mxu0 0.0
    %1928 = vmatpush1.xpose.msra.mxu0 0.0
    %1929 = vmatprep.subr.mxu0 0.0
    %1930 = vmatpush1.xpose.msra.mxu0 0.0
    %1931 = vmatprep.subr.mxu0 0.0
    %1932 = vmatpush1.xpose.msra.mxu0 0.0
    %1933 = vmatprep.subr.mxu0 0.0
    %1934 = vmatpush1.xpose.msra.mxu0 0.0
    %1935 = vmatprep.subr.mxu0 0.0
    %1936 = vmatpush1.xpose.msra.mxu0 0.0
    %1937 = vmatprep.subr.mxu0 0.0
    %1938 = vmatpush1.xpose.msra.mxu0 0.0
    %1939 = vmatprep.subr.mxu0 0.0
    %1940 = vmatpush1.xpose.msra.mxu0 0.0
    %1941 = vmatprep.subr.mxu0 0.0
    %1942 = vmatpush1.xpose.msra.mxu0 0.0
    %1943 = vmatprep.subr.mxu0 0.0
    %1944 = vmatpush1.xpose.msra.mxu0 0.0
    %1945 = vmatprep.subr.mxu0 0.0
    %1946 = vmatpush1.xpose.msra.mxu0 0.0
    %1947 = vmatprep.subr.mxu0 0.0
    %1948 = vmatpush1.xpose.msra.mxu0 0.0
    %1949 = vmatprep.subr.mxu0 0.0
    %1950 = vmatpush1.xpose.msra.mxu0 0.0
    %1951 = vmatprep.subr.mxu0 0.0
    %1952 = vmatpush1.xpose.msra.mxu0 0.0
    %1953 = vmatprep.subr.mxu0 0.0
    %1954 = vmatpush1.xpose.msra.mxu0 0.0
    %1955 = vmatprep.subr.mxu0 0.0
    %1956 = vmatpush1.xpose.msra.mxu0 0.0
    %1957 = vmatprep.subr.mxu0 0.0
    %1958 = vmatpush1.xpose.msra.mxu0 0.0
    %1959 = vmatprep.subr.mxu0 0.0
    %1960 = vmatpush1.xpose.msra.mxu0 0.0
    %1961 = vmatprep.subr.mxu0 0.0
    %1962 = vmatpush1.xpose.msra.mxu0 0.0
    %1963 = vmatprep.subr.mxu0 0.0
    %1964 = vmatpush1.xpose.msra.mxu0 0.0
    %1965 = vmatprep.subr.mxu0 0.0
    %1966 = vmatpush1.xpose.msra.mxu0 0.0
    %1967 = vmatprep.subr.mxu0 0.0
    %1968 = vmatpush1.xpose.msra.mxu0 0.0
    %1969 = vmatprep.subr.mxu0 0.0
    %1970 = vmatpush1.xpose.msra.mxu0 0.0
    %1971 = vmatprep.subr.mxu0 0.0
    %1972 = vmatpush1.xpose.msra.mxu0 0.0
    %1973 = vmatprep.subr.mxu0 0.0
    %1974 = vmatpush1.xpose.msra.mxu0 0.0
    %1975 = vmatprep.subr.mxu0 0.0
    %1976 = vmatpush1.xpose.msra.mxu0 0.0
    %1977 = vmatprep.subr.mxu0 0.0
    %1978 = vmatpush1.xpose.msra.mxu0 0.0
    %1979 = vmatprep.subr.mxu0 0.0
    %1980 = vmatpush1.xpose.msra.mxu0 0.0
    %1981 = vmatprep.subr.mxu0 0.0
    %1982 = vmatpush1.xpose.msra.mxu0 0.0
    %1983 = vmatprep.mubr.f32.mxu0 0.0
    %1984 = vmatmul.mubr.f32.gmra.mrb[0].mxu0 %v1917
    %v1985 = vpop.f32.mrb[0].mxu0
    %v1986 = vadd.f32 0.0, %v1985
    %v1987 = vpop.f32.mrb[0].mxu0
    %1988 = vmatprep.mubr.f32.mxu0 0.0
    %1989 = vmatmul.mubr.f32.gmra.mrb[0].mxu0 %v1918
    %v1990 = vpop.f32.mrb[0].mxu0
    %v1991 = vadd.f32 0.0, %v1990
    %v1992 = vpop.f32.mrb[0].mxu0
    %1993 = vdwg.mxu0
    %v1995 = vsel %vm493, %v1986, 0
    %v1998 = vsel %vm493, %v1991, 0
    %2000 = vmatprep.subr.mxu0 0.0
    %2001 = vmatpush1.msra.mxu0 %v1188
    %2002 = vmatprep.subr.mxu0 0.0
    %2003 = vmatpush1.msra.mxu0 %v1190
    %2004 = vmatprep.subr.mxu0 0.0
    %2005 = vmatpush1.msra.mxu0 %v1192
    %2006 = vmatprep.subr.mxu0 0.0
    %2007 = vmatpush1.msra.mxu0 %v1194
    %2008 = vmatprep.subr.mxu0 0.0
    %2009 = vmatpush1.msra.mxu0 0.0
    %2010 = vmatprep.subr.mxu0 0.0
    %2011 = vmatpush1.msra.mxu0 0.0
    %2012 = vmatprep.subr.mxu0 0.0
    %2013 = vmatpush1.msra.mxu0 0.0
    %2014 = vmatprep.subr.mxu0 0.0
    %2015 = vmatpush1.msra.mxu0 0.0
    %2016 = vmatprep.subr.mxu0 0.0
    %2017 = vmatpush1.msra.mxu0 0.0
    %2018 = vmatprep.subr.mxu0 0.0
    %2019 = vmatpush1.msra.mxu0 0.0
    %2020 = vmatprep.subr.mxu0 0.0
    %2021 = vmatpush1.msra.mxu0 0.0
    %2022 = vmatprep.subr.mxu0 0.0
    %2023 = vmatpush1.msra.mxu0 0.0
    %2024 = vmatprep.subr.mxu0 0.0
    %2025 = vmatpush1.msra.mxu0 0.0
    %2026 = vmatprep.subr.mxu0 0.0
    %2027 = vmatpush1.msra.mxu0 0.0
    %2028 = vmatprep.subr.mxu0 0.0
    %2029 = vmatpush1.msra.mxu0 0.0
    %2030 = vmatprep.subr.mxu0 0.0
    %2031 = vmatpush1.msra.mxu0 0.0
    %2032 = vmatprep.subr.mxu0 0.0
    %2033 = vmatpush1.msra.mxu0 0.0
    %2034 = vmatprep.subr.mxu0 0.0
    %2035 = vmatpush1.msra.mxu0 0.0
    %2036 = vmatprep.subr.mxu0 0.0
    %2037 = vmatpush1.msra.mxu0 0.0
    %2038 = vmatprep.subr.mxu0 0.0
    %2039 = vmatpush1.msra.mxu0 0.0
    %2040 = vmatprep.subr.mxu0 0.0
    %2041 = vmatpush1.msra.mxu0 0.0
    %2042 = vmatprep.subr.mxu0 0.0
    %2043 = vmatpush1.msra.mxu0 0.0
    %2044 = vmatprep.subr.mxu0 0.0
    %2045 = vmatpush1.msra.mxu0 0.0
    %2046 = vmatprep.subr.mxu0 0.0
    %2047 = vmatpush1.msra.mxu0 0.0
    %2048 = vmatprep.subr.mxu0 0.0
    %2049 = vmatpush1.msra.mxu0 0.0
    %2050 = vmatprep.subr.mxu0 0.0
    %2051 = vmatpush1.msra.mxu0 0.0
    %2052 = vmatprep.subr.mxu0 0.0
    %2053 = vmatpush1.msra.mxu0 0.0
    %2054 = vmatprep.subr.mxu0 0.0
    %2055 = vmatpush1.msra.mxu0 0.0
    %2056 = vmatprep.subr.mxu0 0.0
    %2057 = vmatpush1.msra.mxu0 0.0
    %2058 = vmatprep.subr.mxu0 0.0
    %2059 = vmatpush1.msra.mxu0 0.0
    %2060 = vmatprep.subr.mxu0 0.0
    %2061 = vmatpush1.msra.mxu0 0.0
    %2062 = vmatprep.subr.mxu0 0.0
    %2063 = vmatpush1.msra.mxu0 0.0
    %2064 = vmatprep.mubr.f32.mxu0 0.0
    %2065 = vmatmul.mubr.f32.gmra.mrb[0].mxu0 %v1995
    %v2066 = vpop.f32.mrb[0].mxu0
    %v2067 = vadd.f32 0.0, %v2066
    %v2068 = vpop.f32.mrb[0].mxu0
    %2069 = vmatprep.mubr.f32.mxu0 0.0
    %2070 = vmatmul.mubr.f32.gmra.mrb[0].mxu0 %v1998
    %v2071 = vpop.f32.mrb[0].mxu0
    %v2072 = vadd.f32 0.0, %v2071
    %v2073 = vpop.f32.mrb[0].mxu0
    %2074 = vdwg.mxu0
    %v2075 = vmul.f32 %v2067, %v2067
    %v2076 = vmul.f32 %v2072, %v2072
    %2077 = vadd.xlane.f32.xlu0 %v2075
    %v2078 = vpop.xlane.xlu0 %2077
    %2079 = vadd.xlane.f32.xlu0 %v2076
    %v2080 = vpop.xlane.xlu0 %2079
    %v2081 = vmul.f32 %v2067, 2.0
    %v2082 = vmul.f32 %v2072, 2.0
    %v2083 = vmul.f32 %v2081, %v2067
    %v2084 = vmul.f32 %v2082, %v2072
    %v2085 = vsub.f32 %v2078, %v2083
    %v2086 = vsub.f32 %v2080, %v2084
    %v2087 = vand.u32 2147483647, %v2085
    %v2088 = vand.u32 2147483647, %v2086
    %v2089 = vmax.f32 %v2087, 1e-08
    %v2090 = vmax.f32 %v2088, 1e-08
    %v2091 = vrsqrt.pop %v2089
    %v2092 = vrsqrt.pop %v2090
    %2094 = vset.pattern.permute.xlu0 0
    %2095 = vperm.xlu0 %2094, %v2091
    %v2096 = vpop.permute.xlu0 %2095
    %2099 = vset.pattern.permute.xlu0 0
    %2100 = vperm.xlu0 %2099, %v2092
    %v2101 = vpop.permute.xlu0 %2100
    %v2103 = vmul.f32 %v2067, %v2096
    %v2104 = vmul.f32 %v2072, %v2101
    %2105 = vst [vmem:[#allocation10 + $0x20] sm:$0xff] %v2103
    %2106 = vst [vmem:[#allocation10 + $0x28] sm:$0xff] %v2104
    %v2108 = vsel %vm493, %v79, 0
    %v2111 = vsel %vm493, %v80, 0
    %v2114 = vsel %vm493, %v81, 0
    %v2117 = vsel %vm493, %v82, 0
    %2119 = vmatprep.subr.mxu0 0.0
    %2120 = vmatpush1.xpose.msra.mxu0 %v1995
    %2121 = vmatprep.subr.mxu0 0.0
    %2122 = vmatpush1.xpose.msra.mxu0 %v1998
    %2123 = vmatprep.subr.mxu0 0.0
    %2124 = vmatpush1.xpose.msra.mxu0 0.0
    %2125 = vmatprep.subr.mxu0 0.0
    %2126 = vmatpush1.xpose.msra.mxu0 0.0
    %2127 = vmatprep.subr.mxu0 0.0
    %2128 = vmatpush1.xpose.msra.mxu0 0.0
    %2129 = vmatprep.subr.mxu0 0.0
    %2130 = vmatpush1.xpose.msra.mxu0 0.0
    %2131 = vmatprep.subr.mxu0 0.0
    %2132 = vmatpush1.xpose.msra.mxu0 0.0
    %2133 = vmatprep.subr.mxu0 0.0
    %2134 = vmatpush1.xpose.msra.mxu0 0.0
    %2135 = vmatprep.subr.mxu0 0.0
    %2136 = vmatpush1.xpose.msra.mxu0 0.0
    %2137 = vmatprep.subr.mxu0 0.0
    %2138 = vmatpush1.xpose.msra.mxu0 0.0
    %2139 = vmatprep.subr.mxu0 0.0
    %2140 = vmatpush1.xpose.msra.mxu0 0.0
    %2141 = vmatprep.subr.mxu0 0.0
    %2142 = vmatpush1.xpose.msra.mxu0 0.0
    %2143 = vmatprep.subr.mxu0 0.0
    %2144 = vmatpush1.xpose.msra.mxu0 0.0
    %2145 = vmatprep.subr.mxu0 0.0
    %2146 = vmatpush1.xpose.msra.mxu0 0.0
    %2147 = vmatprep.subr.mxu0 0.0
    %2148 = vmatpush1.xpose.msra.mxu0 0.0
    %2149 = vmatprep.subr.mxu0 0.0
    %2150 = vmatpush1.xpose.msra.mxu0 0.0
    %2151 = vmatprep.subr.mxu0 0.0
    %2152 = vmatpush1.xpose.msra.mxu0 0.0
    %2153 = vmatprep.subr.mxu0 0.0
    %2154 = vmatpush1.xpose.msra.mxu0 0.0
    %2155 = vmatprep.subr.mxu0 0.0
    %2156 = vmatpush1.xpose.msra.mxu0 0.0
    %2157 = vmatprep.subr.mxu0 0.0
    %2158 = vmatpush1.xpose.msra.mxu0 0.0
    %2159 = vmatprep.subr.mxu0 0.0
    %2160 = vmatpush1.xpose.msra.mxu0 0.0
    %2161 = vmatprep.subr.mxu0 0.0
    %2162 = vmatpush1.xpose.msra.mxu0 0.0
    %2163 = vmatprep.subr.mxu0 0.0
    %2164 = vmatpush1.xpose.msra.mxu0 0.0
    %2165 = vmatprep.subr.mxu0 0.0
    %2166 = vmatpush1.xpose.msra.mxu0 0.0
    %2167 = vmatprep.subr.mxu0 0.0
    %2168 = vmatpush1.xpose.msra.mxu0 0.0
    %2169 = vmatprep.subr.mxu0 0.0
    %2170 = vmatpush1.xpose.msra.mxu0 0.0
    %2171 = vmatprep.subr.mxu0 0.0
    %2172 = vmatpush1.xpose.msra.mxu0 0.0
    %2173 = vmatprep.subr.mxu0 0.0
    %2174 = vmatpush1.xpose.msra.mxu0 0.0
    %2175 = vmatprep.subr.mxu0 0.0
    %2176 = vmatpush1.xpose.msra.mxu0 0.0
    %2177 = vmatprep.subr.mxu0 0.0
    %2178 = vmatpush1.xpose.msra.mxu0 0.0
    %2179 = vmatprep.subr.mxu0 0.0
    %2180 = vmatpush1.xpose.msra.mxu0 0.0
    %2181 = vmatprep.subr.mxu0 0.0
    %2182 = vmatpush1.xpose.msra.mxu0 0.0
    %2183 = vmatprep.mubr.f32.mxu0 0.0
    %2184 = vmatmul.mubr.f32.gmra.mrb[0].mxu0 %v2108
    %v2185 = vpop.f32.mrb[0].mxu0
    %v2186 = vadd.f32 0.0, %v2185
    %v2187 = vpop.f32.mrb[0].mxu0
    %2188 = vmatprep.mubr.f32.mxu0 0.0
    %2189 = vmatmul.mubr.f32.gmra.mrb[0].mxu0 %v2111
    %v2190 = vpop.f32.mrb[0].mxu0
    %v2191 = vadd.f32 0.0, %v2190
    %v2192 = vpop.f32.mrb[0].mxu0
    %2193 = vmatprep.mubr.f32.mxu0 0.0
    %2194 = vmatmul.mubr.f32.gmra.mrb[0].mxu0 %v2114
    %v2195 = vpop.f32.mrb[0].mxu0
    %v2196 = vadd.f32 0.0, %v2195
    %v2197 = vpop.f32.mrb[0].mxu0
    %2198 = vmatprep.mubr.f32.mxu0 0.0
    %2199 = vmatmul.mubr.f32.gmra.mrb[0].mxu0 %v2117
    %v2200 = vpop.f32.mrb[0].mxu0
    %v2201 = vadd.f32 0.0, %v2200
    %v2202 = vpop.f32.mrb[0].mxu0
    %2203 = vdwg.mxu0
    %2204 = vmatprep.subr.mxu0 0.0
    %2205 = vmatpush1.msra.mxu0 %v2186
    %2206 = vmatprep.subr.mxu0 0.0
    %2207 = vmatpush1.msra.mxu0 %v2191
    %2208 = vmatprep.subr.mxu0 0.0
    %2209 = vmatpush1.msra.mxu0 %v2196
    %2210 = vmatprep.subr.mxu0 0.0
    %2211 = vmatpush1.msra.mxu0 %v2201
    %2212 = vmatprep.subr.mxu0 0.0
    %2213 = vmatpush1.msra.mxu0 0.0
    %2214 = vmatprep.subr.mxu0 0.0
    %2215 = vmatpush1.msra.mxu0 0.0
    %2216 = vmatprep.subr.mxu0 0.0
    %2217 = vmatpush1.msra.mxu0 0.0
    %2218 = vmatprep.subr.mxu0 0.0
    %2219 = vmatpush1.msra.mxu0 0.0
    %2220 = vmatprep.subr.mxu0 0.0
    %2221 = vmatpush1.msra.mxu0 0.0
    %2222 = vmatprep.subr.mxu0 0.0
    %2223 = vmatpush1.msra.mxu0 0.0
    %2224 = vmatprep.subr.mxu0 0.0
    %2225 = vmatpush1.msra.mxu0 0.0
    %2226 = vmatprep.subr.mxu0 0.0
    %2227 = vmatpush1.msra.mxu0 0.0
    %2228 = vmatprep.subr.mxu0 0.0
    %2229 = vmatpush1.msra.mxu0 0.0
    %2230 = vmatprep.subr.mxu0 0.0
    %2231 = vmatpush1.msra.mxu0 0.0
    %2232 = vmatprep.subr.mxu0 0.0
    %2233 = vmatpush1.msra.mxu0 0.0
    %2234 = vmatprep.subr.mxu0 0.0
    %2235 = vmatpush1.msra.mxu0 0.0
    %2236 = vmatprep.subr.mxu0 0.0
    %2237 = vmatpush1.msra.mxu0 0.0
    %2238 = vmatprep.subr.mxu0 0.0
    %2239 = vmatpush1.msra.mxu0 0.0
    %2240 = vmatprep.subr.mxu0 0.0
    %2241 = vmatpush1.msra.mxu0 0.0
    %2242 = vmatprep.subr.mxu0 0.0
    %2243 = vmatpush1.msra.mxu0 0.0
    %2244 = vmatprep.subr.mxu0 0.0
    %2245 = vmatpush1.msra.mxu0 0.0
    %2246 = vmatprep.subr.mxu0 0.0
    %2247 = vmatpush1.msra.mxu0 0.0
    %2248 = vmatprep.subr.mxu0 0.0
    %2249 = vmatpush1.msra.mxu0 0.0
    %2250 = vmatprep.subr.mxu0 0.0
    %2251 = vmatpush1.msra.mxu0 0.0
    %2252 = vmatprep.subr.mxu0 0.0
    %2253 = vmatpush1.msra.mxu0 0.0
    %2254 = vmatprep.subr.mxu0 0.0
    %2255 = vmatpush1.msra.mxu0 0.0
    %2256 = vmatprep.subr.mxu0 0.0
    %2257 = vmatpush1.msra.mxu0 0.0
    %2258 = vmatprep.subr.mxu0 0.0
    %2259 = vmatpush1.msra.mxu0 0.0
    %2260 = vmatprep.subr.mxu0 0.0
    %2261 = vmatpush1.msra.mxu0 0.0
    %2262 = vmatprep.subr.mxu0 0.0
    %2263 = vmatpush1.msra.mxu0 0.0
    %2264 = vmatprep.subr.mxu0 0.0
    %2265 = vmatpush1.msra.mxu0 0.0
    %2266 = vmatprep.subr.mxu0 0.0
    %2267 = vmatpush1.msra.mxu0 0.0
    %2268 = vmatprep.mubr.f32.mxu0 0.0
    %2269 = vmatmul.mubr.f32.gmra.mrb[0].mxu0 %v1995
    %v2270 = vpop.f32.mrb[0].mxu0
    %v2271 = vadd.f32 0.0, %v2270
    %v2272 = vpop.f32.mrb[0].mxu0
    %2273 = vmatprep.mubr.f32.mxu0 0.0
    %2274 = vmatmul.mubr.f32.gmra.mrb[0].mxu0 %v1998
    %v2275 = vpop.f32.mrb[0].mxu0
    %v2276 = vadd.f32 0.0, %v2275
    %v2277 = vpop.f32.mrb[0].mxu0
    %2278 = vdwg.mxu0
    %vm2279 = vcmp.eq.s32.totalorder %v1909, %v75
    %vm2280 = vcmp.eq.s32.totalorder %v1910, %v75
    %v2281 = vsel %vm2279, 0.0, %v2271
    %v2282 = vsel %vm2280, 0.0, %v2276
    %vm2283 = vcmp.ne.f32.partialorder %v2281, 0.0
    %vm2284 = vcmp.ne.f32.partialorder %v2282, 0.0
    %s2285 = scalar_lea.vmem [#allocation9], 256
    %v2286 = vld [vmem:[%s2285] sm:$0xf]
    %v2287 = vld [vmem:[%s2285 + $0x4] sm:$0xf]
    %v2288 = vld [vmem:[%s2285 + $0x8] sm:$0xf]
    %v2289 = vld [vmem:[%s2285 + $0xc] sm:$0xf]
    %v2290 = vld [vmem:[%s2285 + $0x10] sm:$0xf]
    %v2291 = vld [vmem:[%s2285 + $0x14] sm:$0xf]
    %v2292 = vld [vmem:[%s2285 + $0x18] sm:$0xf]
    %v2293 = vld [vmem:[%s2285 + $0x1c] sm:$0xf]
    %v2294 = vld [vmem:[%s2285 + $0x20] sm:$0xf]
    %v2295 = vld [vmem:[%s2285 + $0x24] sm:$0xf]
    %v2296 = vld [vmem:[%s2285 + $0x28] sm:$0xf]
    %v2297 = vld [vmem:[%s2285 + $0x2c] sm:$0xf]
    %v2298 = vld [vmem:[%s2285 + $0x30] sm:$0xf]
    %v2299 = vld [vmem:[%s2285 + $0x34] sm:$0xf]
    %v2300 = vld [vmem:[%s2285 + $0x38] sm:$0xf]
    %v2301 = vld [vmem:[%s2285 + $0x3c] sm:$0xf]
    %s2302 = scalar_lea.vmem %s4, 4
    %v2303 = vld [vmem:[%s2302] sm:$0x1]
    %s2304 = sld [smem:[#allocation2 + $0x6]]
    %v2305 = vpack.c.bf16 %v2104, %v2103
    %v2307 = vlaneseq
    %v2308 = vshrl.u32 %v2307, 7
    %v2309 = vsub.s32 0, %v2308
    %v2310 = vrot.slane %v2303, %v2309
    %v2328 = vunpack.c.l.b16 %v2286
    %v2329 = vunpack.c.l.b16 %v2287
    %v2330 = vunpack.c.l.b16 %v2288
    %v2331 = vunpack.c.l.b16 %v2289
    %v2332 = vunpack.c.l.b16 %v2290
    %v2333 = vunpack.c.l.b16 %v2291
    %v2334 = vunpack.c.l.b16 %v2292
    %v2335 = vunpack.c.l.b16 %v2293
    %v2336 = vunpack.c.l.b16 %v2294
    %v2337 = vunpack.c.l.b16 %v2295
    %v2338 = vunpack.c.l.b16 %v2296
    %v2339 = vunpack.c.l.b16 %v2297
    %v2340 = vunpack.c.l.b16 %v2298
    %v2341 = vunpack.c.l.b16 %v2299
    %v2342 = vunpack.c.l.b16 %v2300
    %v2343 = vunpack.c.l.b16 %v2301
    %v2344 = vpack.c.b16 %v2329, %v2328
    %v2345 = vpack.c.b16 %v2331, %v2330
    %v2346 = vpack.c.b16 %v2333, %v2332
    %v2347 = vpack.c.b16 %v2335, %v2334
    %v2348 = vpack.c.b16 %v2337, %v2336
    %v2349 = vpack.c.b16 %v2339, %v2338
    %v2350 = vpack.c.b16 %v2341, %v2340
    %v2351 = vpack.c.b16 %v2343, %v2342
    %2360 = vmatprep.subr.bf16.mxu0 0
    %2361 = vmatpush1.bf16.msra.mxu0 %v2344
    %2362 = vmatprep.subr.bf16.mxu0 0
    %2363 = vmatpush1.bf16.msra.mxu0 %v2345
    %2364 = vmatprep.subr.bf16.mxu0 0
    %2365 = vmatpush1.bf16.msra.mxu0 %v2346
    %2366 = vmatprep.subr.bf16.mxu0 0
    %2367 = vmatpush1.bf16.msra.mxu0 %v2347
    %2368 = vmatprep.subr.bf16.mxu0 0
    %2369 = vmatpush1.bf16.msra.mxu0 %v2348
    %2370 = vmatprep.subr.bf16.mxu0 0
    %2371 = vmatpush1.bf16.msra.mxu0 %v2349
    %2372 = vmatprep.subr.bf16.mxu0 0
    %2373 = vmatpush1.bf16.msra.mxu0 %v2350
    %2374 = vmatprep.subr.bf16.mxu0 0
    %2375 = vmatpush1.bf16.msra.mxu0 %v2351
    %2376 = vmatprep.subr.bf16.mxu0 0
    %2377 = vmatpush1.bf16.msra.mxu0 0
    %2378 = vmatprep.subr.bf16.mxu0 0
    %2379 = vmatpush1.bf16.msra.mxu0 0
    %2380 = vmatprep.subr.bf16.mxu0 0
    %2381 = vmatpush1.bf16.msra.mxu0 0
    %2382 = vmatprep.subr.bf16.mxu0 0
    %2383 = vmatpush1.bf16.msra.mxu0 0
    %2384 = vmatprep.subr.bf16.mxu0 0
    %2385 = vmatpush1.bf16.msra.mxu0 0
    %2386 = vmatprep.subr.bf16.mxu0 0
    %2387 = vmatpush1.bf16.msra.mxu0 0
    %2388 = vmatprep.subr.bf16.mxu0 0
    %2389 = vmatpush1.bf16.msra.mxu0 0
    %2390 = vmatprep.subr.bf16.mxu0 0
    %2391 = vmatpush1.bf16.msra.mxu0 0
    %2392 = vmatprep.mubr.bf16.mxu0 0
    %2393 = vmatmul.mubr.bf16.gmra.mrb[0].mxu0 %v2305
    %v2394 = vpop.f32.mrb[0].mxu0
    %v2395 = vadd.f32 %v2310, %v2394
    %v2396 = vpop.f32.mrb[0].mxu0
    %v2397 = vpop.f32.mrb[0].mxu0
    %v2398 = vadd.f32 %v2310, %v2397
    %v2399 = vpop.f32.mrb[0].mxu0
    %2400 = vdwg.mxu0
    %v2401 = vxor.u32 %v2395, 2147483648
    %v2402 = vxor.u32 %v2398, 2147483648
    %v2403 = vmul.f32 %v2401, 1.442695
    %v2404 = vpow.pop %v2403
    %v2405 = vmul.f32 %v2402, 1.442695
    %v2406 = vpow.pop %v2405
    %v2407 = vadd.f32 %v2404, 1.0
    %v2408 = vadd.f32 %v2406, 1.0
    %v2409 = vrcp.pop %v2407
    %v2410 = vmul.f32 1.0, %v2409
    %v2411 = vrcp.pop %v2408
    %v2412 = vmul.f32 1.0, %v2411
    %v2413 = vstv %s2304
    %v2414 = vmul.f32 %v2410, %v2413
    %v2415 = vmul.f32 %v2412, %v2413
    %v2416 = vadd.f32 %v2414, 1.1
    %v2417 = vadd.f32 %v2415, 1.1
    %v2418 = vmul.f32 %v2395, %v2395
    %v2419 = vmul.f32 %v2398, %v2398
    %2420 = vadd.xlane.f32.xlu0 %v2418
    %v2421 = vpop.xlane.xlu0 %2420
    %2422 = vadd.xlane.f32.xlu0 %v2419
    %v2423 = vpop.xlane.xlu0 %2422
    %v2424 = vsub.f32 %v2421, %v2418
    %v2425 = vsub.f32 %v2423, %v2419
    %v2426 = vmul.f32 %v2416, %v2416
    %v2427 = vmul.f32 %v2417, %v2417
    %v2428 = vsub.f32 %v2426, 1.0
    %v2429 = vsub.f32 %v2427, 1.0
    %v2430 = vmax.f32 %v2424, 1e-08
    %v2431 = vmax.f32 %v2425, 1e-08
    %v2432 = vrcp.pop %v2430
    %v2433 = vmul.f32 %v2428, %v2432
    %v2434 = vrcp.pop %v2431
    %v2435 = vmul.f32 %v2429, %v2434
    %v2436 = vrsqrt.pop %v2433
    %v2437 = vmul.f32 %v2433, %v2436
    %vm2438 = vcmp.eq.f32.partialorder %v2433, inf
    %v2439 = vsel %vm2438, %v2433, %v2437
    %vm2440 = vcmp.eq.f32.partialorder %v2433, 0.0
    %v2441 = vand.u32 %v2433, 2147483648
    %v2442 = vsel %vm2440, %v2441, %v2439
    %v2443 = vrsqrt.pop %v2435
    %v2444 = vmul.f32 %v2435, %v2443
    %vm2445 = vcmp.eq.f32.partialorder %v2435, inf
    %v2446 = vsel %vm2445, %v2435, %v2444
    %vm2447 = vcmp.eq.f32.partialorder %v2435, 0.0
    %v2448 = vand.u32 %v2435, 2147483648
    %v2449 = vsel %vm2447, %v2448, %v2446
    %2451 = vset.pattern.permute.xlu0 0
    %2452 = vperm.xlu0 %2451, %v2442
    %v2453 = vpop.permute.xlu0 %2452
    %2456 = vset.pattern.permute.xlu0 0
    %2457 = vperm.xlu0 %2456, %v2449
    %v2458 = vpop.permute.xlu0 %2457
    %v2460 = vmul.f32 %v2395, %v2453
    %v2461 = vmul.f32 %v2398, %v2458
    %2463 = vset.pattern.permute.xlu0 0
    %2464 = vperm.xlu0 %2463, %v2416
    %v2465 = vpop.permute.xlu0 %2464
    %2468 = vset.pattern.permute.xlu0 0
    %2469 = vperm.xlu0 %2468, %v2417
    %v2470 = vpop.permute.xlu0 %2469
    %v2472 = vsel %vm216, %v2465, %v2460
    %v2473 = vsel %vm216, %v2470, %v2461
    %s2474 = scalar_lea.vmem [#allocation9], 320
    %v2475 = vld [vmem:[%s2474] sm:$0xf]
    %v2476 = vld [vmem:[%s2474 + $0x4] sm:$0xf]
    %v2477 = vld [vmem:[%s2474 + $0x8] sm:$0xf]
    %v2478 = vld [vmem:[%s2474 + $0xc] sm:$0xf]
    %v2479 = vld [vmem:[%s2474 + $0x10] sm:$0xf]
    %v2480 = vld [vmem:[%s2474 + $0x14] sm:$0xf]
    %v2481 = vld [vmem:[%s2474 + $0x18] sm:$0xf]
    %v2482 = vld [vmem:[%s2474 + $0x1c] sm:$0xf]
    %v2483 = vld [vmem:[%s2474 + $0x20] sm:$0xf]
    %v2484 = vld [vmem:[%s2474 + $0x24] sm:$0xf]
    %v2485 = vld [vmem:[%s2474 + $0x28] sm:$0xf]
    %v2486 = vld [vmem:[%s2474 + $0x2c] sm:$0xf]
    %v2487 = vld [vmem:[%s2474 + $0x30] sm:$0xf]
    %v2488 = vld [vmem:[%s2474 + $0x34] sm:$0xf]
    %v2489 = vld [vmem:[%s2474 + $0x38] sm:$0xf]
    %v2490 = vld [vmem:[%s2474 + $0x3c] sm:$0xf]
    %s2491 = scalar_lea.vmem %s4, 5
    %v2492 = vld [vmem:[%s2491] sm:$0x1]
    %s2493 = sld [smem:[#allocation2 + $0x7]]
    %v2494 = vmax.f32 %v2472, 0.0
    %v2495 = vmax.f32 %v2473, 0.0
    %v2496 = vpack.c.bf16 %v2495, %v2494
    %v2498 = vlaneseq
    %v2499 = vshrl.u32 %v2498, 7
    %v2500 = vsub.s32 0, %v2499
    %v2501 = vrot.slane %v2492, %v2500
    %v2519 = vunpack.c.l.b16 %v2475
    %v2520 = vunpack.c.l.b16 %v2476
    %v2521 = vunpack.c.l.b16 %v2477
    %v2522 = vunpack.c.l.b16 %v2478
    %v2523 = vunpack.c.l.b16 %v2479
    %v2524 = vunpack.c.l.b16 %v2480
    %v2525 = vunpack.c.l.b16 %v2481
    %v2526 = vunpack.c.l.b16 %v2482
    %v2527 = vunpack.c.l.b16 %v2483
    %v2528 = vunpack.c.l.b16 %v2484
    %v2529 = vunpack.c.l.b16 %v2485
    %v2530 = vunpack.c.l.b16 %v2486
    %v2531 = vunpack.c.l.b16 %v2487
    %v2532 = vunpack.c.l.b16 %v2488
    %v2533 = vunpack.c.l.b16 %v2489
    %v2534 = vunpack.c.l.b16 %v2490
    %v2535 = vpack.c.b16 %v2520, %v2519
    %v2536 = vpack.c.b16 %v2522, %v2521
    %v2537 = vpack.c.b16 %v2524, %v2523
    %v2538 = vpack.c.b16 %v2526, %v2525
    %v2539 = vpack.c.b16 %v2528, %v2527
    %v2540 = vpack.c.b16 %v2530, %v2529
    %v2541 = vpack.c.b16 %v2532, %v2531
    %v2542 = vpack.c.b16 %v2534, %v2533
    %2551 = vmatprep.subr.bf16.mxu0 0
    %2552 = vmatpush1.bf16.msra.mxu0 %v2535
    %2553 = vmatprep.subr.bf16.mxu0 0
    %2554 = vmatpush1.bf16.msra.mxu0 %v2536
    %2555 = vmatprep.subr.bf16.mxu0 0
    %2556 = vmatpush1.bf16.msra.mxu0 %v2537
    %2557 = vmatprep.subr.bf16.mxu0 0
    %2558 = vmatpush1.bf16.msra.mxu0 %v2538
    %2559 = vmatprep.subr.bf16.mxu0 0
    %2560 = vmatpush1.bf16.msra.mxu0 %v2539
    %2561 = vmatprep.subr.bf16.mxu0 0
    %2562 = vmatpush1.bf16.msra.mxu0 %v2540
    %2563 = vmatprep.subr.bf16.mxu0 0
    %2564 = vmatpush1.bf16.msra.mxu0 %v2541
    %2565 = vmatprep.subr.bf16.mxu0 0
    %2566 = vmatpush1.bf16.msra.mxu0 %v2542
    %2567 = vmatprep.subr.bf16.mxu0 0
    %2568 = vmatpush1.bf16.msra.mxu0 0
    %2569 = vmatprep.subr.bf16.mxu0 0
    %2570 = vmatpush1.bf16.msra.mxu0 0
    %2571 = vmatprep.subr.bf16.mxu0 0
    %2572 = vmatpush1.bf16.msra.mxu0 0
    %2573 = vmatprep.subr.bf16.mxu0 0
    %2574 = vmatpush1.bf16.msra.mxu0 0
    %2575 = vmatprep.subr.bf16.mxu0 0
    %2576 = vmatpush1.bf16.msra.mxu0 0
    %2577 = vmatprep.subr.bf16.mxu0 0
    %2578 = vmatpush1.bf16.msra.mxu0 0
    %2579 = vmatprep.subr.bf16.mxu0 0
    %2580 = vmatpush1.bf16.msra.mxu0 0
    %2581 = vmatprep.subr.bf16.mxu0 0
    %2582 = vmatpush1.bf16.msra.mxu0 0
    %2583 = vmatprep.mubr.bf16.mxu0 0
    %2584 = vmatmul.mubr.bf16.gmra.mrb[0].mxu0 %v2496
    %v2585 = vpop.f32.mrb[0].mxu0
    %v2586 = vadd.f32 %v2501, %v2585
    %v2587 = vpop.f32.mrb[0].mxu0
    %v2588 = vpop.f32.mrb[0].mxu0
    %v2589 = vadd.f32 %v2501, %v2588
    %v2590 = vpop.f32.mrb[0].mxu0
    %2591 = vdwg.mxu0
    %v2592 = vxor.u32 %v2586, 2147483648
    %v2593 = vxor.u32 %v2589, 2147483648
    %v2594 = vmul.f32 %v2592, 1.442695
    %v2595 = vpow.pop %v2594
    %v2596 = vmul.f32 %v2593, 1.442695
    %v2597 = vpow.pop %v2596
    %v2598 = vadd.f32 %v2595, 1.0
    %v2599 = vadd.f32 %v2597, 1.0
    %v2600 = vrcp.pop %v2598
    %v2601 = vmul.f32 1.0, %v2600
    %v2602 = vrcp.pop %v2599
    %v2603 = vmul.f32 1.0, %v2602
    %v2604 = vstv %s2493
    %v2605 = vmul.f32 %v2601, %v2604
    %v2606 = vmul.f32 %v2603, %v2604
    %v2607 = vadd.f32 %v2605, 1.1
    %v2608 = vadd.f32 %v2606, 1.1
    %v2609 = vmul.f32 %v2586, %v2586
    %v2610 = vmul.f32 %v2589, %v2589
    %2611 = vadd.xlane.f32.xlu0 %v2609
    %v2612 = vpop.xlane.xlu0 %2611
    %2613 = vadd.xlane.f32.xlu0 %v2610
    %v2614 = vpop.xlane.xlu0 %2613
    %v2615 = vsub.f32 %v2612, %v2609
    %v2616 = vsub.f32 %v2614, %v2610
    %v2617 = vmul.f32 %v2607, %v2607
    %v2618 = vmul.f32 %v2608, %v2608
    %v2619 = vsub.f32 %v2617, 1.0
    %v2620 = vsub.f32 %v2618, 1.0
    %v2621 = vmax.f32 %v2615, 1e-08
    %v2622 = vmax.f32 %v2616, 1e-08
    %v2623 = vrcp.pop %v2621
    %v2624 = vmul.f32 %v2619, %v2623
    %v2625 = vrcp.pop %v2622
    %v2626 = vmul.f32 %v2620, %v2625
    %v2627 = vrsqrt.pop %v2624
    %v2628 = vmul.f32 %v2624, %v2627
    %vm2629 = vcmp.eq.f32.partialorder %v2624, inf
    %v2630 = vsel %vm2629, %v2624, %v2628
    %vm2631 = vcmp.eq.f32.partialorder %v2624, 0.0
    %v2632 = vand.u32 %v2624, 2147483648
    %v2633 = vsel %vm2631, %v2632, %v2630
    %v2634 = vrsqrt.pop %v2626
    %v2635 = vmul.f32 %v2626, %v2634
    %vm2636 = vcmp.eq.f32.partialorder %v2626, inf
    %v2637 = vsel %vm2636, %v2626, %v2635
    %vm2638 = vcmp.eq.f32.partialorder %v2626, 0.0
    %v2639 = vand.u32 %v2626, 2147483648
    %v2640 = vsel %vm2638, %v2639, %v2637
    %2642 = vset.pattern.permute.xlu0 0
    %2643 = vperm.xlu0 %2642, %v2633
    %v2644 = vpop.permute.xlu0 %2643
    %2647 = vset.pattern.permute.xlu0 0
    %2648 = vperm.xlu0 %2647, %v2640
    %v2649 = vpop.permute.xlu0 %2648
    %v2651 = vmul.f32 %v2586, %v2644
    %v2652 = vmul.f32 %v2589, %v2649
    %2654 = vset.pattern.permute.xlu0 0
    %2655 = vperm.xlu0 %2654, %v2607
    %v2656 = vpop.permute.xlu0 %2655
    %2659 = vset.pattern.permute.xlu0 0
    %2660 = vperm.xlu0 %2659, %v2608
    %v2661 = vpop.permute.xlu0 %2660
    %v2663 = vsel %vm216, %v2656, %v2651
    %v2664 = vsel %vm216, %v2661, %v2652
    %v2665 = vsel %vm2283, 1, 0
    %v2666 = vsel %vm2284, 1, 0
    %v2667 = vcvt.s32.f32 %v2665
    %v2668 = vcvt.s32.f32 %v2666
    %v2669 = vpack.c.bf16 %v2668, %v2667
    %v2670 = vpack.c.bf16 %v2664, %v2663
    %vm2671 = vcmask 130048
    %v2673 = vsel %vm2671, %v2669, 0
    %2675 = vmatprep.subr.bf16.mxu0 0
    %2676 = vmatpush1.bf16.msra.mxu0 %v2670
    %2677 = vmatprep.subr.bf16.mxu0 0
    %2678 = vmatpush1.bf16.msra.mxu0 0
    %2679 = vmatprep.subr.bf16.mxu0 0
    %2680 = vmatpush1.bf16.msra.mxu0 0
    %2681 = vmatprep.subr.bf16.mxu0 0
    %2682 = vmatpush1.bf16.msra.mxu0 0
    %2683 = vmatprep.subr.bf16.mxu0 0
    %2684 = vmatpush1.bf16.msra.mxu0 0
    %2685 = vmatprep.subr.bf16.mxu0 0
    %2686 = vmatpush1.bf16.msra.mxu0 0
    %2687 = vmatprep.subr.bf16.mxu0 0
    %2688 = vmatpush1.bf16.msra.mxu0 0
    %2689 = vmatprep.subr.bf16.mxu0 0
    %2690 = vmatpush1.bf16.msra.mxu0 0
    %2691 = vmatprep.subr.bf16.mxu0 0
    %2692 = vmatpush1.bf16.msra.mxu0 0
    %2693 = vmatprep.subr.bf16.mxu0 0
    %2694 = vmatpush1.bf16.msra.mxu0 0
    %2695 = vmatprep.subr.bf16.mxu0 0
    %2696 = vmatpush1.bf16.msra.mxu0 0
    %2697 = vmatprep.subr.bf16.mxu0 0
    %2698 = vmatpush1.bf16.msra.mxu0 0
    %2699 = vmatprep.subr.bf16.mxu0 0
    %2700 = vmatpush1.bf16.msra.mxu0 0
    %2701 = vmatprep.subr.bf16.mxu0 0
    %2702 = vmatpush1.bf16.msra.mxu0 0
    %2703 = vmatprep.subr.bf16.mxu0 0
    %2704 = vmatpush1.bf16.msra.mxu0 0
    %2705 = vmatprep.subr.bf16.mxu0 0
    %2706 = vmatpush1.bf16.msra.mxu0 0
    %2707 = vmatprep.mubr.bf16.mxu0 0
    %2708 = vmatmul.mubr.bf16.gmra.mrb[0].mxu0 %v2673
    %v2709 = vpop.f32.mrb[0].mxu0
    %v2710 = vadd.f32 0.0, %v2709
    %v2711 = vpop.f32.mrb[0].mxu0
    %v2712 = vpop.f32.mrb[0].mxu0
    %v2713 = vadd.f32 0.0, %v2712
    %v2714 = vpop.f32.mrb[0].mxu0
    %2715 = vdwg.mxu0
    %v2716 = vmul.f32 %v2710, %v2710
    %v2717 = vmul.f32 %v2713, %v2713
    %2718 = vadd.xlane.f32.xlu0 %v2716
    %v2719 = vpop.xlane.xlu0 %2718
    %2720 = vadd.xlane.f32.xlu0 %v2717
    %v2721 = vpop.xlane.xlu0 %2720
    %v2722 = vmul.f32 %v2710, 2.0
    %v2723 = vmul.f32 %v2713, 2.0
    %v2724 = vmul.f32 %v2722, %v2710
    %v2725 = vmul.f32 %v2723, %v2713
    %v2726 = vsub.f32 %v2719, %v2724
    %v2727 = vsub.f32 %v2721, %v2725
    %v2728 = vand.u32 2147483647, %v2726
    %v2729 = vand.u32 2147483647, %v2727
    %v2730 = vmax.f32 %v2728, 1e-08
    %v2731 = vmax.f32 %v2729, 1e-08
    %v2732 = vrsqrt.pop %v2730
    %v2733 = vrsqrt.pop %v2731
    %2735 = vset.pattern.permute.xlu0 0
    %2736 = vperm.xlu0 %2735, %v2732
    %v2737 = vpop.permute.xlu0 %2736
    %2740 = vset.pattern.permute.xlu0 0
    %2741 = vperm.xlu0 %2740, %v2733
    %v2742 = vpop.permute.xlu0 %2741
    %v2744 = vmul.f32 %v2710, %v2737
    %v2745 = vmul.f32 %v2713, %v2742
    %vm2746 = vcmp.le.s32.totalorder %v75, 3
    %vm2747 = vmand %vm1854, %vm2746
    %v2748 = vmul.f32 %v2744, %v1857
    %v2749 = vmul.f32 %v2745, %v1857
    %v2750 = vsel %vm2747, 1, 0
    %vm2751 = vcmp.eq.s32.totalorder %v2750, 1
    %v2752 = vsel %vm2751, %v2748, -1e+30
    %v2753 = vsel %vm2751, %v2749, -1e+30
    %2754 = vmax.xlane.f32.xlu0 %v2752
    %v2755 = vpop.xlane.xlu0 %2754
    %2756 = vmax.xlane.f32.xlu0 %v2753
    %v2757 = vpop.xlane.xlu0 %2756
    %v2758 = vsub.f32 %v2752, %v2755
    %v2759 = vsub.f32 %v2753, %v2757
    %v2760 = vmul.f32 %v2758, 1.442695
    %v2761 = vpow.pop %v2760
    %v2762 = vmul.f32 %v2759, 1.442695
    %v2763 = vpow.pop %v2762
    %2764 = vadd.xlane.f32.xlu0 %v2761
    %v2765 = vpop.xlane.xlu0 %2764
    %2766 = vadd.xlane.f32.xlu0 %v2763
    %v2767 = vpop.xlane.xlu0 %2766
    %v2768 = vrcp.pop %v2765
    %v2769 = vmul.f32 %v2761, %v2768
    %v2770 = vrcp.pop %v2767
    %v2771 = vmul.f32 %v2763, %v2770
    %2772 = vst [vmem:[#allocation10 + $0x60] sm:$0xff] %v2769
    %2773 = vst [vmem:[#allocation10 + $0x68] sm:$0xff] %v2771
    %2774 = vmatprep.subr.mxu0 0.0
    %2775 = vmatpush1.xpose.msra.mxu0 %v2769
    %2776 = vmatprep.subr.mxu0 0.0
    %2777 = vmatpush1.xpose.msra.mxu0 %v2771
    %2778 = vmatprep.subr.mxu0 0.0
    %2779 = vmatpush1.xpose.msra.mxu0 0.0
    %2780 = vmatprep.subr.mxu0 0.0
    %2781 = vmatpush1.xpose.msra.mxu0 0.0
    %2782 = vmatprep.subr.mxu0 0.0
    %2783 = vmatpush1.xpose.msra.mxu0 0.0
    %2784 = vmatprep.subr.mxu0 0.0
    %2785 = vmatpush1.xpose.msra.mxu0 0.0
    %2786 = vmatprep.subr.mxu0 0.0
    %2787 = vmatpush1.xpose.msra.mxu0 0.0
    %2788 = vmatprep.subr.mxu0 0.0
    %2789 = vmatpush1.xpose.msra.mxu0 0.0
    %2790 = vmatprep.subr.mxu0 0.0
    %2791 = vmatpush1.xpose.msra.mxu0 0.0
    %2792 = vmatprep.subr.mxu0 0.0
    %2793 = vmatpush1.xpose.msra.mxu0 0.0
    %2794 = vmatprep.subr.mxu0 0.0
    %2795 = vmatpush1.xpose.msra.mxu0 0.0
    %2796 = vmatprep.subr.mxu0 0.0
    %2797 = vmatpush1.xpose.msra.mxu0 0.0
    %2798 = vmatprep.subr.mxu0 0.0
    %2799 = vmatpush1.xpose.msra.mxu0 0.0
    %2800 = vmatprep.subr.mxu0 0.0
    %2801 = vmatpush1.xpose.msra.mxu0 0.0
    %2802 = vmatprep.subr.mxu0 0.0
    %2803 = vmatpush1.xpose.msra.mxu0 0.0
    %2804 = vmatprep.subr.mxu0 0.0
    %2805 = vmatpush1.xpose.msra.mxu0 0.0
    %2806 = vmatprep.subr.mxu0 0.0
    %2807 = vmatpush1.xpose.msra.mxu0 0.0
    %2808 = vmatprep.subr.mxu0 0.0
    %2809 = vmatpush1.xpose.msra.mxu0 0.0
    %2810 = vmatprep.subr.mxu0 0.0
    %2811 = vmatpush1.xpose.msra.mxu0 0.0
    %2812 = vmatprep.subr.mxu0 0.0
    %2813 = vmatpush1.xpose.msra.mxu0 0.0
    %2814 = vmatprep.subr.mxu0 0.0
    %2815 = vmatpush1.xpose.msra.mxu0 0.0
    %2816 = vmatprep.subr.mxu0 0.0
    %2817 = vmatpush1.xpose.msra.mxu0 0.0
    %2818 = vmatprep.subr.mxu0 0.0
    %2819 = vmatpush1.xpose.msra.mxu0 0.0
    %2820 = vmatprep.subr.mxu0 0.0
    %2821 = vmatpush1.xpose.msra.mxu0 0.0
    %2822 = vmatprep.subr.mxu0 0.0
    %2823 = vmatpush1.xpose.msra.mxu0 0.0
    %2824 = vmatprep.subr.mxu0 0.0
    %2825 = vmatpush1.xpose.msra.mxu0 0.0
    %2826 = vmatprep.subr.mxu0 0.0
    %2827 = vmatpush1.xpose.msra.mxu0 0.0
    %2828 = vmatprep.subr.mxu0 0.0
    %2829 = vmatpush1.xpose.msra.mxu0 0.0
    %2830 = vmatprep.subr.mxu0 0.0
    %2831 = vmatpush1.xpose.msra.mxu0 0.0
    %2832 = vmatprep.subr.mxu0 0.0
    %2833 = vmatpush1.xpose.msra.mxu0 0.0
    %2834 = vmatprep.subr.mxu0 0.0
    %2835 = vmatpush1.xpose.msra.mxu0 0.0
    %2836 = vmatprep.subr.mxu0 0.0
    %2837 = vmatpush1.xpose.msra.mxu0 0.0
    %2838 = vmatprep.mubr.f32.mxu0 0.0
    %2839 = vmatmul.mubr.f32.gmra.mrb[0].mxu0 %v1917
    %v2840 = vpop.f32.mrb[0].mxu0
    %v2841 = vadd.f32 0.0, %v2840
    %v2842 = vpop.f32.mrb[0].mxu0
    %2843 = vdwg.mxu0
    %vm2844 = vcmp.lt.s32.totalorder %v75, 10
    %v2845 = vsel %vm2844, 1, 0
    %vm2846 = vcmp.eq.s32.totalorder %v2845, 1
    %v2847 = vsel %vm2846, %v2841, 0.0
    %v2849 = vsel %vm2671, %v2847, 0
    %2851 = vmatprep.subr.mxu0 0.0
    %2852 = vmatpush1.msra.mxu0 %v2103
    %2853 = vmatprep.subr.mxu0 0.0
    %2854 = vmatpush1.msra.mxu0 %v2104
    %2855 = vmatprep.subr.mxu0 0.0
    %2856 = vmatpush1.msra.mxu0 0.0
    %2857 = vmatprep.subr.mxu0 0.0
    %2858 = vmatpush1.msra.mxu0 0.0
    %2859 = vmatprep.subr.mxu0 0.0
    %2860 = vmatpush1.msra.mxu0 0.0
    %2861 = vmatprep.subr.mxu0 0.0
    %2862 = vmatpush1.msra.mxu0 0.0
    %2863 = vmatprep.subr.mxu0 0.0
    %2864 = vmatpush1.msra.mxu0 0.0
    %2865 = vmatprep.subr.mxu0 0.0
    %2866 = vmatpush1.msra.mxu0 0.0
    %2867 = vmatprep.subr.mxu0 0.0
    %2868 = vmatpush1.msra.mxu0 0.0
    %2869 = vmatprep.subr.mxu0 0.0
    %2870 = vmatpush1.msra.mxu0 0.0
    %2871 = vmatprep.subr.mxu0 0.0
    %2872 = vmatpush1.msra.mxu0 0.0
    %2873 = vmatprep.subr.mxu0 0.0
    %2874 = vmatpush1.msra.mxu0 0.0
    %2875 = vmatprep.subr.mxu0 0.0
    %2876 = vmatpush1.msra.mxu0 0.0
    %2877 = vmatprep.subr.mxu0 0.0
    %2878 = vmatpush1.msra.mxu0 0.0
    %2879 = vmatprep.subr.mxu0 0.0
    %2880 = vmatpush1.msra.mxu0 0.0
    %2881 = vmatprep.subr.mxu0 0.0
    %2882 = vmatpush1.msra.mxu0 0.0
    %2883 = vmatprep.subr.mxu0 0.0
    %2884 = vmatpush1.msra.mxu0 0.0
    %2885 = vmatprep.subr.mxu0 0.0
    %2886 = vmatpush1.msra.mxu0 0.0
    %2887 = vmatprep.subr.mxu0 0.0
    %2888 = vmatpush1.msra.mxu0 0.0
    %2889 = vmatprep.subr.mxu0 0.0
    %2890 = vmatpush1.msra.mxu0 0.0
    %2891 = vmatprep.subr.mxu0 0.0
    %2892 = vmatpush1.msra.mxu0 0.0
    %2893 = vmatprep.subr.mxu0 0.0
    %2894 = vmatpush1.msra.mxu0 0.0
    %2895 = vmatprep.subr.mxu0 0.0
    %2896 = vmatpush1.msra.mxu0 0.0
    %2897 = vmatprep.subr.mxu0 0.0
    %2898 = vmatpush1.msra.mxu0 0.0
    %2899 = vmatprep.subr.mxu0 0.0
    %2900 = vmatpush1.msra.mxu0 0.0
    %2901 = vmatprep.subr.mxu0 0.0
    %2902 = vmatpush1.msra.mxu0 0.0
    %2903 = vmatprep.subr.mxu0 0.0
    %2904 = vmatpush1.msra.mxu0 0.0
    %2905 = vmatprep.subr.mxu0 0.0
    %2906 = vmatpush1.msra.mxu0 0.0
    %2907 = vmatprep.subr.mxu0 0.0
    %2908 = vmatpush1.msra.mxu0 0.0
    %2909 = vmatprep.subr.mxu0 0.0
    %2910 = vmatpush1.msra.mxu0 0.0
    %2911 = vmatprep.subr.mxu0 0.0
    %2912 = vmatpush1.msra.mxu0 0.0
    %2913 = vmatprep.subr.mxu0 0.0
    %2914 = vmatpush1.msra.mxu0 0.0
    %2915 = vmatprep.mubr.f32.mxu0 0.0
    %2916 = vmatmul.mubr.f32.gmra.mrb[0].mxu0 %v2849
    %v2917 = vpop.f32.mrb[0].mxu0
    %v2918 = vadd.f32 0.0, %v2917
    %v2919 = vpop.f32.mrb[0].mxu0
    %2920 = vdwg.mxu0
    %v2921 = vmul.f32 %v2918, %v2918
    %2922 = vadd.xlane.f32.xlu0 %v2921
    %v2923 = vpop.xlane.xlu0 %2922
    %v2924 = vmul.f32 %v2918, 2.0
    %v2925 = vmul.f32 %v2924, %v2918
    %v2926 = vsub.f32 %v2923, %v2925
    %v2927 = vand.u32 2147483647, %v2926
    %v2928 = vmax.f32 %v2927, 1e-08
    %v2929 = vrsqrt.pop %v2928
    %2931 = vset.pattern.permute.xlu0 0
    %2932 = vperm.xlu0 %2931, %v2929
    %v2933 = vpop.permute.xlu0 %2932
    %v2935 = vmul.f32 %v2918, %v2933
    %2936 = vst [vmem:[#allocation10 + $0x30] sm:$0xff] %v2935
    %v2937 = vrot.slane %v2935, 4
    %v2938 = vadd.f32 %v2935, %v2937
    %v2939 = vrot.slane %v2938, 2
    %v2940 = vadd.f32 %v2938, %v2939
    %v2941 = vrot.slane %v2940, 1
    %v2942 = vadd.f32 %v2940, %v2941
    %v2943 = vmul.f32 %v2942, %v2942
    %2944 = vadd.xlane.f32.xlu0 %v2943
    %v2945 = vpop.xlane.xlu0 %2944
    %v2946 = vmul.f32 %v2942, 2.0
    %v2947 = vmul.f32 %v2946, %v2942
    %v2948 = vsub.f32 %v2945, %v2947
    %v2949 = vand.u32 2147483647, %v2948
    %v2950 = vmax.f32 %v2949, 1e-08
    %v2951 = vrsqrt.pop %v2950
    %2953 = vset.pattern.permute.xlu0 0
    %2954 = vperm.xlu0 %2953, %v2951
    %v2955 = vpop.permute.xlu0 %2954
    %v2957 = vmul.f32 %v2942, %v2955
    %2958 = vst [vmem:[#allocation10 + $0x38] sm:$0xff] %v2957
    // Predicated region
    $region38: #{tpu_custom_call.1} parent=1 // pred_check
      _
    $region39: #{tpu_custom_call.1} parent=1 // pred_check_branch
      %2960 = sbr.rel (0) target = $region41
    $region40: #{tpu_custom_call.1} parent=1 // pred_region
      %s2962 = ssub.s32 1792, 1792
      %2963 = vsyncadd [#allocation4], %s2962
      %s2964 = sshll.u32 [#allocation10], 4
      %s2965 = int_to_ptr.vmem [resolvable:$true] %s2964
      %2970 = dma.vmem_to_hbm [thread:$0]  %s2965, 1792, %s5, [#allocation4], 128, 128, 8
    $region41: #{tpu_custom_call.1} parent=1 // pred_fallthru
      _
    // Predicated region
    $region42: #{tpu_custom_call.1} parent=1 // pred_check
      _
    $region43: #{tpu_custom_call.1} parent=1 // pred_check_branch
      %2972 = sbr.rel (0) target = $region45
    $region44: #{tpu_custom_call.1} parent=1 // pred_region
      %2973 = dma.done [#allocation4], 1792
    $region45: #{tpu_custom_call.1} parent=1 // pred_fallthru
      _
    %2974 = vsyncpa [#allocation3], 1
    %2975 = vsyncpa [#allocation8], 1
    %2976 = vsyncpa [#allocation4], 1
    %2977 = vsyncpa [#allocation5], 1

</llo_original>
